<compile_context>
chip_gen: v6e
topology: v6e:2x2x1
jax: 0.10.0
libtpu: 0.0.40
codegen_flags: <defaults>
</compile_context>

<pallas_src>
import functools

import jax
import jax.numpy as jnp
from jax.experimental import pallas as pl
from jax.experimental.pallas import tpu as pltpu


# ----------------------------- helpers --------------------------------------


def _round_up(x, m):
    return (x + m - 1) // m * m


def _pick_time_chunk(T, max_chunk):
    for c in range(min(T, max_chunk), 0, -1):
        if T % c == 0:
            return c
    return T


def _pad_gate_cols(w, H, Hp):
    """(in, 4H) [i|f|g|o] -> (in, 4*Hp) with each gate zero-padded to Hp lanes."""
    n_in = w.shape[0]
    w = w.reshape(n_in, 4, H)
    w = jnp.pad(w, ((0, 0), (0, 0), (0, Hp - H)))
    return w.reshape(n_in, 4 * Hp)


def _pad_rows(w, n, n_pad):
    return jnp.pad(w, ((0, n_pad - n), (0, 0)))


def _full_spec(shape):
    return pl.BlockSpec(shape, lambda b, t, nd=len(shape): (0,) * nd)


# ----------------------------- kernel ---------------------------------------


def sentiment_kernel(x_ref, wih1_ref, whh1_ref, b1_ref,
                     wih2_ref, whh2_ref, b2_ref,
                     wfc_ref, bfc_ref, wout_ref, bout_ref,
                     out_ref,
                     h1_ref, c1_ref, h2_ref, c2_ref):
    TT, TB, E = x_ref.shape
    Hp = whh1_ref.shape[0]
    cdt = x_ref.dtype                       # MXU input dtype (bf16)

    t_idx = pl.program_id(1)
    last_t = pl.num_programs(1) - 1

    @pl.when(t_idx == 0)
    def _():
        zeros = jnp.zeros((TB, Hp), jnp.float32)
        h1_ref[...] = zeros
        c1_ref[...] = zeros
        h2_ref[...] = zeros
        c2_ref[...] = zeros

    def gate_split(gates):
        # Each gate is a whole-vreg lane span (Hp = multiple of 128).
        i = jax.nn.sigmoid(gates[:, 0 * Hp:1 * Hp])
        f = jax.nn.sigmoid(gates[:, 1 * Hp:2 * Hp])
        g = jnp.tanh(gates[:, 2 * Hp:3 * Hp])
        o = jax.nn.sigmoid(gates[:, 3 * Hp:4 * Hp])
        return i, f, g, o

    # ---- phase 1: hoisted input projection for LSTM layer 1 (one big matmul) ----
    x_flat = x_ref[...].reshape(TT * TB, E)
    gx1 = (jnp.dot(x_flat, wih1_ref[...], preferred_element_type=jnp.float32)
           + b1_ref[...])                                   # (TT*TB, 4*Hp), f32

    # ---- layer-1 recurrence over the chunk (fully unrolled) ----
    whh1 = whh1_ref[...]
    h1 = h1_ref[...]
    c1 = c1_ref[...]
    h1_steps = []
    for t in range(TT):
        gates = gx1[t * TB:(t + 1) * TB, :] + jnp.dot(
            h1.astype(cdt), whh1, preferred_element_type=jnp.float32)
        i, f, g, o = gate_split(gates)
        c1 = f * c1 + i * g
        h1 = o * jnp.tanh(c1)
        h1_steps.append(h1.astype(cdt))
    h1_ref[...] = h1
    c1_ref[...] = c1

    # ---- phase 2: hoisted input projection for LSTM layer 2 ----
    # (dropout between the two LSTMs is identity at inference time)
    h1_seq = jnp.concatenate(h1_steps, axis=0)              # (TT*TB, Hp)
    gx2 = (jnp.dot(h1_seq, wih2_ref[...], preferred_element_type=jnp.float32)
           + b2_ref[...])

    # ---- layer-2 recurrence over the chunk (fully unrolled) ----
    whh2 = whh2_ref[...]
    h2 = h2_ref[...]
    c2 = c2_ref[...]
    for t in range(TT):
        gates = gx2[t * TB:(t + 1) * TB, :] + jnp.dot(
            h2.astype(cdt), whh2, preferred_element_type=jnp.float32)
        i, f, g, o = gate_split(gates)
        c2 = f * c2 + i * g
        h2 = o * jnp.tanh(c2)
    h2_ref[...] = h2
    c2_ref[...] = c2

    # ---- head: last time step -> fc -> relu -> fc (lane-dense padded output) ----
    @pl.when(t_idx == last_t)
    def _():
        fused = jnp.dot(h2.astype(cdt), wfc_ref[...],
                        preferred_element_type=jnp.float32) + bfc_ref[...]
        fused = jnp.maximum(fused, 0.0)
        out_ref[...] = (jnp.dot(fused.astype(cdt), wout_ref[...],
                                preferred_element_type=jnp.float32)
                        + bout_ref[...])


# ----------------------------- parameters -----------------------------------


def init_params(key, vocab_size, hidden_size, num_classes, embed_dim=128):
    """PyTorch-equivalent (unpadded, f32) parameters; b = b_ih + b_hh pre-folded."""
    ks = jax.random.split(key, 11)
    H = hidden_size

    def s(k, shape, scale=0.1):
        return jax.random.normal(k, shape, jnp.float32) * scale

    return dict(
        embedding=s(ks[0], (vocab_size, embed_dim)),
        wih1=s(ks[1], (embed_dim, 4 * H)),
        whh1=s(ks[2], (H, 4 * H)),
        b1=s(ks[3], (1, 4 * H)),
        wih2=s(ks[4], (H, 4 * H)),
        whh2=s(ks[5], (H, 4 * H)),
        b2=s(ks[6], (1, 4 * H)),
        wfc=s(ks[7], (H, H)),
        bfc=s(ks[8], (1, H)),
        wout=s(ks[9], (H, num_classes)),
        bout=s(ks[10], (1, num_classes)),
    )


def pack_params(params, compute_dtype=jnp.bfloat16):
    """Pad H/gates/classes to 128 lanes (zeros) and cast matmul weights to bf16.

    Padded lanes stay exactly zero through the recurrence because the padded
    weight columns and biases are zero (i*g = 0, f*c = 0 on padded lanes).
    """
    H = params['whh1'].shape[0]
    C = params['wout'].shape[1]
    Hp = _round_up(H, 128)
    Cp = _round_up(C, 128)
    cd = compute_dtype

    return dict(
        wih1=_pad_gate_cols(params['wih1'], H, Hp).astype(cd),
        whh1=_pad_rows(_pad_gate_cols(params['whh1'], H, Hp), H, Hp).astype(cd),
        b1=_pad_gate_cols(params['b1'], H, Hp).astype(jnp.float32),
        wih2=_pad_rows(_pad_gate_cols(params['wih2'], H, Hp), H, Hp).astype(cd),
        whh2=_pad_rows(_pad_gate_cols(params['whh2'], H, Hp), H, Hp).astype(cd),
        b2=_pad_gate_cols(params['b2'], H, Hp).astype(jnp.float32),
        wfc=jnp.pad(params['wfc'], ((0, Hp - H), (0, Hp - H))).astype(cd),
        bfc=jnp.pad(params['bfc'], ((0, 0), (0, Hp - H))).astype(jnp.float32),
        wout=jnp.pad(params['wout'], ((0, Hp - H), (0, Cp - C))).astype(cd),
        bout=jnp.pad(params['bout'], ((0, 0), (0, Cp - C))).astype(jnp.float32),
    )


# ----------------------------- wrapper ---------------------------------------


@functools.partial(jax.jit,
                   static_argnames=("num_classes", "batch_block", "max_time_chunk"))
def sentiment_forward(text_input, image_input, embedding, packed, *,
                      num_classes, batch_block=8, max_time_chunk=8):
    # image_input is accepted but unused by the reference forward pass.
    del image_input

    B, T = text_input.shape
    E = embedding.shape[1]
    Hp = packed['whh1'].shape[0]
    Cp = packed['wout'].shape[1]
    cd = packed['wih1'].dtype

    # Gather embedding rows directly in time-major order: (T, B, E).
    x = jnp.take(embedding, text_input.T, axis=0).astype(cd)

    TB = batch_block
    Bp = _round_up(B, TB)
    if Bp != B:
        x = jnp.pad(x, ((0, 0), (0, Bp - B), (0, 0)))
    TT = _pick_time_chunk(T, max_time_chunk)

    grid = (Bp // TB, T // TT)   # (batch blocks: parallel, time chunks: arbitrary)

    in_specs = [
        pl.BlockSpec((TT, TB, E), lambda b, t: (t, b, 0)),   # streamed x chunks
        _full_spec(packed['wih1'].shape), _full_spec(packed['whh1'].shape),
        _full_spec(packed['b1'].shape),
        _full_spec(packed['wih2'].shape), _full_spec(packed['whh2'].shape),
        _full_spec(packed['b2'].shape),
        _full_spec(packed['wfc'].shape), _full_spec(packed['bfc'].shape),
        _full_spec(packed['wout'].shape), _full_spec(packed['bout'].shape),
    ]
    out_spec = pl.BlockSpec((TB, Cp), lambda b, t: (b, 0))   # resident over time axis

    out_padded = pl.pallas_call(
        sentiment_kernel,
        out_shape=jax.ShapeDtypeStruct((Bp, Cp), jnp.float32),
        grid_spec=pltpu.PrefetchScalarGridSpec(
            num_scalar_prefetch=0,
            grid=grid,
            in_specs=in_specs,
            out_specs=out_spec,
            scratch_shapes=[pltpu.VMEM((TB, Hp), jnp.float32)] * 4,  # h1,c1,h2,c2
        ),
        compiler_params=pltpu.CompilerParams(
            dimension_semantics=("parallel", "arbitrary")),
    )(x,
      packed['wih1'], packed['whh1'], packed['b1'],
      packed['wih2'], packed['whh2'], packed['b2'],
      packed['wfc'], packed['bfc'], packed['wout'], packed['bout'])

    return out_padded[:B, :num_classes]


# ----------------------------- reference -------------------------------------


def reference_forward(text_input, params):
    """Pure-JAX f32 reference matching the PyTorch forward (eval mode)."""
    emb = params['embedding'][text_input]
    B, T, _ = emb.shape
    H = params['whh1'].shape[0]

    def cell(xt, h, c, wih, whh, b):
        gates = xt @ wih + h @ whh + b
        i = jax.nn.sigmoid(gates[:, :H])
        f = jax.nn.sigmoid(gates[:, H:2 * H])
        g = jnp.tanh(gates[:, 2 * H:3 * H])
        o = jax.nn.sigmoid(gates[:, 3 * H:])
        c = f * c + i * g
        return o * jnp.tanh(c), c

    h1 = c1 = h2 = c2 = jnp.zeros((B, H), jnp.float32)
    for t in range(T):
        h1, c1 = cell(emb[:, t, :], h1, c1, params['wih1'], params['whh1'], params['b1'])
        h2, c2 = cell(h1, h2, c2, params['wih2'], params['whh2'], params['b2'])
    fused = jnp.maximum(h2 @ params['wfc'] + params['bfc'], 0.0)
    return fused @ params['wout'] + params['bout']


# ----------------------------- main -------------------------------------------


if __name__ == "__main__":
    VOCAB, HIDDEN, NUM_CLASSES = 100, 32, 4
    B, T = 2, 8

    key = jax.random.PRNGKey(0)
    k_params, k_text, k_img = jax.random.split(key, 3)

    params = init_params(k_params, VOCAB, HIDDEN, NUM_CLASSES)
    packed = pack_params(params)

    text_input = jax.random.randint(k_text, (B, T), 0, VOCAB, dtype=jnp.int32)
    image_input = jax.random.normal(k_img, (B, 16), jnp.float32)  # unused by forward

    out = sentiment_forward(text_input, image_input, params['embedding'], packed,
                            num_classes=NUM_CLASSES)
    out = jax.block_until_ready(out)

    ref = reference_forward(text_input, params)
    assert out.shape == (B, NUM_CLASSES)
    # bf16 MXU inputs (f32 accumulation) -> compare with a relaxed tolerance.
    assert jnp.allclose(out, ref, atol=2e-2, rtol=2e-2), "kernel mismatch vs reference"

    print("KERNEL_OK")
</pallas_src>

<mosaic_0001>
module attributes {stable_mosaic.version = 11 : i64} {
  func.func @sentiment_kernel(%arg0: i32, %arg1: i32, %arg2: memref<8x8x128xbf16, #tpu.memory_space<vmem>>, %arg3: memref<128x512xbf16, #tpu.memory_space<vmem>>, %arg4: memref<128x512xbf16, #tpu.memory_space<vmem>>, %arg5: memref<1x512xf32, #tpu.memory_space<vmem>>, %arg6: memref<128x512xbf16, #tpu.memory_space<vmem>>, %arg7: memref<128x512xbf16, #tpu.memory_space<vmem>>, %arg8: memref<1x512xf32, #tpu.memory_space<vmem>>, %arg9: memref<128x128xbf16, #tpu.memory_space<vmem>>, %arg10: memref<1x128xf32, #tpu.memory_space<vmem>>, %arg11: memref<128x128xbf16, #tpu.memory_space<vmem>>, %arg12: memref<1x128xf32, #tpu.memory_space<vmem>>, %arg13: memref<8x128xf32, #tpu.memory_space<vmem>>, %arg14: memref<8x128xf32, #tpu.memory_space<vmem>>, %arg15: memref<8x128xf32, #tpu.memory_space<vmem>>, %arg16: memref<8x128xf32, #tpu.memory_space<vmem>>, %arg17: memref<8x128xf32, #tpu.memory_space<vmem>>) attributes {dimension_semantics = [#tpu.dimension_semantics<parallel>, #tpu.dimension_semantics<arbitrary>], iteration_bounds = array<i64: 1, 1>, scalar_prefetch = 0 : i64, scratch_operands = 4 : i64, tpu.core_type = #tpu.core_type<tc>, window_params = [{transform_indices = @transform_0, window_bounds = array<i64: 8, 8, 128>}, {pipeline_mode = #tpu.pipeline_mode<synchronous>, transform_indices = @transform_1, window_bounds = array<i64: 128, 512>}, {pipeline_mode = #tpu.pipeline_mode<synchronous>, transform_indices = @transform_2, window_bounds = array<i64: 128, 512>}, {pipeline_mode = #tpu.pipeline_mode<synchronous>, transform_indices = @transform_3, window_bounds = array<i64: 1, 512>}, {pipeline_mode = #tpu.pipeline_mode<synchronous>, transform_indices = @transform_4, window_bounds = array<i64: 128, 512>}, {pipeline_mode = #tpu.pipeline_mode<synchronous>, transform_indices = @transform_5, window_bounds = array<i64: 128, 512>}, {pipeline_mode = #tpu.pipeline_mode<synchronous>, transform_indices = @transform_6, window_bounds = array<i64: 1, 512>}, {pipeline_mode = #tpu.pipeline_mode<synchronous>, transform_indices = @transform_7, window_bounds = array<i64: 128, 128>}, {pipeline_mode = #tpu.pipeline_mode<synchronous>, transform_indices = @transform_8, window_bounds = array<i64: 1, 128>}, {pipeline_mode = #tpu.pipeline_mode<synchronous>, transform_indices = @transform_9, window_bounds = array<i64: 128, 128>}, {pipeline_mode = #tpu.pipeline_mode<synchronous>, transform_indices = @transform_10, window_bounds = array<i64: 1, 128>}, {transform_indices = @transform_11, window_bounds = array<i64: 8, 128>}]} {
    %c0_i32 = arith.constant 0 : i32
    %0 = arith.cmpi eq, %arg1, %c0_i32 : i32
    %1 = arith.extui %0 : i1 to i32
    %c0_i32_0 = arith.constant 0 : i32
    %2 = arith.cmpi ne, %1, %c0_i32_0 : i32
    scf.if %2 {
      %cst_98 = arith.constant 0.000000e+00 : f32
      %501 = vector.broadcast %cst_98 : f32 to vector<8x128xf32>
      %c0_99 = arith.constant 0 : index
      %c0_100 = arith.constant 0 : index
      %502 = vector.load %arg14[%c0_99, %c0_100] : memref<8x128xf32, #tpu.memory_space<vmem>>, vector<8x128xf32>
      tpu.vector_store %arg14[%c0_99, %c0_100], %501 {strides = array<i32>} : memref<8x128xf32, #tpu.memory_space<vmem>>, vector<8x128xf32>,
      %c0_101 = arith.constant 0 : index
      %c0_102 = arith.constant 0 : index
      %503 = vector.load %arg15[%c0_101, %c0_102] : memref<8x128xf32, #tpu.memory_space<vmem>>, vector<8x128xf32>
      tpu.vector_store %arg15[%c0_101, %c0_102], %501 {strides = array<i32>} : memref<8x128xf32, #tpu.memory_space<vmem>>, vector<8x128xf32>,
      %c0_103 = arith.constant 0 : index
      %c0_104 = arith.constant 0 : index
      %504 = vector.load %arg16[%c0_103, %c0_104] : memref<8x128xf32, #tpu.memory_space<vmem>>, vector<8x128xf32>
      tpu.vector_store %arg16[%c0_103, %c0_104], %501 {strides = array<i32>} : memref<8x128xf32, #tpu.memory_space<vmem>>, vector<8x128xf32>,
      %c0_105 = arith.constant 0 : index
      %c0_106 = arith.constant 0 : index
      %505 = vector.load %arg17[%c0_105, %c0_106] : memref<8x128xf32, #tpu.memory_space<vmem>>, vector<8x128xf32>
      tpu.vector_store %arg17[%c0_105, %c0_106], %501 {strides = array<i32>} : memref<8x128xf32, #tpu.memory_space<vmem>>, vector<8x128xf32>,
    } else {
    }
    %c0 = arith.constant 0 : index
    %c0_1 = arith.constant 0 : index
    %c0_2 = arith.constant 0 : index
    %3 = vector.load %arg2[%c0, %c0_1, %c0_2] : memref<8x8x128xbf16, #tpu.memory_space<vmem>>, vector<8x8x128xbf16>
    %4 = vector.shape_cast %3 : vector<8x8x128xbf16> to vector<64x128xbf16>
    %c0_3 = arith.constant 0 : index
    %c0_4 = arith.constant 0 : index
    %5 = vector.load %arg3[%c0_3, %c0_4] : memref<128x512xbf16, #tpu.memory_space<vmem>>, vector<128x512xbf16>
    %cst = arith.constant dense<0.000000e+00> : vector<64x512xf32>
    %6 = tpu.matmul %4, %5, %cst {dimension_numbers = #tpu.dot_dimension_numbers<[1], [0], [0], [1], [0, 0, 1, 1], [], []>} : vector<64x128xbf16>, vector<128x512xbf16>, vector<64x512xf32> -> vector<64x512xf32>
    %c0_5 = arith.constant 0 : index
    %c0_6 = arith.constant 0 : index
    %7 = vector.load %arg5[%c0_5, %c0_6] : memref<1x512xf32, #tpu.memory_space<vmem>>, vector<1x512xf32>
    %8 = vector.broadcast %7 : vector<1x512xf32> to vector<64x512xf32>
    %9 = arith.addf %6, %8 : vector<64x512xf32>
    %c0_7 = arith.constant 0 : index
    %c0_8 = arith.constant 0 : index
    %10 = vector.load %arg4[%c0_7, %c0_8] : memref<128x512xbf16, #tpu.memory_space<vmem>>, vector<128x512xbf16>
    %c0_9 = arith.constant 0 : index
    %c0_10 = arith.constant 0 : index
    %11 = vector.load %arg14[%c0_9, %c0_10] : memref<8x128xf32, #tpu.memory_space<vmem>>, vector<8x128xf32>
    %c0_11 = arith.constant 0 : index
    %c0_12 = arith.constant 0 : index
    %12 = vector.load %arg15[%c0_11, %c0_12] : memref<8x128xf32, #tpu.memory_space<vmem>>, vector<8x128xf32>
    %13 = vector.extract_strided_slice %9 {offsets = [0, 0], sizes = [8, 512], strides = [1, 1]} : vector<64x512xf32> to vector<8x512xf32>
    %14 = arith.truncf %11 : vector<8x128xf32> to vector<8x128xbf16>
    %cst_13 = arith.constant dense<0.000000e+00> : vector<8x512xf32>
    %15 = tpu.matmul %14, %10, %cst_13 {dimension_numbers = #tpu.dot_dimension_numbers<[1], [0], [0], [1], [0, 0, 1, 1], [], []>} : vector<8x128xbf16>, vector<128x512xbf16>, vector<8x512xf32> -> vector<8x512xf32>
    %16 = arith.addf %13, %15 : vector<8x512xf32>
    %17 = vector.extract_strided_slice %16 {offsets = [0, 0], sizes = [8, 128], strides = [1, 1]} : vector<8x512xf32> to vector<8x128xf32>
    %18 = arith.negf %17 : vector<8x128xf32>
    %19 = math.exp %18 : vector<8x128xf32>
    %cst_14 = arith.constant 1.000000e+00 : f32
    %20 = vector.broadcast %cst_14 : f32 to vector<8x128xf32>
    %21 = arith.addf %20, %19 : vector<8x128xf32>
    %22 = arith.divf %20, %21 : vector<8x128xf32>
    %23 = vector.extract_strided_slice %16 {offsets = [0, 128], sizes = [8, 128], strides = [1, 1]} : vector<8x512xf32> to vector<8x128xf32>
    %24 = arith.negf %23 : vector<8x128xf32>
    %25 = math.exp %24 : vector<8x128xf32>
    %cst_15 = arith.constant 1.000000e+00 : f32
    %26 = vector.broadcast %cst_15 : f32 to vector<8x128xf32>
    %27 = arith.addf %26, %25 : vector<8x128xf32>
    %28 = arith.divf %26, %27 : vector<8x128xf32>
    %29 = vector.extract_strided_slice %16 {offsets = [0, 256], sizes = [8, 128], strides = [1, 1]} : vector<8x512xf32> to vector<8x128xf32>
    %30 = math.tanh %29 : vector<8x128xf32>
    %31 = vector.extract_strided_slice %16 {offsets = [0, 384], sizes = [8, 128], strides = [1, 1]} : vector<8x512xf32> to vector<8x128xf32>
    %32 = arith.negf %31 : vector<8x128xf32>
    %33 = math.exp %32 : vector<8x128xf32>
    %cst_16 = arith.constant 1.000000e+00 : f32
    %34 = vector.broadcast %cst_16 : f32 to vector<8x128xf32>
    %35 = arith.addf %34, %33 : vector<8x128xf32>
    %36 = arith.divf %34, %35 : vector<8x128xf32>
    %37 = arith.mulf %28, %12 : vector<8x128xf32>
    %38 = arith.mulf %22, %30 : vector<8x128xf32>
    %39 = arith.addf %37, %38 : vector<8x128xf32>
    %40 = math.tanh %39 : vector<8x128xf32>
    %41 = arith.mulf %36, %40 : vector<8x128xf32>
    %42 = arith.truncf %41 : vector<8x128xf32> to vector<8x128xbf16>
    %43 = vector.extract_strided_slice %9 {offsets = [8, 0], sizes = [8, 512], strides = [1, 1]} : vector<64x512xf32> to vector<8x512xf32>
    %44 = arith.truncf %41 : vector<8x128xf32> to vector<8x128xbf16>
    %cst_17 = arith.constant dense<0.000000e+00> : vector<8x512xf32>
    %45 = tpu.matmul %44, %10, %cst_17 {dimension_numbers = #tpu.dot_dimension_numbers<[1], [0], [0], [1], [0, 0, 1, 1], [], []>} : vector<8x128xbf16>, vector<128x512xbf16>, vector<8x512xf32> -> vector<8x512xf32>
    %46 = arith.addf %43, %45 : vector<8x512xf32>
    %47 = vector.extract_strided_slice %46 {offsets = [0, 0], sizes = [8, 128], strides = [1, 1]} : vector<8x512xf32> to vector<8x128xf32>
    %48 = arith.negf %47 : vector<8x128xf32>
    %49 = math.exp %48 : vector<8x128xf32>
    %cst_18 = arith.constant 1.000000e+00 : f32
    %50 = vector.broadcast %cst_18 : f32 to vector<8x128xf32>
    %51 = arith.addf %50, %49 : vector<8x128xf32>
    %52 = arith.divf %50, %51 : vector<8x128xf32>
    %53 = vector.extract_strided_slice %46 {offsets = [0, 128], sizes = [8, 128], strides = [1, 1]} : vector<8x512xf32> to vector<8x128xf32>
    %54 = arith.negf %53 : vector<8x128xf32>
    %55 = math.exp %54 : vector<8x128xf32>
    %cst_19 = arith.constant 1.000000e+00 : f32
    %56 = vector.broadcast %cst_19 : f32 to vector<8x128xf32>
    %57 = arith.addf %56, %55 : vector<8x128xf32>
    %58 = arith.divf %56, %57 : vector<8x128xf32>
    %59 = vector.extract_strided_slice %46 {offsets = [0, 256], sizes = [8, 128], strides = [1, 1]} : vector<8x512xf32> to vector<8x128xf32>
    %60 = math.tanh %59 : vector<8x128xf32>
    %61 = vector.extract_strided_slice %46 {offsets = [0, 384], sizes = [8, 128], strides = [1, 1]} : vector<8x512xf32> to vector<8x128xf32>
    %62 = arith.negf %61 : vector<8x128xf32>
    %63 = math.exp %62 : vector<8x128xf32>
    %cst_20 = arith.constant 1.000000e+00 : f32
    %64 = vector.broadcast %cst_20 : f32 to vector<8x128xf32>
    %65 = arith.addf %64, %63 : vector<8x128xf32>
    %66 = arith.divf %64, %65 : vector<8x128xf32>
    %67 = arith.mulf %58, %39 : vector<8x128xf32>
    %68 = arith.mulf %52, %60 : vector<8x128xf32>
    %69 = arith.addf %67, %68 : vector<8x128xf32>
    %70 = math.tanh %69 : vector<8x128xf32>
    %71 = arith.mulf %66, %70 : vector<8x128xf32>
    %72 = arith.truncf %71 : vector<8x128xf32> to vector<8x128xbf16>
    %73 = vector.extract_strided_slice %9 {offsets = [16, 0], sizes = [8, 512], strides = [1, 1]} : vector<64x512xf32> to vector<8x512xf32>
    %74 = arith.truncf %71 : vector<8x128xf32> to vector<8x128xbf16>
    %cst_21 = arith.constant dense<0.000000e+00> : vector<8x512xf32>
    %75 = tpu.matmul %74, %10, %cst_21 {dimension_numbers = #tpu.dot_dimension_numbers<[1], [0], [0], [1], [0, 0, 1, 1], [], []>} : vector<8x128xbf16>, vector<128x512xbf16>, vector<8x512xf32> -> vector<8x512xf32>
    %76 = arith.addf %73, %75 : vector<8x512xf32>
    %77 = vector.extract_strided_slice %76 {offsets = [0, 0], sizes = [8, 128], strides = [1, 1]} : vector<8x512xf32> to vector<8x128xf32>
    %78 = arith.negf %77 : vector<8x128xf32>
    %79 = math.exp %78 : vector<8x128xf32>
    %cst_22 = arith.constant 1.000000e+00 : f32
    %80 = vector.broadcast %cst_22 : f32 to vector<8x128xf32>
    %81 = arith.addf %80, %79 : vector<8x128xf32>
    %82 = arith.divf %80, %81 : vector<8x128xf32>
    %83 = vector.extract_strided_slice %76 {offsets = [0, 128], sizes = [8, 128], strides = [1, 1]} : vector<8x512xf32> to vector<8x128xf32>
    %84 = arith.negf %83 : vector<8x128xf32>
    %85 = math.exp %84 : vector<8x128xf32>
    %cst_23 = arith.constant 1.000000e+00 : f32
    %86 = vector.broadcast %cst_23 : f32 to vector<8x128xf32>
    %87 = arith.addf %86, %85 : vector<8x128xf32>
    %88 = arith.divf %86, %87 : vector<8x128xf32>
    %89 = vector.extract_strided_slice %76 {offsets = [0, 256], sizes = [8, 128], strides = [1, 1]} : vector<8x512xf32> to vector<8x128xf32>
    %90 = math.tanh %89 : vector<8x128xf32>
    %91 = vector.extract_strided_slice %76 {offsets = [0, 384], sizes = [8, 128], strides = [1, 1]} : vector<8x512xf32> to vector<8x128xf32>
    %92 = arith.negf %91 : vector<8x128xf32>
    %93 = math.exp %92 : vector<8x128xf32>
    %cst_24 = arith.constant 1.000000e+00 : f32
    %94 = vector.broadcast %cst_24 : f32 to vector<8x128xf32>
    %95 = arith.addf %94, %93 : vector<8x128xf32>
    %96 = arith.divf %94, %95 : vector<8x128xf32>
    %97 = arith.mulf %88, %69 : vector<8x128xf32>
    %98 = arith.mulf %82, %90 : vector<8x128xf32>
    %99 = arith.addf %97, %98 : vector<8x128xf32>
    %100 = math.tanh %99 : vector<8x128xf32>
    %101 = arith.mulf %96, %100 : vector<8x128xf32>
    %102 = arith.truncf %101 : vector<8x128xf32> to vector<8x128xbf16>
    %103 = vector.extract_strided_slice %9 {offsets = [24, 0], sizes = [8, 512], strides = [1, 1]} : vector<64x512xf32> to vector<8x512xf32>
    %104 = arith.truncf %101 : vector<8x128xf32> to vector<8x128xbf16>
    %cst_25 = arith.constant dense<0.000000e+00> : vector<8x512xf32>
    %105 = tpu.matmul %104, %10, %cst_25 {dimension_numbers = #tpu.dot_dimension_numbers<[1], [0], [0], [1], [0, 0, 1, 1], [], []>} : vector<8x128xbf16>, vector<128x512xbf16>, vector<8x512xf32> -> vector<8x512xf32>
    %106 = arith.addf %103, %105 : vector<8x512xf32>
    %107 = vector.extract_strided_slice %106 {offsets = [0, 0], sizes = [8, 128], strides = [1, 1]} : vector<8x512xf32> to vector<8x128xf32>
    %108 = arith.negf %107 : vector<8x128xf32>
    %109 = math.exp %108 : vector<8x128xf32>
    %cst_26 = arith.constant 1.000000e+00 : f32
    %110 = vector.broadcast %cst_26 : f32 to vector<8x128xf32>
    %111 = arith.addf %110, %109 : vector<8x128xf32>
    %112 = arith.divf %110, %111 : vector<8x128xf32>
    %113 = vector.extract_strided_slice %106 {offsets = [0, 128], sizes = [8, 128], strides = [1, 1]} : vector<8x512xf32> to vector<8x128xf32>
    %114 = arith.negf %113 : vector<8x128xf32>
    %115 = math.exp %114 : vector<8x128xf32>
    %cst_27 = arith.constant 1.000000e+00 : f32
    %116 = vector.broadcast %cst_27 : f32 to vector<8x128xf32>
    %117 = arith.addf %116, %115 : vector<8x128xf32>
    %118 = arith.divf %116, %117 : vector<8x128xf32>
    %119 = vector.extract_strided_slice %106 {offsets = [0, 256], sizes = [8, 128], strides = [1, 1]} : vector<8x512xf32> to vector<8x128xf32>
    %120 = math.tanh %119 : vector<8x128xf32>
    %121 = vector.extract_strided_slice %106 {offsets = [0, 384], sizes = [8, 128], strides = [1, 1]} : vector<8x512xf32> to vector<8x128xf32>
    %122 = arith.negf %121 : vector<8x128xf32>
    %123 = math.exp %122 : vector<8x128xf32>
    %cst_28 = arith.constant 1.000000e+00 : f32
    %124 = vector.broadcast %cst_28 : f32 to vector<8x128xf32>
    %125 = arith.addf %124, %123 : vector<8x128xf32>
    %126 = arith.divf %124, %125 : vector<8x128xf32>
    %127 = arith.mulf %118, %99 : vector<8x128xf32>
    %128 = arith.mulf %112, %120 : vector<8x128xf32>
    %129 = arith.addf %127, %128 : vector<8x128xf32>
    %130 = math.tanh %129 : vector<8x128xf32>
    %131 = arith.mulf %126, %130 : vector<8x128xf32>
    %132 = arith.truncf %131 : vector<8x128xf32> to vector<8x128xbf16>
    %133 = vector.extract_strided_slice %9 {offsets = [32, 0], sizes = [8, 512], strides = [1, 1]} : vector<64x512xf32> to vector<8x512xf32>
    %134 = arith.truncf %131 : vector<8x128xf32> to vector<8x128xbf16>
    %cst_29 = arith.constant dense<0.000000e+00> : vector<8x512xf32>
    %135 = tpu.matmul %134, %10, %cst_29 {dimension_numbers = #tpu.dot_dimension_numbers<[1], [0], [0], [1], [0, 0, 1, 1], [], []>} : vector<8x128xbf16>, vector<128x512xbf16>, vector<8x512xf32> -> vector<8x512xf32>
    %136 = arith.addf %133, %135 : vector<8x512xf32>
    %137 = vector.extract_strided_slice %136 {offsets = [0, 0], sizes = [8, 128], strides = [1, 1]} : vector<8x512xf32> to vector<8x128xf32>
    %138 = arith.negf %137 : vector<8x128xf32>
    %139 = math.exp %138 : vector<8x128xf32>
    %cst_30 = arith.constant 1.000000e+00 : f32
    %140 = vector.broadcast %cst_30 : f32 to vector<8x128xf32>
    %141 = arith.addf %140, %139 : vector<8x128xf32>
    %142 = arith.divf %140, %141 : vector<8x128xf32>
    %143 = vector.extract_strided_slice %136 {offsets = [0, 128], sizes = [8, 128], strides = [1, 1]} : vector<8x512xf32> to vector<8x128xf32>
    %144 = arith.negf %143 : vector<8x128xf32>
    %145 = math.exp %144 : vector<8x128xf32>
    %cst_31 = arith.constant 1.000000e+00 : f32
    %146 = vector.broadcast %cst_31 : f32 to vector<8x128xf32>
    %147 = arith.addf %146, %145 : vector<8x128xf32>
    %148 = arith.divf %146, %147 : vector<8x128xf32>
    %149 = vector.extract_strided_slice %136 {offsets = [0, 256], sizes = [8, 128], strides = [1, 1]} : vector<8x512xf32> to vector<8x128xf32>
    %150 = math.tanh %149 : vector<8x128xf32>
    %151 = vector.extract_strided_slice %136 {offsets = [0, 384], sizes = [8, 128], strides = [1, 1]} : vector<8x512xf32> to vector<8x128xf32>
    %152 = arith.negf %151 : vector<8x128xf32>
    %153 = math.exp %152 : vector<8x128xf32>
    %cst_32 = arith.constant 1.000000e+00 : f32
    %154 = vector.broadcast %cst_32 : f32 to vector<8x128xf32>
    %155 = arith.addf %154, %153 : vector<8x128xf32>
    %156 = arith.divf %154, %155 : vector<8x128xf32>
    %157 = arith.mulf %148, %129 : vector<8x128xf32>
    %158 = arith.mulf %142, %150 : vector<8x128xf32>
    %159 = arith.addf %157, %158 : vector<8x128xf32>
    %160 = math.tanh %159 : vector<8x128xf32>
    %161 = arith.mulf %156, %160 : vector<8x128xf32>
    %162 = arith.truncf %161 : vector<8x128xf32> to vector<8x128xbf16>
    %163 = vector.extract_strided_slice %9 {offsets = [40, 0], sizes = [8, 512], strides = [1, 1]} : vector<64x512xf32> to vector<8x512xf32>
    %164 = arith.truncf %161 : vector<8x128xf32> to vector<8x128xbf16>
    %cst_33 = arith.constant dense<0.000000e+00> : vector<8x512xf32>
    %165 = tpu.matmul %164, %10, %cst_33 {dimension_numbers = #tpu.dot_dimension_numbers<[1], [0], [0], [1], [0, 0, 1, 1], [], []>} : vector<8x128xbf16>, vector<128x512xbf16>, vector<8x512xf32> -> vector<8x512xf32>
    %166 = arith.addf %163, %165 : vector<8x512xf32>
    %167 = vector.extract_strided_slice %166 {offsets = [0, 0], sizes = [8, 128], strides = [1, 1]} : vector<8x512xf32> to vector<8x128xf32>
    %168 = arith.negf %167 : vector<8x128xf32>
    %169 = math.exp %168 : vector<8x128xf32>
    %cst_34 = arith.constant 1.000000e+00 : f32
    %170 = vector.broadcast %cst_34 : f32 to vector<8x128xf32>
    %171 = arith.addf %170, %169 : vector<8x128xf32>
    %172 = arith.divf %170, %171 : vector<8x128xf32>
    %173 = vector.extract_strided_slice %166 {offsets = [0, 128], sizes = [8, 128], strides = [1, 1]} : vector<8x512xf32> to vector<8x128xf32>
    %174 = arith.negf %173 : vector<8x128xf32>
    %175 = math.exp %174 : vector<8x128xf32>
    %cst_35 = arith.constant 1.000000e+00 : f32
    %176 = vector.broadcast %cst_35 : f32 to vector<8x128xf32>
    %177 = arith.addf %176, %175 : vector<8x128xf32>
    %178 = arith.divf %176, %177 : vector<8x128xf32>
    %179 = vector.extract_strided_slice %166 {offsets = [0, 256], sizes = [8, 128], strides = [1, 1]} : vector<8x512xf32> to vector<8x128xf32>
    %180 = math.tanh %179 : vector<8x128xf32>
    %181 = vector.extract_strided_slice %166 {offsets = [0, 384], sizes = [8, 128], strides = [1, 1]} : vector<8x512xf32> to vector<8x128xf32>
    %182 = arith.negf %181 : vector<8x128xf32>
    %183 = math.exp %182 : vector<8x128xf32>
    %cst_36 = arith.constant 1.000000e+00 : f32
    %184 = vector.broadcast %cst_36 : f32 to vector<8x128xf32>
    %185 = arith.addf %184, %183 : vector<8x128xf32>
    %186 = arith.divf %184, %185 : vector<8x128xf32>
    %187 = arith.mulf %178, %159 : vector<8x128xf32>
    %188 = arith.mulf %172, %180 : vector<8x128xf32>
    %189 = arith.addf %187, %188 : vector<8x128xf32>
    %190 = math.tanh %189 : vector<8x128xf32>
    %191 = arith.mulf %186, %190 : vector<8x128xf32>
    %192 = arith.truncf %191 : vector<8x128xf32> to vector<8x128xbf16>
    %193 = vector.extract_strided_slice %9 {offsets = [48, 0], sizes = [8, 512], strides = [1, 1]} : vector<64x512xf32> to vector<8x512xf32>
    %194 = arith.truncf %191 : vector<8x128xf32> to vector<8x128xbf16>
    %cst_37 = arith.constant dense<0.000000e+00> : vector<8x512xf32>
    %195 = tpu.matmul %194, %10, %cst_37 {dimension_numbers = #tpu.dot_dimension_numbers<[1], [0], [0], [1], [0, 0, 1, 1], [], []>} : vector<8x128xbf16>, vector<128x512xbf16>, vector<8x512xf32> -> vector<8x512xf32>
    %196 = arith.addf %193, %195 : vector<8x512xf32>
    %197 = vector.extract_strided_slice %196 {offsets = [0, 0], sizes = [8, 128], strides = [1, 1]} : vector<8x512xf32> to vector<8x128xf32>
    %198 = arith.negf %197 : vector<8x128xf32>
    %199 = math.exp %198 : vector<8x128xf32>
    %cst_38 = arith.constant 1.000000e+00 : f32
    %200 = vector.broadcast %cst_38 : f32 to vector<8x128xf32>
    %201 = arith.addf %200, %199 : vector<8x128xf32>
    %202 = arith.divf %200, %201 : vector<8x128xf32>
    %203 = vector.extract_strided_slice %196 {offsets = [0, 128], sizes = [8, 128], strides = [1, 1]} : vector<8x512xf32> to vector<8x128xf32>
    %204 = arith.negf %203 : vector<8x128xf32>
    %205 = math.exp %204 : vector<8x128xf32>
    %cst_39 = arith.constant 1.000000e+00 : f32
    %206 = vector.broadcast %cst_39 : f32 to vector<8x128xf32>
    %207 = arith.addf %206, %205 : vector<8x128xf32>
    %208 = arith.divf %206, %207 : vector<8x128xf32>
    %209 = vector.extract_strided_slice %196 {offsets = [0, 256], sizes = [8, 128], strides = [1, 1]} : vector<8x512xf32> to vector<8x128xf32>
    %210 = math.tanh %209 : vector<8x128xf32>
    %211 = vector.extract_strided_slice %196 {offsets = [0, 384], sizes = [8, 128], strides = [1, 1]} : vector<8x512xf32> to vector<8x128xf32>
    %212 = arith.negf %211 : vector<8x128xf32>
    %213 = math.exp %212 : vector<8x128xf32>
    %cst_40 = arith.constant 1.000000e+00 : f32
    %214 = vector.broadcast %cst_40 : f32 to vector<8x128xf32>
    %215 = arith.addf %214, %213 : vector<8x128xf32>
    %216 = arith.divf %214, %215 : vector<8x128xf32>
    %217 = arith.mulf %208, %189 : vector<8x128xf32>
    %218 = arith.mulf %202, %210 : vector<8x128xf32>
    %219 = arith.addf %217, %218 : vector<8x128xf32>
    %220 = math.tanh %219 : vector<8x128xf32>
    %221 = arith.mulf %216, %220 : vector<8x128xf32>
    %222 = arith.truncf %221 : vector<8x128xf32> to vector<8x128xbf16>
    %223 = vector.extract_strided_slice %9 {offsets = [56, 0], sizes = [8, 512], strides = [1, 1]} : vector<64x512xf32> to vector<8x512xf32>
    %224 = arith.truncf %221 : vector<8x128xf32> to vector<8x128xbf16>
    %cst_41 = arith.constant dense<0.000000e+00> : vector<8x512xf32>
    %225 = tpu.matmul %224, %10, %cst_41 {dimension_numbers = #tpu.dot_dimension_numbers<[1], [0], [0], [1], [0, 0, 1, 1], [], []>} : vector<8x128xbf16>, vector<128x512xbf16>, vector<8x512xf32> -> vector<8x512xf32>
    %226 = arith.addf %223, %225 : vector<8x512xf32>
    %227 = vector.extract_strided_slice %226 {offsets = [0, 0], sizes = [8, 128], strides = [1, 1]} : vector<8x512xf32> to vector<8x128xf32>
    %228 = arith.negf %227 : vector<8x128xf32>
    %229 = math.exp %228 : vector<8x128xf32>
    %cst_42 = arith.constant 1.000000e+00 : f32
    %230 = vector.broadcast %cst_42 : f32 to vector<8x128xf32>
    %231 = arith.addf %230, %229 : vector<8x128xf32>
    %232 = arith.divf %230, %231 : vector<8x128xf32>
    %233 = vector.extract_strided_slice %226 {offsets = [0, 128], sizes = [8, 128], strides = [1, 1]} : vector<8x512xf32> to vector<8x128xf32>
    %234 = arith.negf %233 : vector<8x128xf32>
    %235 = math.exp %234 : vector<8x128xf32>
    %cst_43 = arith.constant 1.000000e+00 : f32
    %236 = vector.broadcast %cst_43 : f32 to vector<8x128xf32>
    %237 = arith.addf %236, %235 : vector<8x128xf32>
    %238 = arith.divf %236, %237 : vector<8x128xf32>
    %239 = vector.extract_strided_slice %226 {offsets = [0, 256], sizes = [8, 128], strides = [1, 1]} : vector<8x512xf32> to vector<8x128xf32>
    %240 = math.tanh %239 : vector<8x128xf32>
    %241 = vector.extract_strided_slice %226 {offsets = [0, 384], sizes = [8, 128], strides = [1, 1]} : vector<8x512xf32> to vector<8x128xf32>
    %242 = arith.negf %241 : vector<8x128xf32>
    %243 = math.exp %242 : vector<8x128xf32>
    %cst_44 = arith.constant 1.000000e+00 : f32
    %244 = vector.broadcast %cst_44 : f32 to vector<8x128xf32>
    %245 = arith.addf %244, %243 : vector<8x128xf32>
    %246 = arith.divf %244, %245 : vector<8x128xf32>
    %247 = arith.mulf %238, %219 : vector<8x128xf32>
    %248 = arith.mulf %232, %240 : vector<8x128xf32>
    %249 = arith.addf %247, %248 : vector<8x128xf32>
    %250 = math.tanh %249 : vector<8x128xf32>
    %251 = arith.mulf %246, %250 : vector<8x128xf32>
    %252 = arith.truncf %251 : vector<8x128xf32> to vector<8x128xbf16>
    %c0_45 = arith.constant 0 : index
    %c0_46 = arith.constant 0 : index
    %253 = vector.load %arg14[%c0_45, %c0_46] : memref<8x128xf32, #tpu.memory_space<vmem>>, vector<8x128xf32>
    tpu.vector_store %arg14[%c0_45, %c0_46], %251 {strides = array<i32>} : memref<8x128xf32, #tpu.memory_space<vmem>>, vector<8x128xf32>,
    %c0_47 = arith.constant 0 : index
    %c0_48 = arith.constant 0 : index
    %254 = vector.load %arg15[%c0_47, %c0_48] : memref<8x128xf32, #tpu.memory_space<vmem>>, vector<8x128xf32>
    tpu.vector_store %arg15[%c0_47, %c0_48], %249 {strides = array<i32>} : memref<8x128xf32, #tpu.memory_space<vmem>>, vector<8x128xf32>,
    %255 = tpu.concatenate %42, %72, %102, %132, %162, %192, %222, %252 in 0 : vector<8x128xbf16>, vector<8x128xbf16>, vector<8x128xbf16>, vector<8x128xbf16>, vector<8x128xbf16>, vector<8x128xbf16>, vector<8x128xbf16>, vector<8x128xbf16> -> vector<64x128xbf16>
    %c0_49 = arith.constant 0 : index
    %c0_50 = arith.constant 0 : index
    %256 = vector.load %arg6[%c0_49, %c0_50] : memref<128x512xbf16, #tpu.memory_space<vmem>>, vector<128x512xbf16>
    %cst_51 = arith.constant dense<0.000000e+00> : vector<64x512xf32>
    %257 = tpu.matmul %255, %256, %cst_51 {dimension_numbers = #tpu.dot_dimension_numbers<[1], [0], [0], [1], [0, 0, 1, 1], [], []>} : vector<64x128xbf16>, vector<128x512xbf16>, vector<64x512xf32> -> vector<64x512xf32>
    %c0_52 = arith.constant 0 : index
    %c0_53 = arith.constant 0 : index
    %258 = vector.load %arg8[%c0_52, %c0_53] : memref<1x512xf32, #tpu.memory_space<vmem>>, vector<1x512xf32>
    %259 = vector.broadcast %258 : vector<1x512xf32> to vector<64x512xf32>
    %260 = arith.addf %257, %259 : vector<64x512xf32>
    %c0_54 = arith.constant 0 : index
    %c0_55 = arith.constant 0 : index
    %261 = vector.load %arg7[%c0_54, %c0_55] : memref<128x512xbf16, #tpu.memory_space<vmem>>, vector<128x512xbf16>
    %c0_56 = arith.constant 0 : index
    %c0_57 = arith.constant 0 : index
    %262 = vector.load %arg16[%c0_56, %c0_57] : memref<8x128xf32, #tpu.memory_space<vmem>>, vector<8x128xf32>
    %c0_58 = arith.constant 0 : index
    %c0_59 = arith.constant 0 : index
    %263 = vector.load %arg17[%c0_58, %c0_59] : memref<8x128xf32, #tpu.memory_space<vmem>>, vector<8x128xf32>
    %264 = vector.extract_strided_slice %260 {offsets = [0, 0], sizes = [8, 512], strides = [1, 1]} : vector<64x512xf32> to vector<8x512xf32>
    %265 = arith.truncf %262 : vector<8x128xf32> to vector<8x128xbf16>
    %cst_60 = arith.constant dense<0.000000e+00> : vector<8x512xf32>
    %266 = tpu.matmul %265, %261, %cst_60 {dimension_numbers = #tpu.dot_dimension_numbers<[1], [0], [0], [1], [0, 0, 1, 1], [], []>} : vector<8x128xbf16>, vector<128x512xbf16>, vector<8x512xf32> -> vector<8x512xf32>
    %267 = arith.addf %264, %266 : vector<8x512xf32>
    %268 = vector.extract_strided_slice %267 {offsets = [0, 0], sizes = [8, 128], strides = [1, 1]} : vector<8x512xf32> to vector<8x128xf32>
    %269 = arith.negf %268 : vector<8x128xf32>
    %270 = math.exp %269 : vector<8x128xf32>
    %cst_61 = arith.constant 1.000000e+00 : f32
    %271 = vector.broadcast %cst_61 : f32 to vector<8x128xf32>
    %272 = arith.addf %271, %270 : vector<8x128xf32>
    %273 = arith.divf %271, %272 : vector<8x128xf32>
    %274 = vector.extract_strided_slice %267 {offsets = [0, 128], sizes = [8, 128], strides = [1, 1]} : vector<8x512xf32> to vector<8x128xf32>
    %275 = arith.negf %274 : vector<8x128xf32>
    %276 = math.exp %275 : vector<8x128xf32>
    %cst_62 = arith.constant 1.000000e+00 : f32
    %277 = vector.broadcast %cst_62 : f32 to vector<8x128xf32>
    %278 = arith.addf %277, %276 : vector<8x128xf32>
    %279 = arith.divf %277, %278 : vector<8x128xf32>
    %280 = vector.extract_strided_slice %267 {offsets = [0, 256], sizes = [8, 128], strides = [1, 1]} : vector<8x512xf32> to vector<8x128xf32>
    %281 = math.tanh %280 : vector<8x128xf32>
    %282 = vector.extract_strided_slice %267 {offsets = [0, 384], sizes = [8, 128], strides = [1, 1]} : vector<8x512xf32> to vector<8x128xf32>
    %283 = arith.negf %282 : vector<8x128xf32>
    %284 = math.exp %283 : vector<8x128xf32>
    %cst_63 = arith.constant 1.000000e+00 : f32
    %285 = vector.broadcast %cst_63 : f32 to vector<8x128xf32>
    %286 = arith.addf %285, %284 : vector<8x128xf32>
    %287 = arith.divf %285, %286 : vector<8x128xf32>
    %288 = arith.mulf %279, %263 : vector<8x128xf32>
    %289 = arith.mulf %273, %281 : vector<8x128xf32>
    %290 = arith.addf %288, %289 : vector<8x128xf32>
    %291 = math.tanh %290 : vector<8x128xf32>
    %292 = arith.mulf %287, %291 : vector<8x128xf32>
    %293 = vector.extract_strided_slice %260 {offsets = [8, 0], sizes = [8, 512], strides = [1, 1]} : vector<64x512xf32> to vector<8x512xf32>
    %294 = arith.truncf %292 : vector<8x128xf32> to vector<8x128xbf16>
    %cst_64 = arith.constant dense<0.000000e+00> : vector<8x512xf32>
    %295 = tpu.matmul %294, %261, %cst_64 {dimension_numbers = #tpu.dot_dimension_numbers<[1], [0], [0], [1], [0, 0, 1, 1], [], []>} : vector<8x128xbf16>, vector<128x512xbf16>, vector<8x512xf32> -> vector<8x512xf32>
    %296 = arith.addf %293, %295 : vector<8x512xf32>
    %297 = vector.extract_strided_slice %296 {offsets = [0, 0], sizes = [8, 128], strides = [1, 1]} : vector<8x512xf32> to vector<8x128xf32>
    %298 = arith.negf %297 : vector<8x128xf32>
    %299 = math.exp %298 : vector<8x128xf32>
    %cst_65 = arith.constant 1.000000e+00 : f32
    %300 = vector.broadcast %cst_65 : f32 to vector<8x128xf32>
    %301 = arith.addf %300, %299 : vector<8x128xf32>
    %302 = arith.divf %300, %301 : vector<8x128xf32>
    %303 = vector.extract_strided_slice %296 {offsets = [0, 128], sizes = [8, 128], strides = [1, 1]} : vector<8x512xf32> to vector<8x128xf32>
    %304 = arith.negf %303 : vector<8x128xf32>
    %305 = math.exp %304 : vector<8x128xf32>
    %cst_66 = arith.constant 1.000000e+00 : f32
    %306 = vector.broadcast %cst_66 : f32 to vector<8x128xf32>
    %307 = arith.addf %306, %305 : vector<8x128xf32>
    %308 = arith.divf %306, %307 : vector<8x128xf32>
    %309 = vector.extract_strided_slice %296 {offsets = [0, 256], sizes = [8, 128], strides = [1, 1]} : vector<8x512xf32> to vector<8x128xf32>
    %310 = math.tanh %309 : vector<8x128xf32>
    %311 = vector.extract_strided_slice %296 {offsets = [0, 384], sizes = [8, 128], strides = [1, 1]} : vector<8x512xf32> to vector<8x128xf32>
    %312 = arith.negf %311 : vector<8x128xf32>
    %313 = math.exp %312 : vector<8x128xf32>
    %cst_67 = arith.constant 1.000000e+00 : f32
    %314 = vector.broadcast %cst_67 : f32 to vector<8x128xf32>
    %315 = arith.addf %314, %313 : vector<8x128xf32>
    %316 = arith.divf %314, %315 : vector<8x128xf32>
    %317 = arith.mulf %308, %290 : vector<8x128xf32>
    %318 = arith.mulf %302, %310 : vector<8x128xf32>
    %319 = arith.addf %317, %318 : vector<8x128xf32>
    %320 = math.tanh %319 : vector<8x128xf32>
    %321 = arith.mulf %316, %320 : vector<8x128xf32>
    %322 = vector.extract_strided_slice %260 {offsets = [16, 0], sizes = [8, 512], strides = [1, 1]} : vector<64x512xf32> to vector<8x512xf32>
    %323 = arith.truncf %321 : vector<8x128xf32> to vector<8x128xbf16>
    %cst_68 = arith.constant dense<0.000000e+00> : vector<8x512xf32>
    %324 = tpu.matmul %323, %261, %cst_68 {dimension_numbers = #tpu.dot_dimension_numbers<[1], [0], [0], [1], [0, 0, 1, 1], [], []>} : vector<8x128xbf16>, vector<128x512xbf16>, vector<8x512xf32> -> vector<8x512xf32>
    %325 = arith.addf %322, %324 : vector<8x512xf32>
    %326 = vector.extract_strided_slice %325 {offsets = [0, 0], sizes = [8, 128], strides = [1, 1]} : vector<8x512xf32> to vector<8x128xf32>
    %327 = arith.negf %326 : vector<8x128xf32>
    %328 = math.exp %327 : vector<8x128xf32>
    %cst_69 = arith.constant 1.000000e+00 : f32
    %329 = vector.broadcast %cst_69 : f32 to vector<8x128xf32>
    %330 = arith.addf %329, %328 : vector<8x128xf32>
    %331 = arith.divf %329, %330 : vector<8x128xf32>
    %332 = vector.extract_strided_slice %325 {offsets = [0, 128], sizes = [8, 128], strides = [1, 1]} : vector<8x512xf32> to vector<8x128xf32>
    %333 = arith.negf %332 : vector<8x128xf32>
    %334 = math.exp %333 : vector<8x128xf32>
    %cst_70 = arith.constant 1.000000e+00 : f32
    %335 = vector.broadcast %cst_70 : f32 to vector<8x128xf32>
    %336 = arith.addf %335, %334 : vector<8x128xf32>
    %337 = arith.divf %335, %336 : vector<8x128xf32>
    %338 = vector.extract_strided_slice %325 {offsets = [0, 256], sizes = [8, 128], strides = [1, 1]} : vector<8x512xf32> to vector<8x128xf32>
    %339 = math.tanh %338 : vector<8x128xf32>
    %340 = vector.extract_strided_slice %325 {offsets = [0, 384], sizes = [8, 128], strides = [1, 1]} : vector<8x512xf32> to vector<8x128xf32>
    %341 = arith.negf %340 : vector<8x128xf32>
    %342 = math.exp %341 : vector<8x128xf32>
    %cst_71 = arith.constant 1.000000e+00 : f32
    %343 = vector.broadcast %cst_71 : f32 to vector<8x128xf32>
    %344 = arith.addf %343, %342 : vector<8x128xf32>
    %345 = arith.divf %343, %344 : vector<8x128xf32>
    %346 = arith.mulf %337, %319 : vector<8x128xf32>
    %347 = arith.mulf %331, %339 : vector<8x128xf32>
    %348 = arith.addf %346, %347 : vector<8x128xf32>
    %349 = math.tanh %348 : vector<8x128xf32>
    %350 = arith.mulf %345, %349 : vector<8x128xf32>
    %351 = vector.extract_strided_slice %260 {offsets = [24, 0], sizes = [8, 512], strides = [1, 1]} : vector<64x512xf32> to vector<8x512xf32>
    %352 = arith.truncf %350 : vector<8x128xf32> to vector<8x128xbf16>
    %cst_72 = arith.constant dense<0.000000e+00> : vector<8x512xf32>
    %353 = tpu.matmul %352, %261, %cst_72 {dimension_numbers = #tpu.dot_dimension_numbers<[1], [0], [0], [1], [0, 0, 1, 1], [], []>} : vector<8x128xbf16>, vector<128x512xbf16>, vector<8x512xf32> -> vector<8x512xf32>
    %354 = arith.addf %351, %353 : vector<8x512xf32>
    %355 = vector.extract_strided_slice %354 {offsets = [0, 0], sizes = [8, 128], strides = [1, 1]} : vector<8x512xf32> to vector<8x128xf32>
    %356 = arith.negf %355 : vector<8x128xf32>
    %357 = math.exp %356 : vector<8x128xf32>
    %cst_73 = arith.constant 1.000000e+00 : f32
    %358 = vector.broadcast %cst_73 : f32 to vector<8x128xf32>
    %359 = arith.addf %358, %357 : vector<8x128xf32>
    %360 = arith.divf %358, %359 : vector<8x128xf32>
    %361 = vector.extract_strided_slice %354 {offsets = [0, 128], sizes = [8, 128], strides = [1, 1]} : vector<8x512xf32> to vector<8x128xf32>
    %362 = arith.negf %361 : vector<8x128xf32>
    %363 = math.exp %362 : vector<8x128xf32>
    %cst_74 = arith.constant 1.000000e+00 : f32
    %364 = vector.broadcast %cst_74 : f32 to vector<8x128xf32>
    %365 = arith.addf %364, %363 : vector<8x128xf32>
    %366 = arith.divf %364, %365 : vector<8x128xf32>
    %367 = vector.extract_strided_slice %354 {offsets = [0, 256], sizes = [8, 128], strides = [1, 1]} : vector<8x512xf32> to vector<8x128xf32>
    %368 = math.tanh %367 : vector<8x128xf32>
    %369 = vector.extract_strided_slice %354 {offsets = [0, 384], sizes = [8, 128], strides = [1, 1]} : vector<8x512xf32> to vector<8x128xf32>
    %370 = arith.negf %369 : vector<8x128xf32>
    %371 = math.exp %370 : vector<8x128xf32>
    %cst_75 = arith.constant 1.000000e+00 : f32
    %372 = vector.broadcast %cst_75 : f32 to vector<8x128xf32>
    %373 = arith.addf %372, %371 : vector<8x128xf32>
    %374 = arith.divf %372, %373 : vector<8x128xf32>
    %375 = arith.mulf %366, %348 : vector<8x128xf32>
    %376 = arith.mulf %360, %368 : vector<8x128xf32>
    %377 = arith.addf %375, %376 : vector<8x128xf32>
    %378 = math.tanh %377 : vector<8x128xf32>
    %379 = arith.mulf %374, %378 : vector<8x128xf32>
    %380 = vector.extract_strided_slice %260 {offsets = [32, 0], sizes = [8, 512], strides = [1, 1]} : vector<64x512xf32> to vector<8x512xf32>
    %381 = arith.truncf %379 : vector<8x128xf32> to vector<8x128xbf16>
    %cst_76 = arith.constant dense<0.000000e+00> : vector<8x512xf32>
    %382 = tpu.matmul %381, %261, %cst_76 {dimension_numbers = #tpu.dot_dimension_numbers<[1], [0], [0], [1], [0, 0, 1, 1], [], []>} : vector<8x128xbf16>, vector<128x512xbf16>, vector<8x512xf32> -> vector<8x512xf32>
    %383 = arith.addf %380, %382 : vector<8x512xf32>
    %384 = vector.extract_strided_slice %383 {offsets = [0, 0], sizes = [8, 128], strides = [1, 1]} : vector<8x512xf32> to vector<8x128xf32>
    %385 = arith.negf %384 : vector<8x128xf32>
    %386 = math.exp %385 : vector<8x128xf32>
    %cst_77 = arith.constant 1.000000e+00 : f32
    %387 = vector.broadcast %cst_77 : f32 to vector<8x128xf32>
    %388 = arith.addf %387, %386 : vector<8x128xf32>
    %389 = arith.divf %387, %388 : vector<8x128xf32>
    %390 = vector.extract_strided_slice %383 {offsets = [0, 128], sizes = [8, 128], strides = [1, 1]} : vector<8x512xf32> to vector<8x128xf32>
    %391 = arith.negf %390 : vector<8x128xf32>
    %392 = math.exp %391 : vector<8x128xf32>
    %cst_78 = arith.constant 1.000000e+00 : f32
    %393 = vector.broadcast %cst_78 : f32 to vector<8x128xf32>
    %394 = arith.addf %393, %392 : vector<8x128xf32>
    %395 = arith.divf %393, %394 : vector<8x128xf32>
    %396 = vector.extract_strided_slice %383 {offsets = [0, 256], sizes = [8, 128], strides = [1, 1]} : vector<8x512xf32> to vector<8x128xf32>
    %397 = math.tanh %396 : vector<8x128xf32>
    %398 = vector.extract_strided_slice %383 {offsets = [0, 384], sizes = [8, 128], strides = [1, 1]} : vector<8x512xf32> to vector<8x128xf32>
    %399 = arith.negf %398 : vector<8x128xf32>
    %400 = math.exp %399 : vector<8x128xf32>
    %cst_79 = arith.constant 1.000000e+00 : f32
    %401 = vector.broadcast %cst_79 : f32 to vector<8x128xf32>
    %402 = arith.addf %401, %400 : vector<8x128xf32>
    %403 = arith.divf %401, %402 : vector<8x128xf32>
    %404 = arith.mulf %395, %377 : vector<8x128xf32>
    %405 = arith.mulf %389, %397 : vector<8x128xf32>
    %406 = arith.addf %404, %405 : vector<8x128xf32>
    %407 = math.tanh %406 : vector<8x128xf32>
    %408 = arith.mulf %403, %407 : vector<8x128xf32>
    %409 = vector.extract_strided_slice %260 {offsets = [40, 0], sizes = [8, 512], strides = [1, 1]} : vector<64x512xf32> to vector<8x512xf32>
    %410 = arith.truncf %408 : vector<8x128xf32> to vector<8x128xbf16>
    %cst_80 = arith.constant dense<0.000000e+00> : vector<8x512xf32>
    %411 = tpu.matmul %410, %261, %cst_80 {dimension_numbers = #tpu.dot_dimension_numbers<[1], [0], [0], [1], [0, 0, 1, 1], [], []>} : vector<8x128xbf16>, vector<128x512xbf16>, vector<8x512xf32> -> vector<8x512xf32>
    %412 = arith.addf %409, %411 : vector<8x512xf32>
    %413 = vector.extract_strided_slice %412 {offsets = [0, 0], sizes = [8, 128], strides = [1, 1]} : vector<8x512xf32> to vector<8x128xf32>
    %414 = arith.negf %413 : vector<8x128xf32>
    %415 = math.exp %414 : vector<8x128xf32>
    %cst_81 = arith.constant 1.000000e+00 : f32
    %416 = vector.broadcast %cst_81 : f32 to vector<8x128xf32>
    %417 = arith.addf %416, %415 : vector<8x128xf32>
    %418 = arith.divf %416, %417 : vector<8x128xf32>
    %419 = vector.extract_strided_slice %412 {offsets = [0, 128], sizes = [8, 128], strides = [1, 1]} : vector<8x512xf32> to vector<8x128xf32>
    %420 = arith.negf %419 : vector<8x128xf32>
    %421 = math.exp %420 : vector<8x128xf32>
    %cst_82 = arith.constant 1.000000e+00 : f32
    %422 = vector.broadcast %cst_82 : f32 to vector<8x128xf32>
    %423 = arith.addf %422, %421 : vector<8x128xf32>
    %424 = arith.divf %422, %423 : vector<8x128xf32>
    %425 = vector.extract_strided_slice %412 {offsets = [0, 256], sizes = [8, 128], strides = [1, 1]} : vector<8x512xf32> to vector<8x128xf32>
    %426 = math.tanh %425 : vector<8x128xf32>
    %427 = vector.extract_strided_slice %412 {offsets = [0, 384], sizes = [8, 128], strides = [1, 1]} : vector<8x512xf32> to vector<8x128xf32>
    %428 = arith.negf %427 : vector<8x128xf32>
    %429 = math.exp %428 : vector<8x128xf32>
    %cst_83 = arith.constant 1.000000e+00 : f32
    %430 = vector.broadcast %cst_83 : f32 to vector<8x128xf32>
    %431 = arith.addf %430, %429 : vector<8x128xf32>
    %432 = arith.divf %430, %431 : vector<8x128xf32>
    %433 = arith.mulf %424, %406 : vector<8x128xf32>
    %434 = arith.mulf %418, %426 : vector<8x128xf32>
    %435 = arith.addf %433, %434 : vector<8x128xf32>
    %436 = math.tanh %435 : vector<8x128xf32>
    %437 = arith.mulf %432, %436 : vector<8x128xf32>
    %438 = vector.extract_strided_slice %260 {offsets = [48, 0], sizes = [8, 512], strides = [1, 1]} : vector<64x512xf32> to vector<8x512xf32>
    %439 = arith.truncf %437 : vector<8x128xf32> to vector<8x128xbf16>
    %cst_84 = arith.constant dense<0.000000e+00> : vector<8x512xf32>
    %440 = tpu.matmul %439, %261, %cst_84 {dimension_numbers = #tpu.dot_dimension_numbers<[1], [0], [0], [1], [0, 0, 1, 1], [], []>} : vector<8x128xbf16>, vector<128x512xbf16>, vector<8x512xf32> -> vector<8x512xf32>
    %441 = arith.addf %438, %440 : vector<8x512xf32>
    %442 = vector.extract_strided_slice %441 {offsets = [0, 0], sizes = [8, 128], strides = [1, 1]} : vector<8x512xf32> to vector<8x128xf32>
    %443 = arith.negf %442 : vector<8x128xf32>
    %444 = math.exp %443 : vector<8x128xf32>
    %cst_85 = arith.constant 1.000000e+00 : f32
    %445 = vector.broadcast %cst_85 : f32 to vector<8x128xf32>
    %446 = arith.addf %445, %444 : vector<8x128xf32>
    %447 = arith.divf %445, %446 : vector<8x128xf32>
    %448 = vector.extract_strided_slice %441 {offsets = [0, 128], sizes = [8, 128], strides = [1, 1]} : vector<8x512xf32> to vector<8x128xf32>
    %449 = arith.negf %448 : vector<8x128xf32>
    %450 = math.exp %449 : vector<8x128xf32>
    %cst_86 = arith.constant 1.000000e+00 : f32
    %451 = vector.broadcast %cst_86 : f32 to vector<8x128xf32>
    %452 = arith.addf %451, %450 : vector<8x128xf32>
    %453 = arith.divf %451, %452 : vector<8x128xf32>
    %454 = vector.extract_strided_slice %441 {offsets = [0, 256], sizes = [8, 128], strides = [1, 1]} : vector<8x512xf32> to vector<8x128xf32>
    %455 = math.tanh %454 : vector<8x128xf32>
    %456 = vector.extract_strided_slice %441 {offsets = [0, 384], sizes = [8, 128], strides = [1, 1]} : vector<8x512xf32> to vector<8x128xf32>
    %457 = arith.negf %456 : vector<8x128xf32>
    %458 = math.exp %457 : vector<8x128xf32>
    %cst_87 = arith.constant 1.000000e+00 : f32
    %459 = vector.broadcast %cst_87 : f32 to vector<8x128xf32>
    %460 = arith.addf %459, %458 : vector<8x128xf32>
    %461 = arith.divf %459, %460 : vector<8x128xf32>
    %462 = arith.mulf %453, %435 : vector<8x128xf32>
    %463 = arith.mulf %447, %455 : vector<8x128xf32>
    %464 = arith.addf %462, %463 : vector<8x128xf32>
    %465 = math.tanh %464 : vector<8x128xf32>
    %466 = arith.mulf %461, %465 : vector<8x128xf32>
    %467 = vector.extract_strided_slice %260 {offsets = [56, 0], sizes = [8, 512], strides = [1, 1]} : vector<64x512xf32> to vector<8x512xf32>
    %468 = arith.truncf %466 : vector<8x128xf32> to vector<8x128xbf16>
    %cst_88 = arith.constant dense<0.000000e+00> : vector<8x512xf32>
    %469 = tpu.matmul %468, %261, %cst_88 {dimension_numbers = #tpu.dot_dimension_numbers<[1], [0], [0], [1], [0, 0, 1, 1], [], []>} : vector<8x128xbf16>, vector<128x512xbf16>, vector<8x512xf32> -> vector<8x512xf32>
    %470 = arith.addf %467, %469 : vector<8x512xf32>
    %471 = vector.extract_strided_slice %470 {offsets = [0, 0], sizes = [8, 128], strides = [1, 1]} : vector<8x512xf32> to vector<8x128xf32>
    %472 = arith.negf %471 : vector<8x128xf32>
    %473 = math.exp %472 : vector<8x128xf32>
    %cst_89 = arith.constant 1.000000e+00 : f32
    %474 = vector.broadcast %cst_89 : f32 to vector<8x128xf32>
    %475 = arith.addf %474, %473 : vector<8x128xf32>
    %476 = arith.divf %474, %475 : vector<8x128xf32>
    %477 = vector.extract_strided_slice %470 {offsets = [0, 128], sizes = [8, 128], strides = [1, 1]} : vector<8x512xf32> to vector<8x128xf32>
    %478 = arith.negf %477 : vector<8x128xf32>
    %479 = math.exp %478 : vector<8x128xf32>
    %cst_90 = arith.constant 1.000000e+00 : f32
    %480 = vector.broadcast %cst_90 : f32 to vector<8x128xf32>
    %481 = arith.addf %480, %479 : vector<8x128xf32>
    %482 = arith.divf %480, %481 : vector<8x128xf32>
    %483 = vector.extract_strided_slice %470 {offsets = [0, 256], sizes = [8, 128], strides = [1, 1]} : vector<8x512xf32> to vector<8x128xf32>
    %484 = math.tanh %483 : vector<8x128xf32>
    %485 = vector.extract_strided_slice %470 {offsets = [0, 384], sizes = [8, 128], strides = [1, 1]} : vector<8x512xf32> to vector<8x128xf32>
    %486 = arith.negf %485 : vector<8x128xf32>
    %487 = math.exp %486 : vector<8x128xf32>
    %cst_91 = arith.constant 1.000000e+00 : f32
    %488 = vector.broadcast %cst_91 : f32 to vector<8x128xf32>
    %489 = arith.addf %488, %487 : vector<8x128xf32>
    %490 = arith.divf %488, %489 : vector<8x128xf32>
    %491 = arith.mulf %482, %464 : vector<8x128xf32>
    %492 = arith.mulf %476, %484 : vector<8x128xf32>
    %493 = arith.addf %491, %492 : vector<8x128xf32>
    %494 = math.tanh %493 : vector<8x128xf32>
    %495 = arith.mulf %490, %494 : vector<8x128xf32>
    %c0_92 = arith.constant 0 : index
    %c0_93 = arith.constant 0 : index
    %496 = vector.load %arg16[%c0_92, %c0_93] : memref<8x128xf32, #tpu.memory_space<vmem>>, vector<8x128xf32>
    tpu.vector_store %arg16[%c0_92, %c0_93], %495 {strides = array<i32>} : memref<8x128xf32, #tpu.memory_space<vmem>>, vector<8x128xf32>,
    %c0_94 = arith.constant 0 : index
    %c0_95 = arith.constant 0 : index
    %497 = vector.load %arg17[%c0_94, %c0_95] : memref<8x128xf32, #tpu.memory_space<vmem>>, vector<8x128xf32>
    tpu.vector_store %arg17[%c0_94, %c0_95], %493 {strides = array<i32>} : memref<8x128xf32, #tpu.memory_space<vmem>>, vector<8x128xf32>,
    %c0_i32_96 = arith.constant 0 : i32
    %498 = arith.cmpi eq, %arg1, %c0_i32_96 : i32
    %499 = arith.extui %498 : i1 to i32
    %c0_i32_97 = arith.constant 0 : i32
    %500 = arith.cmpi ne, %499, %c0_i32_97 : i32
    scf.if %500 {
      %501 = arith.truncf %495 : vector<8x128xf32> to vector<8x128xbf16>
      %c0_98 = arith.constant 0 : index
      %c0_99 = arith.constant 0 : index
      %502 = vector.load %arg9[%c0_98, %c0_99] : memref<128x128xbf16, #tpu.memory_space<vmem>>, vector<128x128xbf16>
      %cst_100 = arith.constant dense<0.000000e+00> : vector<8x128xf32>
      %503 = tpu.matmul %501, %502, %cst_100 {dimension_numbers = #tpu.dot_dimension_numbers<[1], [0], [0], [1], [0, 0, 1, 1], [], []>} : vector<8x128xbf16>, vector<128x128xbf16>, vector<8x128xf32> -> vector<8x128xf32>
      %c0_101 = arith.constant 0 : index
      %c0_102 = arith.constant 0 : index
      %504 = vector.load %arg10[%c0_101, %c0_102] : memref<1x128xf32, #tpu.memory_space<vmem>>, vector<1x128xf32>
      %505 = vector.broadcast %504 : vector<1x128xf32> to vector<8x128xf32>
      %506 = arith.addf %503, %505 : vector<8x128xf32>
      %cst_103 = arith.constant 0.000000e+00 : f32
      %507 = vector.broadcast %cst_103 : f32 to vector<8x128xf32>
      %508 = arith.maximumf %506, %507 : vector<8x128xf32>
      %509 = arith.truncf %508 : vector<8x128xf32> to vector<8x128xbf16>
      %c0_104 = arith.constant 0 : index
      %c0_105 = arith.constant 0 : index
      %510 = vector.load %arg11[%c0_104, %c0_105] : memref<128x128xbf16, #tpu.memory_space<vmem>>, vector<128x128xbf16>
      %cst_106 = arith.constant dense<0.000000e+00> : vector<8x128xf32>
      %511 = tpu.matmul %509, %510, %cst_106 {dimension_numbers = #tpu.dot_dimension_numbers<[1], [0], [0], [1], [0, 0, 1, 1], [], []>} : vector<8x128xbf16>, vector<128x128xbf16>, vector<8x128xf32> -> vector<8x128xf32>
      %c0_107 = arith.constant 0 : index
      %c0_108 = arith.constant 0 : index
      %512 = vector.load %arg12[%c0_107, %c0_108] : memref<1x128xf32, #tpu.memory_space<vmem>>, vector<1x128xf32>
      %513 = vector.broadcast %512 : vector<1x128xf32> to vector<8x128xf32>
      %514 = arith.addf %511, %513 : vector<8x128xf32>
      %c0_109 = arith.constant 0 : index
      %c0_110 = arith.constant 0 : index
      %515 = vector.load %arg13[%c0_109, %c0_110] : memref<8x128xf32, #tpu.memory_space<vmem>>, vector<8x128xf32>
      tpu.vector_store %arg13[%c0_109, %c0_110], %514 {strides = array<i32>} : memref<8x128xf32, #tpu.memory_space<vmem>>, vector<8x128xf32>,
    } else {
    }
    return
  }
  func.func @transform_0(%arg0: i32, %arg1: i32) -> (i32, i32, i32) {
    %c0_i32 = arith.constant 0 : i32
    %c0_i32_0 = arith.constant 0 : i32
    return %arg1, %arg0, %c0_i32 : i32, i32, i32
  }
  func.func @transform_1(%arg0: i32, %arg1: i32) -> (i32, i32) {
    %c0_i32 = arith.constant 0 : i32
    %c0_i32_0 = arith.constant 0 : i32
    %c0_i32_1 = arith.constant 0 : i32
    return %c0_i32, %c0_i32_0 : i32, i32
  }
  func.func @transform_2(%arg0: i32, %arg1: i32) -> (i32, i32) {
    %c0_i32 = arith.constant 0 : i32
    %c0_i32_0 = arith.constant 0 : i32
    %c0_i32_1 = arith.constant 0 : i32
    return %c0_i32, %c0_i32_0 : i32, i32
  }
  func.func @transform_3(%arg0: i32, %arg1: i32) -> (i32, i32) {
    %c0_i32 = arith.constant 0 : i32
    %c0_i32_0 = arith.constant 0 : i32
    %c0_i32_1 = arith.constant 0 : i32
    return %c0_i32, %c0_i32_0 : i32, i32
  }
  func.func @transform_4(%arg0: i32, %arg1: i32) -> (i32, i32) {
    %c0_i32 = arith.constant 0 : i32
    %c0_i32_0 = arith.constant 0 : i32
    %c0_i32_1 = arith.constant 0 : i32
    return %c0_i32, %c0_i32_0 : i32, i32
  }
  func.func @transform_5(%arg0: i32, %arg1: i32) -> (i32, i32) {
    %c0_i32 = arith.constant 0 : i32
    %c0_i32_0 = arith.constant 0 : i32
    %c0_i32_1 = arith.constant 0 : i32
    return %c0_i32, %c0_i32_0 : i32, i32
  }
  func.func @transform_6(%arg0: i32, %arg1: i32) -> (i32, i32) {
    %c0_i32 = arith.constant 0 : i32
    %c0_i32_0 = arith.constant 0 : i32
    %c0_i32_1 = arith.constant 0 : i32
    return %c0_i32, %c0_i32_0 : i32, i32
  }
  func.func @transform_7(%arg0: i32, %arg1: i32) -> (i32, i32) {
    %c0_i32 = arith.constant 0 : i32
    %c0_i32_0 = arith.constant 0 : i32
    %c0_i32_1 = arith.constant 0 : i32
    return %c0_i32, %c0_i32_0 : i32, i32
  }
  func.func @transform_8(%arg0: i32, %arg1: i32) -> (i32, i32) {
    %c0_i32 = arith.constant 0 : i32
    %c0_i32_0 = arith.constant 0 : i32
    %c0_i32_1 = arith.constant 0 : i32
    return %c0_i32, %c0_i32_0 : i32, i32
  }
  func.func @transform_9(%arg0: i32, %arg1: i32) -> (i32, i32) {
    %c0_i32 = arith.constant 0 : i32
    %c0_i32_0 = arith.constant 0 : i32
    %c0_i32_1 = arith.constant 0 : i32
    return %c0_i32, %c0_i32_0 : i32, i32
  }
  func.func @transform_10(%arg0: i32, %arg1: i32) -> (i32, i32) {
    %c0_i32 = arith.constant 0 : i32
    %c0_i32_0 = arith.constant 0 : i32
    %c0_i32_1 = arith.constant 0 : i32
    return %c0_i32, %c0_i32_0 : i32, i32
  }
  func.func @transform_11(%arg0: i32, %arg1: i32) -> (i32, i32) {
    %c0_i32 = arith.constant 0 : i32
    %c0_i32_0 = arith.constant 0 : i32
    return %arg0, %c0_i32 : i32, i32
  }
}

</mosaic_0001>

<llo_original>
// kernel: sentiment_forward.1
$region0: #{sentiment_forward.1}
  #allocation0 [shape = 'u32[]', space=smem, size = 0x4, offset = 0x4, fixed_abs, tag = 'smem constant byte address 0x4 - core index']
  #allocation1 [shape = 'u32[144,128]{1,0:T(1,128)}', space=vmem, size = 0x12000, scoped, tag = 'internal scratch']
  #allocation2 [shape = 'f32[8,128]{1,0:T(8,128)}', space=vmem, size = 0x1000, scoped, tag = 'scratch operand']
  #allocation3 [shape = 'f32[8,128]{1,0:T(8,128)}', space=vmem, size = 0x1000, scoped, tag = 'scratch operand']
  #allocation4 [shape = 'f32[8,128]{1,0:T(8,128)}', space=vmem, size = 0x1000, scoped, tag = 'scratch operand']
  #allocation5 [shape = 'f32[8,128]{1,0:T(8,128)}', space=vmem, size = 0x1000, scoped, tag = 'scratch operand']
  %s0 = inlined_call_operand.vmem [shape: bf16[8,8,128], index: 0, kind: input, shape index: {}]
  %s1 = inlined_call_operand.hbm [shape: bf16[128,512], index: 1, kind: input, shape index: {}]
  %s2 = inlined_call_operand.hbm [shape: bf16[128,512], index: 2, kind: input, shape index: {}]
  %s3 = inlined_call_operand.vmem [shape: f32[1,512], index: 3, kind: input, shape index: {}]
  %s4 = inlined_call_operand.hbm [shape: bf16[128,512], index: 4, kind: input, shape index: {}]
  %s5 = inlined_call_operand.hbm [shape: bf16[128,512], index: 5, kind: input, shape index: {}]
  %s6 = inlined_call_operand.vmem [shape: f32[1,512], index: 6, kind: input, shape index: {}]
  %s7 = inlined_call_operand.vmem [shape: bf16[128,128], index: 7, kind: input, shape index: {}]
  %s8 = inlined_call_operand.vmem [shape: f32[1,128], index: 8, kind: input, shape index: {}]
  %s9 = inlined_call_operand.vmem [shape: bf16[128,128], index: 9, kind: input, shape index: {}]
  %s10 = inlined_call_operand.vmem [shape: f32[1,128], index: 10, kind: input, shape index: {}]
  %s11 = inlined_call_operand.vmem [shape: f32[8,128], index: 11, kind: output, shape index: {}]
  %s12 = sld [smem:[#allocation0]]
  $region78: #{sentiment_forward.1} parent=0
    _
  %s14 = ssub.s32 1, %s12
  %s15 = scalar_select 0, %s14, %s12
  $region1: #{sentiment_forward.1} parent=0
    #allocation6 [shape = 'u8[131072]{0}', space=vmem, size = 0x20000, scoped, tag = 'input window, operand 1, single buffered']
    #allocation7 [shape = 's32[1]{0}', space=sflag, size = 0x4, scoped, tag = 'scoped memory for sentiment_forward.1']
    #allocation8 [shape = 'u8[131072]{0}', space=vmem, size = 0x20000, scoped, tag = 'input window, operand 2, single buffered']
    #allocation9 [shape = 's32[1]{0}', space=sflag, size = 0x4, scoped, tag = 'scoped memory for sentiment_forward.1']
    #allocation10 [shape = 'u8[131072]{0}', space=vmem, size = 0x20000, scoped, tag = 'input window, operand 4, single buffered']
    #allocation11 [shape = 'u8[131072]{0}', space=vmem, size = 0x20000, scoped, tag = 'input window, operand 5, single buffered']
    #allocation12 [shape = 's32[1]{0}', space=sflag, size = 0x4, scoped, tag = 'scoped memory for sentiment_forward.1']
    %16 = vsyncpa [#allocation7], 0
    %17 = vsyncpa [#allocation9], 0
    %18 = vsyncpa [#allocation12], 0
    // Predicated region
    $region2: #{sentiment_forward.1} parent=1 // pred_check
      _
    $region3: #{sentiment_forward.1} parent=1 // pred_check_branch
      %20 = sbr.rel (0) target = $region5
    $region4: #{sentiment_forward.1} parent=1 // pred_region
      _
    $region5: #{sentiment_forward.1} parent=1 // pred_fallthru
      _
    // Predicated region
    $region6: #{sentiment_forward.1} parent=1 // pred_check
      _
    $region7: #{sentiment_forward.1} parent=1 // pred_check_branch
      %22 = sbr.rel (0) target = $region9
    $region8: #{sentiment_forward.1} parent=1 // pred_region
      %s24 = ssub.s32 4096, 4096
      %25 = vsyncadd [#allocation7], %s24
      %s26 = sshll.u32 [#allocation6], 4
      %s27 = int_to_ptr.vmem [resolvable:$true] %s26
      %32 = dma.hbm_to_vmem [thread:$0]  %s1, 4096, %s27, [#allocation7], 256, 256, 16
    $region9: #{sentiment_forward.1} parent=1 // pred_fallthru
      _
    // Predicated region
    $region10: #{sentiment_forward.1} parent=1 // pred_check
      _
    $region11: #{sentiment_forward.1} parent=1 // pred_check_branch
      %34 = sbr.rel (0) target = $region13
    $region12: #{sentiment_forward.1} parent=1 // pred_region
      %s36 = ssub.s32 4096, 4096
      %37 = vsyncadd [#allocation9], %s36
      %s38 = sshll.u32 [#allocation8], 4
      %s39 = int_to_ptr.vmem [resolvable:$true] %s38
      %44 = dma.hbm_to_vmem [thread:$0]  %s2, 4096, %s39, [#allocation9], 256, 256, 16
    $region13: #{sentiment_forward.1} parent=1 // pred_fallthru
      _
    // Predicated region
    $region14: #{sentiment_forward.1} parent=1 // pred_check
      _
    $region15: #{sentiment_forward.1} parent=1 // pred_check_branch
      %46 = sbr.rel (0) target = $region17
    $region16: #{sentiment_forward.1} parent=1 // pred_region
      _
    $region17: #{sentiment_forward.1} parent=1 // pred_fallthru
      _
    // Predicated region
    $region18: #{sentiment_forward.1} parent=1 // pred_check
      _
    $region19: #{sentiment_forward.1} parent=1 // pred_check_branch
      %48 = sbr.rel (0) target = $region21
    $region20: #{sentiment_forward.1} parent=1 // pred_region
      %s50 = ssub.s32 4096, 4096
      %51 = vsyncadd [#allocation9], %s50
      %s52 = sshll.u32 [#allocation10], 4
      %s53 = int_to_ptr.vmem [resolvable:$true] %s52
      %58 = dma.hbm_to_vmem [thread:$0]  %s4, 4096, %s53, [#allocation9], 256, 256, 16
    $region21: #{sentiment_forward.1} parent=1 // pred_fallthru
      _
    // Predicated region
    $region22: #{sentiment_forward.1} parent=1 // pred_check
      _
    $region23: #{sentiment_forward.1} parent=1 // pred_check_branch
      %60 = sbr.rel (0) target = $region25
    $region24: #{sentiment_forward.1} parent=1 // pred_region
      %s62 = ssub.s32 4096, 4096
      %63 = vsyncadd [#allocation12], %s62
      %s64 = sshll.u32 [#allocation11], 4
      %s65 = int_to_ptr.vmem [resolvable:$true] %s64
      %70 = dma.hbm_to_vmem [thread:$0]  %s5, 4096, %s65, [#allocation12], 256, 256, 16
    $region25: #{sentiment_forward.1} parent=1 // pred_fallthru
      _
    // Predicated region
    $region26: #{sentiment_forward.1} parent=1 // pred_check
      _
    $region27: #{sentiment_forward.1} parent=1 // pred_check_branch
      %72 = sbr.rel (0) target = $region29
    $region28: #{sentiment_forward.1} parent=1 // pred_region
      _
    $region29: #{sentiment_forward.1} parent=1 // pred_fallthru
      _
    // Predicated region
    $region30: #{sentiment_forward.1} parent=1 // pred_check
      _
    $region31: #{sentiment_forward.1} parent=1 // pred_check_branch
      %74 = sbr.rel (0) target = $region33
    $region32: #{sentiment_forward.1} parent=1 // pred_region
      _
    $region33: #{sentiment_forward.1} parent=1 // pred_fallthru
      _
    // Predicated region
    $region34: #{sentiment_forward.1} parent=1 // pred_check
      _
    $region35: #{sentiment_forward.1} parent=1 // pred_check_branch
      %76 = sbr.rel (0) target = $region37
    $region36: #{sentiment_forward.1} parent=1 // pred_region
      _
    $region37: #{sentiment_forward.1} parent=1 // pred_fallthru
      _
    // Predicated region
    $region38: #{sentiment_forward.1} parent=1 // pred_check
      _
    $region39: #{sentiment_forward.1} parent=1 // pred_check_branch
      %78 = sbr.rel (0) target = $region41
    $region40: #{sentiment_forward.1} parent=1 // pred_region
      _
    $region41: #{sentiment_forward.1} parent=1 // pred_fallthru
      _
    // Predicated region
    $region42: #{sentiment_forward.1} parent=1 // pred_check
      _
    $region43: #{sentiment_forward.1} parent=1 // pred_check_branch
      %80 = sbr.rel (0) target = $region45
    $region44: #{sentiment_forward.1} parent=1 // pred_region
      _
    $region45: #{sentiment_forward.1} parent=1 // pred_fallthru
      _
    // Predicated region
    $region46: #{sentiment_forward.1} parent=1 // pred_check
      _
    $region47: #{sentiment_forward.1} parent=1 // pred_check_branch
      %82 = sbr.rel (0) target = $region49
    $region48: #{sentiment_forward.1} parent=1 // pred_region
      %83 = dma.done [#allocation7], 4096
    $region49: #{sentiment_forward.1} parent=1 // pred_fallthru
      _
    // Predicated region
    $region50: #{sentiment_forward.1} parent=1 // pred_check
      _
    $region51: #{sentiment_forward.1} parent=1 // pred_check_branch
      %85 = sbr.rel (0) target = $region53
    $region52: #{sentiment_forward.1} parent=1 // pred_region
      %86 = dma.done [#allocation9], 4096
    $region53: #{sentiment_forward.1} parent=1 // pred_fallthru
      _
    // Predicated region
    $region54: #{sentiment_forward.1} parent=1 // pred_check
      _
    $region55: #{sentiment_forward.1} parent=1 // pred_check_branch
      %88 = sbr.rel (0) target = $region57
    $region56: #{sentiment_forward.1} parent=1 // pred_region
      %89 = dma.done [#allocation9], 4096
    $region57: #{sentiment_forward.1} parent=1 // pred_fallthru
      _
    // Predicated region
    $region58: #{sentiment_forward.1} parent=1 // pred_check
      _
    $region59: #{sentiment_forward.1} parent=1 // pred_check_branch
      %91 = sbr.rel (0) target = $region61
    $region60: #{sentiment_forward.1} parent=1 // pred_region
      %92 = dma.done [#allocation12], 4096
    $region61: #{sentiment_forward.1} parent=1 // pred_fallthru
      _
    %p94 = scmp.eq.s32.totalorder 0, 0
    // Predicated region
    $region62: #{sentiment_forward.1} parent=1 // pred_check
      %p95 = pneg %p94
    $region63: #{sentiment_forward.1} parent=1 // pred_check_branch
      %97 = sbr.rel (%p95) target = $region65
    $region64: #{sentiment_forward.1} parent=1 // pred_region
      %98 = vst [vmem:[#allocation2] sm:$0xff] 0.0
      %99 = vst [vmem:[#allocation3] sm:$0xff] 0.0
      %100 = vst [vmem:[#allocation4] sm:$0xff] 0.0
      %101 = vst [vmem:[#allocation5] sm:$0xff] 0.0
    $region65: #{sentiment_forward.1} parent=1 // pred_fallthru
      _
    %v102 = vld [vmem:[%s0] sm:$0xf]
    %v103 = vld [vmem:[%s0 + $0x4] sm:$0xf]
    %v104 = vld [vmem:[%s0 + $0x8] sm:$0xf]
    %v105 = vld [vmem:[%s0 + $0xc] sm:$0xf]
    %v106 = vld [vmem:[%s0 + $0x10] sm:$0xf]
    %v107 = vld [vmem:[%s0 + $0x14] sm:$0xf]
    %v108 = vld [vmem:[%s0 + $0x18] sm:$0xf]
    %v109 = vld [vmem:[%s0 + $0x1c] sm:$0xf]
    %v110 = vld [vmem:[#allocation6] sm:$0xff]
    %v111 = vld [vmem:[#allocation6 + $0x8] sm:$0xff]
    %v112 = vld [vmem:[#allocation6 + $0x10] sm:$0xff]
    %v113 = vld [vmem:[#allocation6 + $0x18] sm:$0xff]
    %v114 = vld [vmem:[#allocation6 + $0x20] sm:$0xff]
    %v115 = vld [vmem:[#allocation6 + $0x28] sm:$0xff]
    %v116 = vld [vmem:[#allocation6 + $0x30] sm:$0xff]
    %v117 = vld [vmem:[#allocation6 + $0x38] sm:$0xff]
    %v118 = vld [vmem:[#allocation6 + $0x40] sm:$0xff]
    %v119 = vld [vmem:[#allocation6 + $0x48] sm:$0xff]
    %v120 = vld [vmem:[#allocation6 + $0x50] sm:$0xff]
    %v121 = vld [vmem:[#allocation6 + $0x58] sm:$0xff]
    %v122 = vld [vmem:[#allocation6 + $0x60] sm:$0xff]
    %v123 = vld [vmem:[#allocation6 + $0x68] sm:$0xff]
    %v124 = vld [vmem:[#allocation6 + $0x70] sm:$0xff]
    %v125 = vld [vmem:[#allocation6 + $0x78] sm:$0xff]
    %v126 = vld [vmem:[#allocation6 + $0x80] sm:$0xff]
    %v127 = vld [vmem:[#allocation6 + $0x88] sm:$0xff]
    %v128 = vld [vmem:[#allocation6 + $0x90] sm:$0xff]
    %v129 = vld [vmem:[#allocation6 + $0x98] sm:$0xff]
    %v130 = vld [vmem:[#allocation6 + $0xa0] sm:$0xff]
    %v131 = vld [vmem:[#allocation6 + $0xa8] sm:$0xff]
    %v132 = vld [vmem:[#allocation6 + $0xb0] sm:$0xff]
    %v133 = vld [vmem:[#allocation6 + $0xb8] sm:$0xff]
    %v134 = vld [vmem:[#allocation6 + $0xc0] sm:$0xff]
    %v135 = vld [vmem:[#allocation6 + $0xc8] sm:$0xff]
    %v136 = vld [vmem:[#allocation6 + $0xd0] sm:$0xff]
    %v137 = vld [vmem:[#allocation6 + $0xd8] sm:$0xff]
    %v138 = vld [vmem:[#allocation6 + $0xe0] sm:$0xff]
    %v139 = vld [vmem:[#allocation6 + $0xe8] sm:$0xff]
    %v140 = vld [vmem:[#allocation6 + $0xf0] sm:$0xff]
    %v141 = vld [vmem:[#allocation6 + $0xf8] sm:$0xff]
    %v142 = vld [vmem:[%s3] sm:$0xf]
    %v144 = vlaneseq
    %v145 = vshrl.u32 %v144, 7
    %v146 = vsub.s32 0, %v145
    %v147 = vrot.slane %v142, %v146
    %v148 = vlaneseq
    %v149 = vshrl.u32 %v148, 7
    %v150 = vsub.s32 1, %v149
    %v151 = vrot.slane %v142, %v150
    %v152 = vlaneseq
    %v153 = vshrl.u32 %v152, 7
    %v154 = vsub.s32 2, %v153
    %v155 = vrot.slane %v142, %v154
    %v156 = vlaneseq
    %v157 = vshrl.u32 %v156, 7
    %v158 = vsub.s32 3, %v157
    %v159 = vrot.slane %v142, %v158
    %v172 = vunpack.c.l.b16 %v102
    %v173 = vunpack.c.l.b16 %v103
    %v174 = vunpack.c.l.b16 %v104
    %v175 = vunpack.c.l.b16 %v105
    %v176 = vunpack.c.l.b16 %v106
    %v177 = vunpack.c.l.b16 %v107
    %v178 = vunpack.c.l.b16 %v108
    %v179 = vunpack.c.l.b16 %v109
    %v180 = vpack.c.b16 %v173, %v172
    %v181 = vpack.c.b16 %v175, %v174
    %v182 = vpack.c.b16 %v177, %v176
    %v183 = vpack.c.b16 %v179, %v178
    %v220 = vunpack.c.l.b16 %v110
    %v221 = vunpack.c.h.b16 %v110
    %v222 = vunpack.c.l.b16 %v111
    %v223 = vunpack.c.h.b16 %v111
    %v224 = vunpack.c.l.b16 %v112
    %v225 = vunpack.c.h.b16 %v112
    %v226 = vunpack.c.l.b16 %v113
    %v227 = vunpack.c.h.b16 %v113
    %v228 = vunpack.c.l.b16 %v114
    %v229 = vunpack.c.h.b16 %v114
    %v230 = vunpack.c.l.b16 %v115
    %v231 = vunpack.c.h.b16 %v115
    %v232 = vunpack.c.l.b16 %v116
    %v233 = vunpack.c.h.b16 %v116
    %v234 = vunpack.c.l.b16 %v117
    %v235 = vunpack.c.h.b16 %v117
    %v236 = vunpack.c.l.b16 %v118
    %v237 = vunpack.c.h.b16 %v118
    %v238 = vunpack.c.l.b16 %v119
    %v239 = vunpack.c.h.b16 %v119
    %v240 = vunpack.c.l.b16 %v120
    %v241 = vunpack.c.h.b16 %v120
    %v242 = vunpack.c.l.b16 %v121
    %v243 = vunpack.c.h.b16 %v121
    %v244 = vunpack.c.l.b16 %v122
    %v245 = vunpack.c.h.b16 %v122
    %v246 = vunpack.c.l.b16 %v123
    %v247 = vunpack.c.h.b16 %v123
    %v248 = vunpack.c.l.b16 %v124
    %v249 = vunpack.c.h.b16 %v124
    %v250 = vunpack.c.l.b16 %v125
    %v251 = vunpack.c.h.b16 %v125
    %v252 = vunpack.c.l.b16 %v126
    %v253 = vunpack.c.h.b16 %v126
    %v254 = vunpack.c.l.b16 %v127
    %v255 = vunpack.c.h.b16 %v127
    %v256 = vunpack.c.l.b16 %v128
    %v257 = vunpack.c.h.b16 %v128
    %v258 = vunpack.c.l.b16 %v129
    %v259 = vunpack.c.h.b16 %v129
    %v260 = vunpack.c.l.b16 %v130
    %v261 = vunpack.c.h.b16 %v130
    %v262 = vunpack.c.l.b16 %v131
    %v263 = vunpack.c.h.b16 %v131
    %v264 = vunpack.c.l.b16 %v132
    %v265 = vunpack.c.h.b16 %v132
    %v266 = vunpack.c.l.b16 %v133
    %v267 = vunpack.c.h.b16 %v133
    %v268 = vunpack.c.l.b16 %v134
    %v269 = vunpack.c.h.b16 %v134
    %v270 = vunpack.c.l.b16 %v135
    %v271 = vunpack.c.h.b16 %v135
    %v272 = vunpack.c.l.b16 %v136
    %v273 = vunpack.c.h.b16 %v136
    %v274 = vunpack.c.l.b16 %v137
    %v275 = vunpack.c.h.b16 %v137
    %v276 = vunpack.c.l.b16 %v138
    %v277 = vunpack.c.h.b16 %v138
    %v278 = vunpack.c.l.b16 %v139
    %v279 = vunpack.c.h.b16 %v139
    %v280 = vunpack.c.l.b16 %v140
    %v281 = vunpack.c.h.b16 %v140
    %v282 = vunpack.c.l.b16 %v141
    %v283 = vunpack.c.h.b16 %v141
    %v284 = vpack.c.b16 %v224, %v220
    %v285 = vpack.c.b16 %v225, %v221
    %v286 = vpack.c.b16 %v226, %v222
    %v287 = vpack.c.b16 %v227, %v223
    %v288 = vpack.c.b16 %v232, %v228
    %v289 = vpack.c.b16 %v233, %v229
    %v290 = vpack.c.b16 %v234, %v230
    %v291 = vpack.c.b16 %v235, %v231
    %v292 = vpack.c.b16 %v240, %v236
    %v293 = vpack.c.b16 %v241, %v237
    %v294 = vpack.c.b16 %v242, %v238
    %v295 = vpack.c.b16 %v243, %v239
    %v296 = vpack.c.b16 %v248, %v244
    %v297 = vpack.c.b16 %v249, %v245
    %v298 = vpack.c.b16 %v250, %v246
    %v299 = vpack.c.b16 %v251, %v247
    %v300 = vpack.c.b16 %v256, %v252
    %v301 = vpack.c.b16 %v257, %v253
    %v302 = vpack.c.b16 %v258, %v254
    %v303 = vpack.c.b16 %v259, %v255
    %v304 = vpack.c.b16 %v264, %v260
    %v305 = vpack.c.b16 %v265, %v261
    %v306 = vpack.c.b16 %v266, %v262
    %v307 = vpack.c.b16 %v267, %v263
    %v308 = vpack.c.b16 %v272, %v268
    %v309 = vpack.c.b16 %v273, %v269
    %v310 = vpack.c.b16 %v274, %v270
    %v311 = vpack.c.b16 %v275, %v271
    %v312 = vpack.c.b16 %v280, %v276
    %v313 = vpack.c.b16 %v281, %v277
    %v314 = vpack.c.b16 %v282, %v278
    %v315 = vpack.c.b16 %v283, %v279
    %348 = vmatprep.subr.bf16.mxu0 %v313
    %349 = vmatpush1.bf16.msra.mxu0 %v312
    %350 = vmatprep.subr.bf16.mxu0 %v309
    %351 = vmatpush1.bf16.msra.mxu0 %v308
    %352 = vmatprep.subr.bf16.mxu0 %v305
    %353 = vmatpush1.bf16.msra.mxu0 %v304
    %354 = vmatprep.subr.bf16.mxu0 %v301
    %355 = vmatpush1.bf16.msra.mxu0 %v300
    %356 = vmatprep.subr.bf16.mxu0 %v297
    %357 = vmatpush1.bf16.msra.mxu0 %v296
    %358 = vmatprep.subr.bf16.mxu0 %v293
    %359 = vmatpush1.bf16.msra.mxu0 %v292
    %360 = vmatprep.subr.bf16.mxu0 %v289
    %361 = vmatpush1.bf16.msra.mxu0 %v288
    %362 = vmatprep.subr.bf16.mxu0 %v285
    %363 = vmatpush1.bf16.msra.mxu0 %v284
    %364 = vmatprep.subr.bf16.mxu0 0
    %365 = vmatpush2.bf16.msra.mxu0 0
    %366 = vmatprep.subr.bf16.mxu0 0
    %367 = vmatpush2.bf16.msra.mxu0 0
    %368 = vmatprep.subr.bf16.mxu0 0
    %369 = vmatpush2.bf16.msra.mxu0 0
    %370 = vmatprep.subr.bf16.mxu0 0
    %371 = vmatpush2.bf16.msra.mxu0 0
    %372 = vmatprep.subr.bf16.mxu0 0
    %373 = vmatpush2.bf16.msra.mxu0 0
    %374 = vmatprep.subr.bf16.mxu0 0
    %375 = vmatpush2.bf16.msra.mxu0 0
    %376 = vmatprep.subr.bf16.mxu0 0
    %377 = vmatpush2.bf16.msra.mxu0 0
    %378 = vmatprep.subr.bf16.mxu0 0
    %379 = vmatpush2.bf16.msra.mxu0 0
    %380 = vmatprep.mubr.bf16.mxu0 0
    %381 = vmatmul.mubr.bf16.gmra.mxu0 %v180
    %v382 = vpop.f32.mrf.mxu0
    %v383 = vadd.f32 %v147, %v382
    %v384 = vpop.f32.mrf.mxu0
    %v385 = vadd.f32 %v151, %v384
    %v386 = vpop.f32.mrf.mxu0
    %v387 = vadd.f32 %v147, %v386
    %v388 = vpop.f32.mrf.mxu0
    %v389 = vadd.f32 %v151, %v388
    %390 = vmatprep.mubr.bf16.mxu0 0
    %391 = vmatmul.mubr.bf16.gmra.mxu0 %v181
    %v392 = vpop.f32.mrf.mxu0
    %v393 = vadd.f32 %v147, %v392
    %v394 = vpop.f32.mrf.mxu0
    %v395 = vadd.f32 %v151, %v394
    %v396 = vpop.f32.mrf.mxu0
    %v397 = vadd.f32 %v147, %v396
    %v398 = vpop.f32.mrf.mxu0
    %v399 = vadd.f32 %v151, %v398
    %400 = vmatprep.mubr.bf16.mxu0 0
    %401 = vmatmul.mubr.bf16.gmra.mxu0 %v182
    %v402 = vpop.f32.mrf.mxu0
    %v403 = vadd.f32 %v147, %v402
    %v404 = vpop.f32.mrf.mxu0
    %v405 = vadd.f32 %v151, %v404
    %v406 = vpop.f32.mrf.mxu0
    %v407 = vadd.f32 %v147, %v406
    %v408 = vpop.f32.mrf.mxu0
    %v409 = vadd.f32 %v151, %v408
    %410 = vmatprep.mubr.bf16.mxu0 0
    %411 = vmatmul.mubr.bf16.gmra.mxu0 %v183
    %v412 = vpop.f32.mrf.mxu0
    %v413 = vadd.f32 %v147, %v412
    %v414 = vpop.f32.mrf.mxu0
    %v415 = vadd.f32 %v151, %v414
    %v416 = vpop.f32.mrf.mxu0
    %v417 = vadd.f32 %v147, %v416
    %v418 = vpop.f32.mrf.mxu0
    %v419 = vadd.f32 %v151, %v418
    %420 = vdwg.mxu0
    %421 = vmatprep.subr.bf16.mxu0 %v315
    %422 = vmatpush1.bf16.msra.mxu0 %v314
    %423 = vmatprep.subr.bf16.mxu0 %v311
    %424 = vmatpush1.bf16.msra.mxu0 %v310
    %425 = vmatprep.subr.bf16.mxu0 %v307
    %426 = vmatpush1.bf16.msra.mxu0 %v306
    %427 = vmatprep.subr.bf16.mxu0 %v303
    %428 = vmatpush1.bf16.msra.mxu0 %v302
    %429 = vmatprep.subr.bf16.mxu0 %v299
    %430 = vmatpush1.bf16.msra.mxu0 %v298
    %431 = vmatprep.subr.bf16.mxu0 %v295
    %432 = vmatpush1.bf16.msra.mxu0 %v294
    %433 = vmatprep.subr.bf16.mxu0 %v291
    %434 = vmatpush1.bf16.msra.mxu0 %v290
    %435 = vmatprep.subr.bf16.mxu0 %v287
    %436 = vmatpush1.bf16.msra.mxu0 %v286
    %437 = vmatprep.subr.bf16.mxu0 0
    %438 = vmatpush2.bf16.msra.mxu0 0
    %439 = vmatprep.subr.bf16.mxu0 0
    %440 = vmatpush2.bf16.msra.mxu0 0
    %441 = vmatprep.subr.bf16.mxu0 0
    %442 = vmatpush2.bf16.msra.mxu0 0
    %443 = vmatprep.subr.bf16.mxu0 0
    %444 = vmatpush2.bf16.msra.mxu0 0
    %445 = vmatprep.subr.bf16.mxu0 0
    %446 = vmatpush2.bf16.msra.mxu0 0
    %447 = vmatprep.subr.bf16.mxu0 0
    %448 = vmatpush2.bf16.msra.mxu0 0
    %449 = vmatprep.subr.bf16.mxu0 0
    %450 = vmatpush2.bf16.msra.mxu0 0
    %451 = vmatprep.subr.bf16.mxu0 0
    %452 = vmatpush2.bf16.msra.mxu0 0
    %453 = vmatprep.mubr.bf16.mxu0 0
    %454 = vmatmul.mubr.bf16.gmra.mxu0 %v180
    %v455 = vpop.f32.mrf.mxu0
    %v456 = vadd.f32 %v155, %v455
    %v457 = vpop.f32.mrf.mxu0
    %v458 = vadd.f32 %v159, %v457
    %v459 = vpop.f32.mrf.mxu0
    %v460 = vadd.f32 %v155, %v459
    %v461 = vpop.f32.mrf.mxu0
    %v462 = vadd.f32 %v159, %v461
    %463 = vmatprep.mubr.bf16.mxu0 0
    %464 = vmatmul.mubr.bf16.gmra.mxu0 %v181
    %v465 = vpop.f32.mrf.mxu0
    %v466 = vadd.f32 %v155, %v465
    %v467 = vpop.f32.mrf.mxu0
    %v468 = vadd.f32 %v159, %v467
    %v469 = vpop.f32.mrf.mxu0
    %v470 = vadd.f32 %v155, %v469
    %v471 = vpop.f32.mrf.mxu0
    %v472 = vadd.f32 %v159, %v471
    %473 = vmatprep.mubr.bf16.mxu0 0
    %474 = vmatmul.mubr.bf16.gmra.mxu0 %v182
    %v475 = vpop.f32.mrf.mxu0
    %v476 = vadd.f32 %v155, %v475
    %v477 = vpop.f32.mrf.mxu0
    %v478 = vadd.f32 %v159, %v477
    %v479 = vpop.f32.mrf.mxu0
    %v480 = vadd.f32 %v155, %v479
    %v481 = vpop.f32.mrf.mxu0
    %v482 = vadd.f32 %v159, %v481
    %483 = vmatprep.mubr.bf16.mxu0 0
    %484 = vmatmul.mubr.bf16.gmra.mxu0 %v183
    %v485 = vpop.f32.mrf.mxu0
    %v486 = vadd.f32 %v155, %v485
    %v487 = vpop.f32.mrf.mxu0
    %v488 = vadd.f32 %v159, %v487
    %v489 = vpop.f32.mrf.mxu0
    %v490 = vadd.f32 %v155, %v489
    %v491 = vpop.f32.mrf.mxu0
    %v492 = vadd.f32 %v159, %v491
    %493 = vdwg.mxu0
    %v494 = vld [vmem:[#allocation8] sm:$0xff]
    %v495 = vld [vmem:[#allocation8 + $0x8] sm:$0xff]
    %v496 = vld [vmem:[#allocation8 + $0x10] sm:$0xff]
    %v497 = vld [vmem:[#allocation8 + $0x18] sm:$0xff]
    %v498 = vld [vmem:[#allocation8 + $0x20] sm:$0xff]
    %v499 = vld [vmem:[#allocation8 + $0x28] sm:$0xff]
    %v500 = vld [vmem:[#allocation8 + $0x30] sm:$0xff]
    %v501 = vld [vmem:[#allocation8 + $0x38] sm:$0xff]
    %v502 = vld [vmem:[#allocation8 + $0x40] sm:$0xff]
    %v503 = vld [vmem:[#allocation8 + $0x48] sm:$0xff]
    %v504 = vld [vmem:[#allocation8 + $0x50] sm:$0xff]
    %v505 = vld [vmem:[#allocation8 + $0x58] sm:$0xff]
    %v506 = vld [vmem:[#allocation8 + $0x60] sm:$0xff]
    %v507 = vld [vmem:[#allocation8 + $0x68] sm:$0xff]
    %v508 = vld [vmem:[#allocation8 + $0x70] sm:$0xff]
    %v509 = vld [vmem:[#allocation8 + $0x78] sm:$0xff]
    %v510 = vld [vmem:[#allocation8 + $0x80] sm:$0xff]
    %v511 = vld [vmem:[#allocation8 + $0x88] sm:$0xff]
    %v512 = vld [vmem:[#allocation8 + $0x90] sm:$0xff]
    %v513 = vld [vmem:[#allocation8 + $0x98] sm:$0xff]
    %v514 = vld [vmem:[#allocation8 + $0xa0] sm:$0xff]
    %v515 = vld [vmem:[#allocation8 + $0xa8] sm:$0xff]
    %v516 = vld [vmem:[#allocation8 + $0xb0] sm:$0xff]
    %v517 = vld [vmem:[#allocation8 + $0xb8] sm:$0xff]
    %v518 = vld [vmem:[#allocation8 + $0xc0] sm:$0xff]
    %v519 = vld [vmem:[#allocation8 + $0xc8] sm:$0xff]
    %v520 = vld [vmem:[#allocation8 + $0xd0] sm:$0xff]
    %v521 = vld [vmem:[#allocation8 + $0xd8] sm:$0xff]
    %v522 = vld [vmem:[#allocation8 + $0xe0] sm:$0xff]
    %v523 = vld [vmem:[#allocation8 + $0xe8] sm:$0xff]
    %v524 = vld [vmem:[#allocation8 + $0xf0] sm:$0xff]
    %v525 = vld [vmem:[#allocation8 + $0xf8] sm:$0xff]
    %v526 = vld [vmem:[#allocation2] sm:$0xff]
    %v527 = vld [vmem:[#allocation3] sm:$0xff]
    %v528 = vpack.c.bf16 %v526, %v526
    %v561 = vunpack.c.l.b16 %v494
    %v562 = vunpack.c.h.b16 %v494
    %v563 = vunpack.c.l.b16 %v495
    %v564 = vunpack.c.h.b16 %v495
    %v565 = vunpack.c.l.b16 %v496
    %v566 = vunpack.c.h.b16 %v496
    %v567 = vunpack.c.l.b16 %v497
    %v568 = vunpack.c.h.b16 %v497
    %v569 = vunpack.c.l.b16 %v498
    %v570 = vunpack.c.h.b16 %v498
    %v571 = vunpack.c.l.b16 %v499
    %v572 = vunpack.c.h.b16 %v499
    %v573 = vunpack.c.l.b16 %v500
    %v574 = vunpack.c.h.b16 %v500
    %v575 = vunpack.c.l.b16 %v501
    %v576 = vunpack.c.h.b16 %v501
    %v577 = vunpack.c.l.b16 %v502
    %v578 = vunpack.c.h.b16 %v502
    %v579 = vunpack.c.l.b16 %v503
    %v580 = vunpack.c.h.b16 %v503
    %v581 = vunpack.c.l.b16 %v504
    %v582 = vunpack.c.h.b16 %v504
    %v583 = vunpack.c.l.b16 %v505
    %v584 = vunpack.c.h.b16 %v505
    %v585 = vunpack.c.l.b16 %v506
    %v586 = vunpack.c.h.b16 %v506
    %v587 = vunpack.c.l.b16 %v507
    %v588 = vunpack.c.h.b16 %v507
    %v589 = vunpack.c.l.b16 %v508
    %v590 = vunpack.c.h.b16 %v508
    %v591 = vunpack.c.l.b16 %v509
    %v592 = vunpack.c.h.b16 %v509
    %v593 = vunpack.c.l.b16 %v510
    %v594 = vunpack.c.h.b16 %v510
    %v595 = vunpack.c.l.b16 %v511
    %v596 = vunpack.c.h.b16 %v511
    %v597 = vunpack.c.l.b16 %v512
    %v598 = vunpack.c.h.b16 %v512
    %v599 = vunpack.c.l.b16 %v513
    %v600 = vunpack.c.h.b16 %v513
    %v601 = vunpack.c.l.b16 %v514
    %v602 = vunpack.c.h.b16 %v514
    %v603 = vunpack.c.l.b16 %v515
    %v604 = vunpack.c.h.b16 %v515
    %v605 = vunpack.c.l.b16 %v516
    %v606 = vunpack.c.h.b16 %v516
    %v607 = vunpack.c.l.b16 %v517
    %v608 = vunpack.c.h.b16 %v517
    %v609 = vunpack.c.l.b16 %v518
    %v610 = vunpack.c.h.b16 %v518
    %v611 = vunpack.c.l.b16 %v519
    %v612 = vunpack.c.h.b16 %v519
    %v613 = vunpack.c.l.b16 %v520
    %v614 = vunpack.c.h.b16 %v520
    %v615 = vunpack.c.l.b16 %v521
    %v616 = vunpack.c.h.b16 %v521
    %v617 = vunpack.c.l.b16 %v522
    %v618 = vunpack.c.h.b16 %v522
    %v619 = vunpack.c.l.b16 %v523
    %v620 = vunpack.c.h.b16 %v523
    %v621 = vunpack.c.l.b16 %v524
    %v622 = vunpack.c.h.b16 %v524
    %v623 = vunpack.c.l.b16 %v525
    %v624 = vunpack.c.h.b16 %v525
    %v625 = vpack.c.b16 %v565, %v561
    %v626 = vpack.c.b16 %v566, %v562
    %v627 = vpack.c.b16 %v567, %v563
    %v628 = vpack.c.b16 %v568, %v564
    %v629 = vpack.c.b16 %v573, %v569
    %v630 = vpack.c.b16 %v574, %v570
    %v631 = vpack.c.b16 %v575, %v571
    %v632 = vpack.c.b16 %v576, %v572
    %v633 = vpack.c.b16 %v581, %v577
    %v634 = vpack.c.b16 %v582, %v578
    %v635 = vpack.c.b16 %v583, %v579
    %v636 = vpack.c.b16 %v584, %v580
    %v637 = vpack.c.b16 %v589, %v585
    %v638 = vpack.c.b16 %v590, %v586
    %v639 = vpack.c.b16 %v591, %v587
    %v640 = vpack.c.b16 %v592, %v588
    %v641 = vpack.c.b16 %v597, %v593
    %v642 = vpack.c.b16 %v598, %v594
    %v643 = vpack.c.b16 %v599, %v595
    %v644 = vpack.c.b16 %v600, %v596
    %v645 = vpack.c.b16 %v605, %v601
    %v646 = vpack.c.b16 %v606, %v602
    %v647 = vpack.c.b16 %v607, %v603
    %v648 = vpack.c.b16 %v608, %v604
    %v649 = vpack.c.b16 %v613, %v609
    %v650 = vpack.c.b16 %v614, %v610
    %v651 = vpack.c.b16 %v615, %v611
    %v652 = vpack.c.b16 %v616, %v612
    %v653 = vpack.c.b16 %v621, %v617
    %v654 = vpack.c.b16 %v622, %v618
    %v655 = vpack.c.b16 %v623, %v619
    %v656 = vpack.c.b16 %v624, %v620
    %689 = vmatprep.subr.bf16.mxu0 %v654
    %690 = vmatpush1.bf16.msra.mxu0 %v653
    %691 = vmatprep.subr.bf16.mxu0 %v650
    %692 = vmatpush1.bf16.msra.mxu0 %v649
    %693 = vmatprep.subr.bf16.mxu0 %v646
    %694 = vmatpush1.bf16.msra.mxu0 %v645
    %695 = vmatprep.subr.bf16.mxu0 %v642
    %696 = vmatpush1.bf16.msra.mxu0 %v641
    %697 = vmatprep.subr.bf16.mxu0 %v638
    %698 = vmatpush1.bf16.msra.mxu0 %v637
    %699 = vmatprep.subr.bf16.mxu0 %v634
    %700 = vmatpush1.bf16.msra.mxu0 %v633
    %701 = vmatprep.subr.bf16.mxu0 %v630
    %702 = vmatpush1.bf16.msra.mxu0 %v629
    %703 = vmatprep.subr.bf16.mxu0 %v626
    %704 = vmatpush1.bf16.msra.mxu0 %v625
    %705 = vmatprep.subr.bf16.mxu0 0
    %706 = vmatpush2.bf16.msra.mxu0 0
    %707 = vmatprep.subr.bf16.mxu0 0
    %708 = vmatpush2.bf16.msra.mxu0 0
    %709 = vmatprep.subr.bf16.mxu0 0
    %710 = vmatpush2.bf16.msra.mxu0 0
    %711 = vmatprep.subr.bf16.mxu0 0
    %712 = vmatpush2.bf16.msra.mxu0 0
    %713 = vmatprep.subr.bf16.mxu0 0
    %714 = vmatpush2.bf16.msra.mxu0 0
    %715 = vmatprep.subr.bf16.mxu0 0
    %716 = vmatpush2.bf16.msra.mxu0 0
    %717 = vmatprep.subr.bf16.mxu0 0
    %718 = vmatpush2.bf16.msra.mxu0 0
    %719 = vmatprep.subr.bf16.mxu0 0
    %720 = vmatpush2.bf16.msra.mxu0 0
    %721 = vmatprep.mubr.bf16.mxu0 0
    %722 = vmatmul.mubr.bf16.gmra.mxu0 %v528
    %v723 = vpop.f32.mrf.mxu0
    %v724 = vadd.f32 0.0, %v723
    %v725 = vpop.f32.mrf.mxu0
    %v726 = vadd.f32 0.0, %v725
    %v727 = vpop.f32.mrf.mxu0
    %v728 = vpop.f32.mrf.mxu0
    %729 = vdwg.mxu0
    %730 = vmatprep.subr.bf16.mxu0 %v656
    %731 = vmatpush1.bf16.msra.mxu0 %v655
    %732 = vmatprep.subr.bf16.mxu0 %v652
    %733 = vmatpush1.bf16.msra.mxu0 %v651
    %734 = vmatprep.subr.bf16.mxu0 %v648
    %735 = vmatpush1.bf16.msra.mxu0 %v647
    %736 = vmatprep.subr.bf16.mxu0 %v644
    %737 = vmatpush1.bf16.msra.mxu0 %v643
    %738 = vmatprep.subr.bf16.mxu0 %v640
    %739 = vmatpush1.bf16.msra.mxu0 %v639
    %740 = vmatprep.subr.bf16.mxu0 %v636
    %741 = vmatpush1.bf16.msra.mxu0 %v635
    %742 = vmatprep.subr.bf16.mxu0 %v632
    %743 = vmatpush1.bf16.msra.mxu0 %v631
    %744 = vmatprep.subr.bf16.mxu0 %v628
    %745 = vmatpush1.bf16.msra.mxu0 %v627
    %746 = vmatprep.subr.bf16.mxu0 0
    %747 = vmatpush2.bf16.msra.mxu0 0
    %748 = vmatprep.subr.bf16.mxu0 0
    %749 = vmatpush2.bf16.msra.mxu0 0
    %750 = vmatprep.subr.bf16.mxu0 0
    %751 = vmatpush2.bf16.msra.mxu0 0
    %752 = vmatprep.subr.bf16.mxu0 0
    %753 = vmatpush2.bf16.msra.mxu0 0
    %754 = vmatprep.subr.bf16.mxu0 0
    %755 = vmatpush2.bf16.msra.mxu0 0
    %756 = vmatprep.subr.bf16.mxu0 0
    %757 = vmatpush2.bf16.msra.mxu0 0
    %758 = vmatprep.subr.bf16.mxu0 0
    %759 = vmatpush2.bf16.msra.mxu0 0
    %760 = vmatprep.subr.bf16.mxu0 0
    %761 = vmatpush2.bf16.msra.mxu0 0
    %762 = vmatprep.mubr.bf16.mxu0 0
    %763 = vmatmul.mubr.bf16.gmra.mxu0 %v528
    %v764 = vpop.f32.mrf.mxu0
    %v765 = vadd.f32 0.0, %v764
    %v766 = vpop.f32.mrf.mxu0
    %v767 = vadd.f32 0.0, %v766
    %v768 = vpop.f32.mrf.mxu0
    %v769 = vpop.f32.mrf.mxu0
    %770 = vdwg.mxu0
    %v771 = vadd.f32 %v383, %v724
    %v772 = vadd.f32 %v385, %v726
    %v773 = vadd.f32 %v456, %v765
    %v774 = vadd.f32 %v458, %v767
    %v775 = vxor.u32 %v771, 2147483648
    %v776 = vmul.f32 %v775, 1.442695
    %v777 = vpow.pop %v776
    %v778 = vadd.f32 %v777, 1.0
    %v779 = vrcp.pop %v778
    %v780 = vmul.f32 1.0, %v779
    %v781 = vxor.u32 %v772, 2147483648
    %v782 = vmul.f32 %v781, 1.442695
    %v783 = vpow.pop %v782
    %v784 = vadd.f32 %v783, 1.0
    %v785 = vrcp.pop %v784
    %v786 = vmul.f32 1.0, %v785
    %v787 = vtanh.pop %v773
    %v788 = vxor.u32 %v774, 2147483648
    %v789 = vmul.f32 %v788, 1.442695
    %v790 = vpow.pop %v789
    %v791 = vadd.f32 %v790, 1.0
    %v792 = vrcp.pop %v791
    %v793 = vmul.f32 1.0, %v792
    %v794 = vmul.f32 %v786, %v527
    %v795 = vmul.f32 %v780, %v787
    %v796 = vadd.f32 %v794, %v795
    %v797 = vtanh.pop %v796
    %v798 = vmul.f32 %v793, %v797
    %v799 = vpack.c.bf16 %v798, %v798
    %800 = vmatprep.subr.bf16.mxu0 %v654
    %801 = vmatpush1.bf16.msra.mxu0 %v653
    %802 = vmatprep.subr.bf16.mxu0 %v650
    %803 = vmatpush1.bf16.msra.mxu0 %v649
    %804 = vmatprep.subr.bf16.mxu0 %v646
    %805 = vmatpush1.bf16.msra.mxu0 %v645
    %806 = vmatprep.subr.bf16.mxu0 %v642
    %807 = vmatpush1.bf16.msra.mxu0 %v641
    %808 = vmatprep.subr.bf16.mxu0 %v638
    %809 = vmatpush1.bf16.msra.mxu0 %v637
    %810 = vmatprep.subr.bf16.mxu0 %v634
    %811 = vmatpush1.bf16.msra.mxu0 %v633
    %812 = vmatprep.subr.bf16.mxu0 %v630
    %813 = vmatpush1.bf16.msra.mxu0 %v629
    %814 = vmatprep.subr.bf16.mxu0 %v626
    %815 = vmatpush1.bf16.msra.mxu0 %v625
    %816 = vmatprep.subr.bf16.mxu0 0
    %817 = vmatpush2.bf16.msra.mxu0 0
    %818 = vmatprep.subr.bf16.mxu0 0
    %819 = vmatpush2.bf16.msra.mxu0 0
    %820 = vmatprep.subr.bf16.mxu0 0
    %821 = vmatpush2.bf16.msra.mxu0 0
    %822 = vmatprep.subr.bf16.mxu0 0
    %823 = vmatpush2.bf16.msra.mxu0 0
    %824 = vmatprep.subr.bf16.mxu0 0
    %825 = vmatpush2.bf16.msra.mxu0 0
    %826 = vmatprep.subr.bf16.mxu0 0
    %827 = vmatpush2.bf16.msra.mxu0 0
    %828 = vmatprep.subr.bf16.mxu0 0
    %829 = vmatpush2.bf16.msra.mxu0 0
    %830 = vmatprep.subr.bf16.mxu0 0
    %831 = vmatpush2.bf16.msra.mxu0 0
    %832 = vmatprep.mubr.bf16.mxu0 0
    %833 = vmatmul.mubr.bf16.gmra.mxu0 %v799
    %v834 = vpop.f32.mrf.mxu0
    %v835 = vadd.f32 0.0, %v834
    %v836 = vpop.f32.mrf.mxu0
    %v837 = vadd.f32 0.0, %v836
    %v838 = vpop.f32.mrf.mxu0
    %v839 = vpop.f32.mrf.mxu0
    %840 = vdwg.mxu0
    %841 = vmatprep.subr.bf16.mxu0 %v656
    %842 = vmatpush1.bf16.msra.mxu0 %v655
    %843 = vmatprep.subr.bf16.mxu0 %v652
    %844 = vmatpush1.bf16.msra.mxu0 %v651
    %845 = vmatprep.subr.bf16.mxu0 %v648
    %846 = vmatpush1.bf16.msra.mxu0 %v647
    %847 = vmatprep.subr.bf16.mxu0 %v644
    %848 = vmatpush1.bf16.msra.mxu0 %v643
    %849 = vmatprep.subr.bf16.mxu0 %v640
    %850 = vmatpush1.bf16.msra.mxu0 %v639
    %851 = vmatprep.subr.bf16.mxu0 %v636
    %852 = vmatpush1.bf16.msra.mxu0 %v635
    %853 = vmatprep.subr.bf16.mxu0 %v632
    %854 = vmatpush1.bf16.msra.mxu0 %v631
    %855 = vmatprep.subr.bf16.mxu0 %v628
    %856 = vmatpush1.bf16.msra.mxu0 %v627
    %857 = vmatprep.subr.bf16.mxu0 0
    %858 = vmatpush2.bf16.msra.mxu0 0
    %859 = vmatprep.subr.bf16.mxu0 0
    %860 = vmatpush2.bf16.msra.mxu0 0
    %861 = vmatprep.subr.bf16.mxu0 0
    %862 = vmatpush2.bf16.msra.mxu0 0
    %863 = vmatprep.subr.bf16.mxu0 0
    %864 = vmatpush2.bf16.msra.mxu0 0
    %865 = vmatprep.subr.bf16.mxu0 0
    %866 = vmatpush2.bf16.msra.mxu0 0
    %867 = vmatprep.subr.bf16.mxu0 0
    %868 = vmatpush2.bf16.msra.mxu0 0
    %869 = vmatprep.subr.bf16.mxu0 0
    %870 = vmatpush2.bf16.msra.mxu0 0
    %871 = vmatprep.subr.bf16.mxu0 0
    %872 = vmatpush2.bf16.msra.mxu0 0
    %873 = vmatprep.mubr.bf16.mxu0 0
    %874 = vmatmul.mubr.bf16.gmra.mxu0 %v799
    %v875 = vpop.f32.mrf.mxu0
    %v876 = vadd.f32 0.0, %v875
    %v877 = vpop.f32.mrf.mxu0
    %v878 = vadd.f32 0.0, %v877
    %v879 = vpop.f32.mrf.mxu0
    %v880 = vpop.f32.mrf.mxu0
    %881 = vdwg.mxu0
    %v882 = vadd.f32 %v387, %v835
    %v883 = vadd.f32 %v389, %v837
    %v884 = vadd.f32 %v460, %v876
    %v885 = vadd.f32 %v462, %v878
    %v886 = vxor.u32 %v882, 2147483648
    %v887 = vmul.f32 %v886, 1.442695
    %v888 = vpow.pop %v887
    %v889 = vadd.f32 %v888, 1.0
    %v890 = vrcp.pop %v889
    %v891 = vmul.f32 1.0, %v890
    %v892 = vxor.u32 %v883, 2147483648
    %v893 = vmul.f32 %v892, 1.442695
    %v894 = vpow.pop %v893
    %v895 = vadd.f32 %v894, 1.0
    %v896 = vrcp.pop %v895
    %v897 = vmul.f32 1.0, %v896
    %v898 = vtanh.pop %v884
    %v899 = vxor.u32 %v885, 2147483648
    %v900 = vmul.f32 %v899, 1.442695
    %v901 = vpow.pop %v900
    %v902 = vadd.f32 %v901, 1.0
    %v903 = vrcp.pop %v902
    %v904 = vmul.f32 1.0, %v903
    %v905 = vmul.f32 %v897, %v796
    %v906 = vmul.f32 %v891, %v898
    %v907 = vadd.f32 %v905, %v906
    %v908 = vtanh.pop %v907
    %v909 = vmul.f32 %v904, %v908
    %v910 = vpack.c.bf16 %v909, %v909
    %911 = vmatprep.subr.bf16.mxu0 %v654
    %912 = vmatpush1.bf16.msra.mxu0 %v653
    %913 = vmatprep.subr.bf16.mxu0 %v650
    %914 = vmatpush1.bf16.msra.mxu0 %v649
    %915 = vmatprep.subr.bf16.mxu0 %v646
    %916 = vmatpush1.bf16.msra.mxu0 %v645
    %917 = vmatprep.subr.bf16.mxu0 %v642
    %918 = vmatpush1.bf16.msra.mxu0 %v641
    %919 = vmatprep.subr.bf16.mxu0 %v638
    %920 = vmatpush1.bf16.msra.mxu0 %v637
    %921 = vmatprep.subr.bf16.mxu0 %v634
    %922 = vmatpush1.bf16.msra.mxu0 %v633
    %923 = vmatprep.subr.bf16.mxu0 %v630
    %924 = vmatpush1.bf16.msra.mxu0 %v629
    %925 = vmatprep.subr.bf16.mxu0 %v626
    %926 = vmatpush1.bf16.msra.mxu0 %v625
    %927 = vmatprep.subr.bf16.mxu0 0
    %928 = vmatpush2.bf16.msra.mxu0 0
    %929 = vmatprep.subr.bf16.mxu0 0
    %930 = vmatpush2.bf16.msra.mxu0 0
    %931 = vmatprep.subr.bf16.mxu0 0
    %932 = vmatpush2.bf16.msra.mxu0 0
    %933 = vmatprep.subr.bf16.mxu0 0
    %934 = vmatpush2.bf16.msra.mxu0 0
    %935 = vmatprep.subr.bf16.mxu0 0
    %936 = vmatpush2.bf16.msra.mxu0 0
    %937 = vmatprep.subr.bf16.mxu0 0
    %938 = vmatpush2.bf16.msra.mxu0 0
    %939 = vmatprep.subr.bf16.mxu0 0
    %940 = vmatpush2.bf16.msra.mxu0 0
    %941 = vmatprep.subr.bf16.mxu0 0
    %942 = vmatpush2.bf16.msra.mxu0 0
    %943 = vmatprep.mubr.bf16.mxu0 0
    %944 = vmatmul.mubr.bf16.gmra.mxu0 %v910
    %v945 = vpop.f32.mrf.mxu0
    %v946 = vadd.f32 0.0, %v945
    %v947 = vpop.f32.mrf.mxu0
    %v948 = vadd.f32 0.0, %v947
    %v949 = vpop.f32.mrf.mxu0
    %v950 = vpop.f32.mrf.mxu0
    %951 = vdwg.mxu0
    %952 = vmatprep.subr.bf16.mxu0 %v656
    %953 = vmatpush1.bf16.msra.mxu0 %v655
    %954 = vmatprep.subr.bf16.mxu0 %v652
    %955 = vmatpush1.bf16.msra.mxu0 %v651
    %956 = vmatprep.subr.bf16.mxu0 %v648
    %957 = vmatpush1.bf16.msra.mxu0 %v647
    %958 = vmatprep.subr.bf16.mxu0 %v644
    %959 = vmatpush1.bf16.msra.mxu0 %v643
    %960 = vmatprep.subr.bf16.mxu0 %v640
    %961 = vmatpush1.bf16.msra.mxu0 %v639
    %962 = vmatprep.subr.bf16.mxu0 %v636
    %963 = vmatpush1.bf16.msra.mxu0 %v635
    %964 = vmatprep.subr.bf16.mxu0 %v632
    %965 = vmatpush1.bf16.msra.mxu0 %v631
    %966 = vmatprep.subr.bf16.mxu0 %v628
    %967 = vmatpush1.bf16.msra.mxu0 %v627
    %968 = vmatprep.subr.bf16.mxu0 0
    %969 = vmatpush2.bf16.msra.mxu0 0
    %970 = vmatprep.subr.bf16.mxu0 0
    %971 = vmatpush2.bf16.msra.mxu0 0
    %972 = vmatprep.subr.bf16.mxu0 0
    %973 = vmatpush2.bf16.msra.mxu0 0
    %974 = vmatprep.subr.bf16.mxu0 0
    %975 = vmatpush2.bf16.msra.mxu0 0
    %976 = vmatprep.subr.bf16.mxu0 0
    %977 = vmatpush2.bf16.msra.mxu0 0
    %978 = vmatprep.subr.bf16.mxu0 0
    %979 = vmatpush2.bf16.msra.mxu0 0
    %980 = vmatprep.subr.bf16.mxu0 0
    %981 = vmatpush2.bf16.msra.mxu0 0
    %982 = vmatprep.subr.bf16.mxu0 0
    %983 = vmatpush2.bf16.msra.mxu0 0
    %984 = vmatprep.mubr.bf16.mxu0 0
    %985 = vmatmul.mubr.bf16.gmra.mxu0 %v910
    %v986 = vpop.f32.mrf.mxu0
    %v987 = vadd.f32 0.0, %v986
    %v988 = vpop.f32.mrf.mxu0
    %v989 = vadd.f32 0.0, %v988
    %v990 = vpop.f32.mrf.mxu0
    %v991 = vpop.f32.mrf.mxu0
    %992 = vdwg.mxu0
    %v993 = vadd.f32 %v393, %v946
    %v994 = vadd.f32 %v395, %v948
    %v995 = vadd.f32 %v466, %v987
    %v996 = vadd.f32 %v468, %v989
    %v997 = vxor.u32 %v993, 2147483648
    %v998 = vmul.f32 %v997, 1.442695
    %v999 = vpow.pop %v998
    %v1000 = vadd.f32 %v999, 1.0
    %v1001 = vrcp.pop %v1000
    %v1002 = vmul.f32 1.0, %v1001
    %v1003 = vxor.u32 %v994, 2147483648
    %v1004 = vmul.f32 %v1003, 1.442695
    %v1005 = vpow.pop %v1004
    %v1006 = vadd.f32 %v1005, 1.0
    %v1007 = vrcp.pop %v1006
    %v1008 = vmul.f32 1.0, %v1007
    %v1009 = vtanh.pop %v995
    %v1010 = vxor.u32 %v996, 2147483648
    %v1011 = vmul.f32 %v1010, 1.442695
    %v1012 = vpow.pop %v1011
    %v1013 = vadd.f32 %v1012, 1.0
    %v1014 = vrcp.pop %v1013
    %v1015 = vmul.f32 1.0, %v1014
    %v1016 = vmul.f32 %v1008, %v907
    %v1017 = vmul.f32 %v1002, %v1009
    %v1018 = vadd.f32 %v1016, %v1017
    %v1019 = vtanh.pop %v1018
    %v1020 = vmul.f32 %v1015, %v1019
    %v1021 = vpack.c.bf16 %v1020, %v1020
    %1022 = vmatprep.subr.bf16.mxu0 %v654
    %1023 = vmatpush1.bf16.msra.mxu0 %v653
    %1024 = vmatprep.subr.bf16.mxu0 %v650
    %1025 = vmatpush1.bf16.msra.mxu0 %v649
    %1026 = vmatprep.subr.bf16.mxu0 %v646
    %1027 = vmatpush1.bf16.msra.mxu0 %v645
    %1028 = vmatprep.subr.bf16.mxu0 %v642
    %1029 = vmatpush1.bf16.msra.mxu0 %v641
    %1030 = vmatprep.subr.bf16.mxu0 %v638
    %1031 = vmatpush1.bf16.msra.mxu0 %v637
    %1032 = vmatprep.subr.bf16.mxu0 %v634
    %1033 = vmatpush1.bf16.msra.mxu0 %v633
    %1034 = vmatprep.subr.bf16.mxu0 %v630
    %1035 = vmatpush1.bf16.msra.mxu0 %v629
    %1036 = vmatprep.subr.bf16.mxu0 %v626
    %1037 = vmatpush1.bf16.msra.mxu0 %v625
    %1038 = vmatprep.subr.bf16.mxu0 0
    %1039 = vmatpush2.bf16.msra.mxu0 0
    %1040 = vmatprep.subr.bf16.mxu0 0
    %1041 = vmatpush2.bf16.msra.mxu0 0
    %1042 = vmatprep.subr.bf16.mxu0 0
    %1043 = vmatpush2.bf16.msra.mxu0 0
    %1044 = vmatprep.subr.bf16.mxu0 0
    %1045 = vmatpush2.bf16.msra.mxu0 0
    %1046 = vmatprep.subr.bf16.mxu0 0
    %1047 = vmatpush2.bf16.msra.mxu0 0
    %1048 = vmatprep.subr.bf16.mxu0 0
    %1049 = vmatpush2.bf16.msra.mxu0 0
    %1050 = vmatprep.subr.bf16.mxu0 0
    %1051 = vmatpush2.bf16.msra.mxu0 0
    %1052 = vmatprep.subr.bf16.mxu0 0
    %1053 = vmatpush2.bf16.msra.mxu0 0
    %1054 = vmatprep.mubr.bf16.mxu0 0
    %1055 = vmatmul.mubr.bf16.gmra.mxu0 %v1021
    %v1056 = vpop.f32.mrf.mxu0
    %v1057 = vadd.f32 0.0, %v1056
    %v1058 = vpop.f32.mrf.mxu0
    %v1059 = vadd.f32 0.0, %v1058
    %v1060 = vpop.f32.mrf.mxu0
    %v1061 = vpop.f32.mrf.mxu0
    %1062 = vdwg.mxu0
    %1063 = vmatprep.subr.bf16.mxu0 %v656
    %1064 = vmatpush1.bf16.msra.mxu0 %v655
    %1065 = vmatprep.subr.bf16.mxu0 %v652
    %1066 = vmatpush1.bf16.msra.mxu0 %v651
    %1067 = vmatprep.subr.bf16.mxu0 %v648
    %1068 = vmatpush1.bf16.msra.mxu0 %v647
    %1069 = vmatprep.subr.bf16.mxu0 %v644
    %1070 = vmatpush1.bf16.msra.mxu0 %v643
    %1071 = vmatprep.subr.bf16.mxu0 %v640
    %1072 = vmatpush1.bf16.msra.mxu0 %v639
    %1073 = vmatprep.subr.bf16.mxu0 %v636
    %1074 = vmatpush1.bf16.msra.mxu0 %v635
    %1075 = vmatprep.subr.bf16.mxu0 %v632
    %1076 = vmatpush1.bf16.msra.mxu0 %v631
    %1077 = vmatprep.subr.bf16.mxu0 %v628
    %1078 = vmatpush1.bf16.msra.mxu0 %v627
    %1079 = vmatprep.subr.bf16.mxu0 0
    %1080 = vmatpush2.bf16.msra.mxu0 0
    %1081 = vmatprep.subr.bf16.mxu0 0
    %1082 = vmatpush2.bf16.msra.mxu0 0
    %1083 = vmatprep.subr.bf16.mxu0 0
    %1084 = vmatpush2.bf16.msra.mxu0 0
    %1085 = vmatprep.subr.bf16.mxu0 0
    %1086 = vmatpush2.bf16.msra.mxu0 0
    %1087 = vmatprep.subr.bf16.mxu0 0
    %1088 = vmatpush2.bf16.msra.mxu0 0
    %1089 = vmatprep.subr.bf16.mxu0 0
    %1090 = vmatpush2.bf16.msra.mxu0 0
    %1091 = vmatprep.subr.bf16.mxu0 0
    %1092 = vmatpush2.bf16.msra.mxu0 0
    %1093 = vmatprep.subr.bf16.mxu0 0
    %1094 = vmatpush2.bf16.msra.mxu0 0
    %1095 = vmatprep.mubr.bf16.mxu0 0
    %1096 = vmatmul.mubr.bf16.gmra.mxu0 %v1021
    %v1097 = vpop.f32.mrf.mxu0
    %v1098 = vadd.f32 0.0, %v1097
    %v1099 = vpop.f32.mrf.mxu0
    %v1100 = vadd.f32 0.0, %v1099
    %v1101 = vpop.f32.mrf.mxu0
    %v1102 = vpop.f32.mrf.mxu0
    %1103 = vdwg.mxu0
    %v1104 = vadd.f32 %v397, %v1057
    %v1105 = vadd.f32 %v399, %v1059
    %v1106 = vadd.f32 %v470, %v1098
    %v1107 = vadd.f32 %v472, %v1100
    %v1108 = vxor.u32 %v1104, 2147483648
    %v1109 = vmul.f32 %v1108, 1.442695
    %v1110 = vpow.pop %v1109
    %v1111 = vadd.f32 %v1110, 1.0
    %v1112 = vrcp.pop %v1111
    %v1113 = vmul.f32 1.0, %v1112
    %v1114 = vxor.u32 %v1105, 2147483648
    %v1115 = vmul.f32 %v1114, 1.442695
    %v1116 = vpow.pop %v1115
    %v1117 = vadd.f32 %v1116, 1.0
    %v1118 = vrcp.pop %v1117
    %v1119 = vmul.f32 1.0, %v1118
    %v1120 = vtanh.pop %v1106
    %v1121 = vxor.u32 %v1107, 2147483648
    %v1122 = vmul.f32 %v1121, 1.442695
    %v1123 = vpow.pop %v1122
    %v1124 = vadd.f32 %v1123, 1.0
    %v1125 = vrcp.pop %v1124
    %v1126 = vmul.f32 1.0, %v1125
    %v1127 = vmul.f32 %v1119, %v1018
    %v1128 = vmul.f32 %v1113, %v1120
    %v1129 = vadd.f32 %v1127, %v1128
    %v1130 = vtanh.pop %v1129
    %v1131 = vmul.f32 %v1126, %v1130
    %v1132 = vpack.c.bf16 %v1131, %v1131
    %1133 = vmatprep.subr.bf16.mxu0 %v654
    %1134 = vmatpush1.bf16.msra.mxu0 %v653
    %1135 = vmatprep.subr.bf16.mxu0 %v650
    %1136 = vmatpush1.bf16.msra.mxu0 %v649
    %1137 = vmatprep.subr.bf16.mxu0 %v646
    %1138 = vmatpush1.bf16.msra.mxu0 %v645
    %1139 = vmatprep.subr.bf16.mxu0 %v642
    %1140 = vmatpush1.bf16.msra.mxu0 %v641
    %1141 = vmatprep.subr.bf16.mxu0 %v638
    %1142 = vmatpush1.bf16.msra.mxu0 %v637
    %1143 = vmatprep.subr.bf16.mxu0 %v634
    %1144 = vmatpush1.bf16.msra.mxu0 %v633
    %1145 = vmatprep.subr.bf16.mxu0 %v630
    %1146 = vmatpush1.bf16.msra.mxu0 %v629
    %1147 = vmatprep.subr.bf16.mxu0 %v626
    %1148 = vmatpush1.bf16.msra.mxu0 %v625
    %1149 = vmatprep.subr.bf16.mxu0 0
    %1150 = vmatpush2.bf16.msra.mxu0 0
    %1151 = vmatprep.subr.bf16.mxu0 0
    %1152 = vmatpush2.bf16.msra.mxu0 0
    %1153 = vmatprep.subr.bf16.mxu0 0
    %1154 = vmatpush2.bf16.msra.mxu0 0
    %1155 = vmatprep.subr.bf16.mxu0 0
    %1156 = vmatpush2.bf16.msra.mxu0 0
    %1157 = vmatprep.subr.bf16.mxu0 0
    %1158 = vmatpush2.bf16.msra.mxu0 0
    %1159 = vmatprep.subr.bf16.mxu0 0
    %1160 = vmatpush2.bf16.msra.mxu0 0
    %1161 = vmatprep.subr.bf16.mxu0 0
    %1162 = vmatpush2.bf16.msra.mxu0 0
    %1163 = vmatprep.subr.bf16.mxu0 0
    %1164 = vmatpush2.bf16.msra.mxu0 0
    %1165 = vmatprep.mubr.bf16.mxu0 0
    %1166 = vmatmul.mubr.bf16.gmra.mxu0 %v1132
    %v1167 = vpop.f32.mrf.mxu0
    %v1168 = vadd.f32 0.0, %v1167
    %v1169 = vpop.f32.mrf.mxu0
    %v1170 = vadd.f32 0.0, %v1169
    %v1171 = vpop.f32.mrf.mxu0
    %v1172 = vpop.f32.mrf.mxu0
    %1173 = vdwg.mxu0
    %1174 = vmatprep.subr.bf16.mxu0 %v656
    %1175 = vmatpush1.bf16.msra.mxu0 %v655
    %1176 = vmatprep.subr.bf16.mxu0 %v652
    %1177 = vmatpush1.bf16.msra.mxu0 %v651
    %1178 = vmatprep.subr.bf16.mxu0 %v648
    %1179 = vmatpush1.bf16.msra.mxu0 %v647
    %1180 = vmatprep.subr.bf16.mxu0 %v644
    %1181 = vmatpush1.bf16.msra.mxu0 %v643
    %1182 = vmatprep.subr.bf16.mxu0 %v640
    %1183 = vmatpush1.bf16.msra.mxu0 %v639
    %1184 = vmatprep.subr.bf16.mxu0 %v636
    %1185 = vmatpush1.bf16.msra.mxu0 %v635
    %1186 = vmatprep.subr.bf16.mxu0 %v632
    %1187 = vmatpush1.bf16.msra.mxu0 %v631
    %1188 = vmatprep.subr.bf16.mxu0 %v628
    %1189 = vmatpush1.bf16.msra.mxu0 %v627
    %1190 = vmatprep.subr.bf16.mxu0 0
    %1191 = vmatpush2.bf16.msra.mxu0 0
    %1192 = vmatprep.subr.bf16.mxu0 0
    %1193 = vmatpush2.bf16.msra.mxu0 0
    %1194 = vmatprep.subr.bf16.mxu0 0
    %1195 = vmatpush2.bf16.msra.mxu0 0
    %1196 = vmatprep.subr.bf16.mxu0 0
    %1197 = vmatpush2.bf16.msra.mxu0 0
    %1198 = vmatprep.subr.bf16.mxu0 0
    %1199 = vmatpush2.bf16.msra.mxu0 0
    %1200 = vmatprep.subr.bf16.mxu0 0
    %1201 = vmatpush2.bf16.msra.mxu0 0
    %1202 = vmatprep.subr.bf16.mxu0 0
    %1203 = vmatpush2.bf16.msra.mxu0 0
    %1204 = vmatprep.subr.bf16.mxu0 0
    %1205 = vmatpush2.bf16.msra.mxu0 0
    %1206 = vmatprep.mubr.bf16.mxu0 0
    %1207 = vmatmul.mubr.bf16.gmra.mxu0 %v1132
    %v1208 = vpop.f32.mrf.mxu0
    %v1209 = vadd.f32 0.0, %v1208
    %v1210 = vpop.f32.mrf.mxu0
    %v1211 = vadd.f32 0.0, %v1210
    %v1212 = vpop.f32.mrf.mxu0
    %v1213 = vpop.f32.mrf.mxu0
    %1214 = vdwg.mxu0
    %v1215 = vadd.f32 %v403, %v1168
    %v1216 = vadd.f32 %v405, %v1170
    %v1217 = vadd.f32 %v476, %v1209
    %v1218 = vadd.f32 %v478, %v1211
    %v1219 = vxor.u32 %v1215, 2147483648
    %v1220 = vmul.f32 %v1219, 1.442695
    %v1221 = vpow.pop %v1220
    %v1222 = vadd.f32 %v1221, 1.0
    %v1223 = vrcp.pop %v1222
    %v1224 = vmul.f32 1.0, %v1223
    %v1225 = vxor.u32 %v1216, 2147483648
    %v1226 = vmul.f32 %v1225, 1.442695
    %v1227 = vpow.pop %v1226
    %v1228 = vadd.f32 %v1227, 1.0
    %v1229 = vrcp.pop %v1228
    %v1230 = vmul.f32 1.0, %v1229
    %v1231 = vtanh.pop %v1217
    %v1232 = vxor.u32 %v1218, 2147483648
    %v1233 = vmul.f32 %v1232, 1.442695
    %v1234 = vpow.pop %v1233
    %v1235 = vadd.f32 %v1234, 1.0
    %v1236 = vrcp.pop %v1235
    %v1237 = vmul.f32 1.0, %v1236
    %v1238 = vmul.f32 %v1230, %v1129
    %v1239 = vmul.f32 %v1224, %v1231
    %v1240 = vadd.f32 %v1238, %v1239
    %v1241 = vtanh.pop %v1240
    %v1242 = vmul.f32 %v1237, %v1241
    %v1243 = vpack.c.bf16 %v1242, %v1242
    %1244 = vmatprep.subr.bf16.mxu0 %v654
    %1245 = vmatpush1.bf16.msra.mxu0 %v653
    %1246 = vmatprep.subr.bf16.mxu0 %v650
    %1247 = vmatpush1.bf16.msra.mxu0 %v649
    %1248 = vmatprep.subr.bf16.mxu0 %v646
    %1249 = vmatpush1.bf16.msra.mxu0 %v645
    %1250 = vmatprep.subr.bf16.mxu0 %v642
    %1251 = vmatpush1.bf16.msra.mxu0 %v641
    %1252 = vmatprep.subr.bf16.mxu0 %v638
    %1253 = vmatpush1.bf16.msra.mxu0 %v637
    %1254 = vmatprep.subr.bf16.mxu0 %v634
    %1255 = vmatpush1.bf16.msra.mxu0 %v633
    %1256 = vmatprep.subr.bf16.mxu0 %v630
    %1257 = vmatpush1.bf16.msra.mxu0 %v629
    %1258 = vmatprep.subr.bf16.mxu0 %v626
    %1259 = vmatpush1.bf16.msra.mxu0 %v625
    %1260 = vmatprep.subr.bf16.mxu0 0
    %1261 = vmatpush2.bf16.msra.mxu0 0
    %1262 = vmatprep.subr.bf16.mxu0 0
    %1263 = vmatpush2.bf16.msra.mxu0 0
    %1264 = vmatprep.subr.bf16.mxu0 0
    %1265 = vmatpush2.bf16.msra.mxu0 0
    %1266 = vmatprep.subr.bf16.mxu0 0
    %1267 = vmatpush2.bf16.msra.mxu0 0
    %1268 = vmatprep.subr.bf16.mxu0 0
    %1269 = vmatpush2.bf16.msra.mxu0 0
    %1270 = vmatprep.subr.bf16.mxu0 0
    %1271 = vmatpush2.bf16.msra.mxu0 0
    %1272 = vmatprep.subr.bf16.mxu0 0
    %1273 = vmatpush2.bf16.msra.mxu0 0
    %1274 = vmatprep.subr.bf16.mxu0 0
    %1275 = vmatpush2.bf16.msra.mxu0 0
    %1276 = vmatprep.mubr.bf16.mxu0 0
    %1277 = vmatmul.mubr.bf16.gmra.mxu0 %v1243
    %v1278 = vpop.f32.mrf.mxu0
    %v1279 = vadd.f32 0.0, %v1278
    %v1280 = vpop.f32.mrf.mxu0
    %v1281 = vadd.f32 0.0, %v1280
    %v1282 = vpop.f32.mrf.mxu0
    %v1283 = vpop.f32.mrf.mxu0
    %1284 = vdwg.mxu0
    %1285 = vmatprep.subr.bf16.mxu0 %v656
    %1286 = vmatpush1.bf16.msra.mxu0 %v655
    %1287 = vmatprep.subr.bf16.mxu0 %v652
    %1288 = vmatpush1.bf16.msra.mxu0 %v651
    %1289 = vmatprep.subr.bf16.mxu0 %v648
    %1290 = vmatpush1.bf16.msra.mxu0 %v647
    %1291 = vmatprep.subr.bf16.mxu0 %v644
    %1292 = vmatpush1.bf16.msra.mxu0 %v643
    %1293 = vmatprep.subr.bf16.mxu0 %v640
    %1294 = vmatpush1.bf16.msra.mxu0 %v639
    %1295 = vmatprep.subr.bf16.mxu0 %v636
    %1296 = vmatpush1.bf16.msra.mxu0 %v635
    %1297 = vmatprep.subr.bf16.mxu0 %v632
    %1298 = vmatpush1.bf16.msra.mxu0 %v631
    %1299 = vmatprep.subr.bf16.mxu0 %v628
    %1300 = vmatpush1.bf16.msra.mxu0 %v627
    %1301 = vmatprep.subr.bf16.mxu0 0
    %1302 = vmatpush2.bf16.msra.mxu0 0
    %1303 = vmatprep.subr.bf16.mxu0 0
    %1304 = vmatpush2.bf16.msra.mxu0 0
    %1305 = vmatprep.subr.bf16.mxu0 0
    %1306 = vmatpush2.bf16.msra.mxu0 0
    %1307 = vmatprep.subr.bf16.mxu0 0
    %1308 = vmatpush2.bf16.msra.mxu0 0
    %1309 = vmatprep.subr.bf16.mxu0 0
    %1310 = vmatpush2.bf16.msra.mxu0 0
    %1311 = vmatprep.subr.bf16.mxu0 0
    %1312 = vmatpush2.bf16.msra.mxu0 0
    %1313 = vmatprep.subr.bf16.mxu0 0
    %1314 = vmatpush2.bf16.msra.mxu0 0
    %1315 = vmatprep.subr.bf16.mxu0 0
    %1316 = vmatpush2.bf16.msra.mxu0 0
    %1317 = vmatprep.mubr.bf16.mxu0 0
    %1318 = vmatmul.mubr.bf16.gmra.mxu0 %v1243
    %v1319 = vpop.f32.mrf.mxu0
    %v1320 = vadd.f32 0.0, %v1319
    %v1321 = vpop.f32.mrf.mxu0
    %v1322 = vadd.f32 0.0, %v1321
    %v1323 = vpop.f32.mrf.mxu0
    %v1324 = vpop.f32.mrf.mxu0
    %1325 = vdwg.mxu0
    %v1326 = vadd.f32 %v407, %v1279
    %v1327 = vadd.f32 %v409, %v1281
    %v1328 = vadd.f32 %v480, %v1320
    %v1329 = vadd.f32 %v482, %v1322
    %v1330 = vxor.u32 %v1326, 2147483648
    %v1331 = vmul.f32 %v1330, 1.442695
    %v1332 = vpow.pop %v1331
    %v1333 = vadd.f32 %v1332, 1.0
    %v1334 = vrcp.pop %v1333
    %v1335 = vmul.f32 1.0, %v1334
    %v1336 = vxor.u32 %v1327, 2147483648
    %v1337 = vmul.f32 %v1336, 1.442695
    %v1338 = vpow.pop %v1337
    %v1339 = vadd.f32 %v1338, 1.0
    %v1340 = vrcp.pop %v1339
    %v1341 = vmul.f32 1.0, %v1340
    %v1342 = vtanh.pop %v1328
    %v1343 = vxor.u32 %v1329, 2147483648
    %v1344 = vmul.f32 %v1343, 1.442695
    %v1345 = vpow.pop %v1344
    %v1346 = vadd.f32 %v1345, 1.0
    %v1347 = vrcp.pop %v1346
    %v1348 = vmul.f32 1.0, %v1347
    %v1349 = vmul.f32 %v1341, %v1240
    %v1350 = vmul.f32 %v1335, %v1342
    %v1351 = vadd.f32 %v1349, %v1350
    %v1352 = vtanh.pop %v1351
    %v1353 = vmul.f32 %v1348, %v1352
    %v1354 = vpack.c.bf16 %v1353, %v1353
    %1355 = vmatprep.subr.bf16.mxu0 %v654
    %1356 = vmatpush1.bf16.msra.mxu0 %v653
    %1357 = vmatprep.subr.bf16.mxu0 %v650
    %1358 = vmatpush1.bf16.msra.mxu0 %v649
    %1359 = vmatprep.subr.bf16.mxu0 %v646
    %1360 = vmatpush1.bf16.msra.mxu0 %v645
    %1361 = vmatprep.subr.bf16.mxu0 %v642
    %1362 = vmatpush1.bf16.msra.mxu0 %v641
    %1363 = vmatprep.subr.bf16.mxu0 %v638
    %1364 = vmatpush1.bf16.msra.mxu0 %v637
    %1365 = vmatprep.subr.bf16.mxu0 %v634
    %1366 = vmatpush1.bf16.msra.mxu0 %v633
    %1367 = vmatprep.subr.bf16.mxu0 %v630
    %1368 = vmatpush1.bf16.msra.mxu0 %v629
    %1369 = vmatprep.subr.bf16.mxu0 %v626
    %1370 = vmatpush1.bf16.msra.mxu0 %v625
    %1371 = vmatprep.subr.bf16.mxu0 0
    %1372 = vmatpush2.bf16.msra.mxu0 0
    %1373 = vmatprep.subr.bf16.mxu0 0
    %1374 = vmatpush2.bf16.msra.mxu0 0
    %1375 = vmatprep.subr.bf16.mxu0 0
    %1376 = vmatpush2.bf16.msra.mxu0 0
    %1377 = vmatprep.subr.bf16.mxu0 0
    %1378 = vmatpush2.bf16.msra.mxu0 0
    %1379 = vmatprep.subr.bf16.mxu0 0
    %1380 = vmatpush2.bf16.msra.mxu0 0
    %1381 = vmatprep.subr.bf16.mxu0 0
    %1382 = vmatpush2.bf16.msra.mxu0 0
    %1383 = vmatprep.subr.bf16.mxu0 0
    %1384 = vmatpush2.bf16.msra.mxu0 0
    %1385 = vmatprep.subr.bf16.mxu0 0
    %1386 = vmatpush2.bf16.msra.mxu0 0
    %1387 = vmatprep.mubr.bf16.mxu0 0
    %1388 = vmatmul.mubr.bf16.gmra.mxu0 %v1354
    %v1389 = vpop.f32.mrf.mxu0
    %v1390 = vadd.f32 0.0, %v1389
    %v1391 = vpop.f32.mrf.mxu0
    %v1392 = vadd.f32 0.0, %v1391
    %v1393 = vpop.f32.mrf.mxu0
    %v1394 = vpop.f32.mrf.mxu0
    %1395 = vdwg.mxu0
    %1396 = vmatprep.subr.bf16.mxu0 %v656
    %1397 = vmatpush1.bf16.msra.mxu0 %v655
    %1398 = vmatprep.subr.bf16.mxu0 %v652
    %1399 = vmatpush1.bf16.msra.mxu0 %v651
    %1400 = vmatprep.subr.bf16.mxu0 %v648
    %1401 = vmatpush1.bf16.msra.mxu0 %v647
    %1402 = vmatprep.subr.bf16.mxu0 %v644
    %1403 = vmatpush1.bf16.msra.mxu0 %v643
    %1404 = vmatprep.subr.bf16.mxu0 %v640
    %1405 = vmatpush1.bf16.msra.mxu0 %v639
    %1406 = vmatprep.subr.bf16.mxu0 %v636
    %1407 = vmatpush1.bf16.msra.mxu0 %v635
    %1408 = vmatprep.subr.bf16.mxu0 %v632
    %1409 = vmatpush1.bf16.msra.mxu0 %v631
    %1410 = vmatprep.subr.bf16.mxu0 %v628
    %1411 = vmatpush1.bf16.msra.mxu0 %v627
    %1412 = vmatprep.subr.bf16.mxu0 0
    %1413 = vmatpush2.bf16.msra.mxu0 0
    %1414 = vmatprep.subr.bf16.mxu0 0
    %1415 = vmatpush2.bf16.msra.mxu0 0
    %1416 = vmatprep.subr.bf16.mxu0 0
    %1417 = vmatpush2.bf16.msra.mxu0 0
    %1418 = vmatprep.subr.bf16.mxu0 0
    %1419 = vmatpush2.bf16.msra.mxu0 0
    %1420 = vmatprep.subr.bf16.mxu0 0
    %1421 = vmatpush2.bf16.msra.mxu0 0
    %1422 = vmatprep.subr.bf16.mxu0 0
    %1423 = vmatpush2.bf16.msra.mxu0 0
    %1424 = vmatprep.subr.bf16.mxu0 0
    %1425 = vmatpush2.bf16.msra.mxu0 0
    %1426 = vmatprep.subr.bf16.mxu0 0
    %1427 = vmatpush2.bf16.msra.mxu0 0
    %1428 = vmatprep.mubr.bf16.mxu0 0
    %1429 = vmatmul.mubr.bf16.gmra.mxu0 %v1354
    %v1430 = vpop.f32.mrf.mxu0
    %v1431 = vadd.f32 0.0, %v1430
    %v1432 = vpop.f32.mrf.mxu0
    %v1433 = vadd.f32 0.0, %v1432
    %v1434 = vpop.f32.mrf.mxu0
    %v1435 = vpop.f32.mrf.mxu0
    %1436 = vdwg.mxu0
    %v1437 = vadd.f32 %v413, %v1390
    %v1438 = vadd.f32 %v415, %v1392
    %v1439 = vadd.f32 %v486, %v1431
    %v1440 = vadd.f32 %v488, %v1433
    %v1441 = vxor.u32 %v1437, 2147483648
    %v1442 = vmul.f32 %v1441, 1.442695
    %v1443 = vpow.pop %v1442
    %v1444 = vadd.f32 %v1443, 1.0
    %v1445 = vrcp.pop %v1444
    %v1446 = vmul.f32 1.0, %v1445
    %v1447 = vxor.u32 %v1438, 2147483648
    %v1448 = vmul.f32 %v1447, 1.442695
    %v1449 = vpow.pop %v1448
    %v1450 = vadd.f32 %v1449, 1.0
    %v1451 = vrcp.pop %v1450
    %v1452 = vmul.f32 1.0, %v1451
    %v1453 = vtanh.pop %v1439
    %v1454 = vxor.u32 %v1440, 2147483648
    %v1455 = vmul.f32 %v1454, 1.442695
    %v1456 = vpow.pop %v1455
    %v1457 = vadd.f32 %v1456, 1.0
    %v1458 = vrcp.pop %v1457
    %v1459 = vmul.f32 1.0, %v1458
    %v1460 = vmul.f32 %v1452, %v1351
    %v1461 = vmul.f32 %v1446, %v1453
    %v1462 = vadd.f32 %v1460, %v1461
    %v1463 = vtanh.pop %v1462
    %v1464 = vmul.f32 %v1459, %v1463
    %v1465 = vpack.c.bf16 %v1464, %v1464
    %1466 = vmatprep.subr.bf16.mxu0 %v654
    %1467 = vmatpush1.bf16.msra.mxu0 %v653
    %1468 = vmatprep.subr.bf16.mxu0 %v650
    %1469 = vmatpush1.bf16.msra.mxu0 %v649
    %1470 = vmatprep.subr.bf16.mxu0 %v646
    %1471 = vmatpush1.bf16.msra.mxu0 %v645
    %1472 = vmatprep.subr.bf16.mxu0 %v642
    %1473 = vmatpush1.bf16.msra.mxu0 %v641
    %1474 = vmatprep.subr.bf16.mxu0 %v638
    %1475 = vmatpush1.bf16.msra.mxu0 %v637
    %1476 = vmatprep.subr.bf16.mxu0 %v634
    %1477 = vmatpush1.bf16.msra.mxu0 %v633
    %1478 = vmatprep.subr.bf16.mxu0 %v630
    %1479 = vmatpush1.bf16.msra.mxu0 %v629
    %1480 = vmatprep.subr.bf16.mxu0 %v626
    %1481 = vmatpush1.bf16.msra.mxu0 %v625
    %1482 = vmatprep.subr.bf16.mxu0 0
    %1483 = vmatpush2.bf16.msra.mxu0 0
    %1484 = vmatprep.subr.bf16.mxu0 0
    %1485 = vmatpush2.bf16.msra.mxu0 0
    %1486 = vmatprep.subr.bf16.mxu0 0
    %1487 = vmatpush2.bf16.msra.mxu0 0
    %1488 = vmatprep.subr.bf16.mxu0 0
    %1489 = vmatpush2.bf16.msra.mxu0 0
    %1490 = vmatprep.subr.bf16.mxu0 0
    %1491 = vmatpush2.bf16.msra.mxu0 0
    %1492 = vmatprep.subr.bf16.mxu0 0
    %1493 = vmatpush2.bf16.msra.mxu0 0
    %1494 = vmatprep.subr.bf16.mxu0 0
    %1495 = vmatpush2.bf16.msra.mxu0 0
    %1496 = vmatprep.subr.bf16.mxu0 0
    %1497 = vmatpush2.bf16.msra.mxu0 0
    %1498 = vmatprep.mubr.bf16.mxu0 0
    %1499 = vmatmul.mubr.bf16.gmra.mxu0 %v1465
    %v1500 = vpop.f32.mrf.mxu0
    %v1501 = vadd.f32 0.0, %v1500
    %v1502 = vpop.f32.mrf.mxu0
    %v1503 = vadd.f32 0.0, %v1502
    %v1504 = vpop.f32.mrf.mxu0
    %v1505 = vpop.f32.mrf.mxu0
    %1506 = vdwg.mxu0
    %1507 = vmatprep.subr.bf16.mxu0 %v656
    %1508 = vmatpush1.bf16.msra.mxu0 %v655
    %1509 = vmatprep.subr.bf16.mxu0 %v652
    %1510 = vmatpush1.bf16.msra.mxu0 %v651
    %1511 = vmatprep.subr.bf16.mxu0 %v648
    %1512 = vmatpush1.bf16.msra.mxu0 %v647
    %1513 = vmatprep.subr.bf16.mxu0 %v644
    %1514 = vmatpush1.bf16.msra.mxu0 %v643
    %1515 = vmatprep.subr.bf16.mxu0 %v640
    %1516 = vmatpush1.bf16.msra.mxu0 %v639
    %1517 = vmatprep.subr.bf16.mxu0 %v636
    %1518 = vmatpush1.bf16.msra.mxu0 %v635
    %1519 = vmatprep.subr.bf16.mxu0 %v632
    %1520 = vmatpush1.bf16.msra.mxu0 %v631
    %1521 = vmatprep.subr.bf16.mxu0 %v628
    %1522 = vmatpush1.bf16.msra.mxu0 %v627
    %1523 = vmatprep.subr.bf16.mxu0 0
    %1524 = vmatpush2.bf16.msra.mxu0 0
    %1525 = vmatprep.subr.bf16.mxu0 0
    %1526 = vmatpush2.bf16.msra.mxu0 0
    %1527 = vmatprep.subr.bf16.mxu0 0
    %1528 = vmatpush2.bf16.msra.mxu0 0
    %1529 = vmatprep.subr.bf16.mxu0 0
    %1530 = vmatpush2.bf16.msra.mxu0 0
    %1531 = vmatprep.subr.bf16.mxu0 0
    %1532 = vmatpush2.bf16.msra.mxu0 0
    %1533 = vmatprep.subr.bf16.mxu0 0
    %1534 = vmatpush2.bf16.msra.mxu0 0
    %1535 = vmatprep.subr.bf16.mxu0 0
    %1536 = vmatpush2.bf16.msra.mxu0 0
    %1537 = vmatprep.subr.bf16.mxu0 0
    %1538 = vmatpush2.bf16.msra.mxu0 0
    %1539 = vmatprep.mubr.bf16.mxu0 0
    %1540 = vmatmul.mubr.bf16.gmra.mxu0 %v1465
    %v1541 = vpop.f32.mrf.mxu0
    %v1542 = vadd.f32 0.0, %v1541
    %v1543 = vpop.f32.mrf.mxu0
    %v1544 = vadd.f32 0.0, %v1543
    %v1545 = vpop.f32.mrf.mxu0
    %v1546 = vpop.f32.mrf.mxu0
    %1547 = vdwg.mxu0
    %v1548 = vadd.f32 %v417, %v1501
    %v1549 = vadd.f32 %v419, %v1503
    %v1550 = vadd.f32 %v490, %v1542
    %v1551 = vadd.f32 %v492, %v1544
    %v1552 = vxor.u32 %v1548, 2147483648
    %v1553 = vmul.f32 %v1552, 1.442695
    %v1554 = vpow.pop %v1553
    %v1555 = vadd.f32 %v1554, 1.0
    %v1556 = vrcp.pop %v1555
    %v1557 = vmul.f32 1.0, %v1556
    %v1558 = vxor.u32 %v1549, 2147483648
    %v1559 = vmul.f32 %v1558, 1.442695
    %v1560 = vpow.pop %v1559
    %v1561 = vadd.f32 %v1560, 1.0
    %v1562 = vrcp.pop %v1561
    %v1563 = vmul.f32 1.0, %v1562
    %v1564 = vtanh.pop %v1550
    %v1565 = vxor.u32 %v1551, 2147483648
    %v1566 = vmul.f32 %v1565, 1.442695
    %v1567 = vpow.pop %v1566
    %v1568 = vadd.f32 %v1567, 1.0
    %v1569 = vrcp.pop %v1568
    %v1570 = vmul.f32 1.0, %v1569
    %v1571 = vmul.f32 %v1563, %v1462
    %v1572 = vmul.f32 %v1557, %v1564
    %v1573 = vadd.f32 %v1571, %v1572
    %v1574 = vtanh.pop %v1573
    %v1575 = vmul.f32 %v1570, %v1574
    %v1576 = vpack.c.bf16 %v1575, %v1575
    %1577 = vst [vmem:[#allocation2] sm:$0xff] %v1575
    %1578 = vst [vmem:[#allocation3] sm:$0xff] %v1573
    %v1580 = vrot.slane %v910, 4
    %v1582 = vrot.slane %v1132, 4
    %v1584 = vrot.slane %v1354, 4
    %v1586 = vrot.slane %v1576, 4
    %vm1587 = vcmask 1043456
    %v1590 = vsel %vm1587, %v799, %v1580
    %v1594 = vsel %vm1587, %v1021, %v1582
    %v1598 = vsel %vm1587, %v1243, %v1584
    %v1602 = vsel %vm1587, %v1465, %v1586
    %v1604 = vld [vmem:[#allocation10] sm:$0xff]
    %v1605 = vld [vmem:[#allocation10 + $0x8] sm:$0xff]
    %v1606 = vld [vmem:[#allocation10 + $0x10] sm:$0xff]
    %v1607 = vld [vmem:[#allocation10 + $0x18] sm:$0xff]
    %v1608 = vld [vmem:[#allocation10 + $0x20] sm:$0xff]
    %v1609 = vld [vmem:[#allocation10 + $0x28] sm:$0xff]
    %v1610 = vld [vmem:[#allocation10 + $0x30] sm:$0xff]
    %v1611 = vld [vmem:[#allocation10 + $0x38] sm:$0xff]
    %v1612 = vld [vmem:[#allocation10 + $0x40] sm:$0xff]
    %v1613 = vld [vmem:[#allocation10 + $0x48] sm:$0xff]
    %v1614 = vld [vmem:[#allocation10 + $0x50] sm:$0xff]
    %v1615 = vld [vmem:[#allocation10 + $0x58] sm:$0xff]
    %v1616 = vld [vmem:[#allocation10 + $0x60] sm:$0xff]
    %v1617 = vld [vmem:[#allocation10 + $0x68] sm:$0xff]
    %v1618 = vld [vmem:[#allocation10 + $0x70] sm:$0xff]
    %v1619 = vld [vmem:[#allocation10 + $0x78] sm:$0xff]
    %v1620 = vld [vmem:[#allocation10 + $0x80] sm:$0xff]
    %v1621 = vld [vmem:[#allocation10 + $0x88] sm:$0xff]
    %v1622 = vld [vmem:[#allocation10 + $0x90] sm:$0xff]
    %v1623 = vld [vmem:[#allocation10 + $0x98] sm:$0xff]
    %v1624 = vld [vmem:[#allocation10 + $0xa0] sm:$0xff]
    %v1625 = vld [vmem:[#allocation10 + $0xa8] sm:$0xff]
    %v1626 = vld [vmem:[#allocation10 + $0xb0] sm:$0xff]
    %v1627 = vld [vmem:[#allocation10 + $0xb8] sm:$0xff]
    %v1628 = vld [vmem:[#allocation10 + $0xc0] sm:$0xff]
    %v1629 = vld [vmem:[#allocation10 + $0xc8] sm:$0xff]
    %v1630 = vld [vmem:[#allocation10 + $0xd0] sm:$0xff]
    %v1631 = vld [vmem:[#allocation10 + $0xd8] sm:$0xff]
    %v1632 = vld [vmem:[#allocation10 + $0xe0] sm:$0xff]
    %v1633 = vld [vmem:[#allocation10 + $0xe8] sm:$0xff]
    %v1634 = vld [vmem:[#allocation10 + $0xf0] sm:$0xff]
    %v1635 = vld [vmem:[#allocation10 + $0xf8] sm:$0xff]
    %v1636 = vld [vmem:[%s6] sm:$0xf]
    %v1638 = vlaneseq
    %v1639 = vshrl.u32 %v1638, 7
    %v1640 = vsub.s32 0, %v1639
    %v1641 = vrot.slane %v1636, %v1640
    %v1642 = vlaneseq
    %v1643 = vshrl.u32 %v1642, 7
    %v1644 = vsub.s32 1, %v1643
    %v1645 = vrot.slane %v1636, %v1644
    %v1646 = vlaneseq
    %v1647 = vshrl.u32 %v1646, 7
    %v1648 = vsub.s32 2, %v1647
    %v1649 = vrot.slane %v1636, %v1648
    %v1650 = vlaneseq
    %v1651 = vshrl.u32 %v1650, 7
    %v1652 = vsub.s32 3, %v1651
    %v1653 = vrot.slane %v1636, %v1652
    %v1690 = vunpack.c.l.b16 %v1604
    %v1691 = vunpack.c.h.b16 %v1604
    %v1692 = vunpack.c.l.b16 %v1605
    %v1693 = vunpack.c.h.b16 %v1605
    %v1694 = vunpack.c.l.b16 %v1606
    %v1695 = vunpack.c.h.b16 %v1606
    %v1696 = vunpack.c.l.b16 %v1607
    %v1697 = vunpack.c.h.b16 %v1607
    %v1698 = vunpack.c.l.b16 %v1608
    %v1699 = vunpack.c.h.b16 %v1608
    %v1700 = vunpack.c.l.b16 %v1609
    %v1701 = vunpack.c.h.b16 %v1609
    %v1702 = vunpack.c.l.b16 %v1610
    %v1703 = vunpack.c.h.b16 %v1610
    %v1704 = vunpack.c.l.b16 %v1611
    %v1705 = vunpack.c.h.b16 %v1611
    %v1706 = vunpack.c.l.b16 %v1612
    %v1707 = vunpack.c.h.b16 %v1612
    %v1708 = vunpack.c.l.b16 %v1613
    %v1709 = vunpack.c.h.b16 %v1613
    %v1710 = vunpack.c.l.b16 %v1614
    %v1711 = vunpack.c.h.b16 %v1614
    %v1712 = vunpack.c.l.b16 %v1615
    %v1713 = vunpack.c.h.b16 %v1615
    %v1714 = vunpack.c.l.b16 %v1616
    %v1715 = vunpack.c.h.b16 %v1616
    %v1716 = vunpack.c.l.b16 %v1617
    %v1717 = vunpack.c.h.b16 %v1617
    %v1718 = vunpack.c.l.b16 %v1618
    %v1719 = vunpack.c.h.b16 %v1618
    %v1720 = vunpack.c.l.b16 %v1619
    %v1721 = vunpack.c.h.b16 %v1619
    %v1722 = vunpack.c.l.b16 %v1620
    %v1723 = vunpack.c.h.b16 %v1620
    %v1724 = vunpack.c.l.b16 %v1621
    %v1725 = vunpack.c.h.b16 %v1621
    %v1726 = vunpack.c.l.b16 %v1622
    %v1727 = vunpack.c.h.b16 %v1622
    %v1728 = vunpack.c.l.b16 %v1623
    %v1729 = vunpack.c.h.b16 %v1623
    %v1730 = vunpack.c.l.b16 %v1624
    %v1731 = vunpack.c.h.b16 %v1624
    %v1732 = vunpack.c.l.b16 %v1625
    %v1733 = vunpack.c.h.b16 %v1625
    %v1734 = vunpack.c.l.b16 %v1626
    %v1735 = vunpack.c.h.b16 %v1626
    %v1736 = vunpack.c.l.b16 %v1627
    %v1737 = vunpack.c.h.b16 %v1627
    %v1738 = vunpack.c.l.b16 %v1628
    %v1739 = vunpack.c.h.b16 %v1628
    %v1740 = vunpack.c.l.b16 %v1629
    %v1741 = vunpack.c.h.b16 %v1629
    %v1742 = vunpack.c.l.b16 %v1630
    %v1743 = vunpack.c.h.b16 %v1630
    %v1744 = vunpack.c.l.b16 %v1631
    %v1745 = vunpack.c.h.b16 %v1631
    %v1746 = vunpack.c.l.b16 %v1632
    %v1747 = vunpack.c.h.b16 %v1632
    %v1748 = vunpack.c.l.b16 %v1633
    %v1749 = vunpack.c.h.b16 %v1633
    %v1750 = vunpack.c.l.b16 %v1634
    %v1751 = vunpack.c.h.b16 %v1634
    %v1752 = vunpack.c.l.b16 %v1635
    %v1753 = vunpack.c.h.b16 %v1635
    %v1754 = vpack.c.b16 %v1694, %v1690
    %v1755 = vpack.c.b16 %v1695, %v1691
    %v1756 = vpack.c.b16 %v1696, %v1692
    %v1757 = vpack.c.b16 %v1697, %v1693
    %v1758 = vpack.c.b16 %v1702, %v1698
    %v1759 = vpack.c.b16 %v1703, %v1699
    %v1760 = vpack.c.b16 %v1704, %v1700
    %v1761 = vpack.c.b16 %v1705, %v1701
    %v1762 = vpack.c.b16 %v1710, %v1706
    %v1763 = vpack.c.b16 %v1711, %v1707
    %v1764 = vpack.c.b16 %v1712, %v1708
    %v1765 = vpack.c.b16 %v1713, %v1709
    %v1766 = vpack.c.b16 %v1718, %v1714
    %v1767 = vpack.c.b16 %v1719, %v1715
    %v1768 = vpack.c.b16 %v1720, %v1716
    %v1769 = vpack.c.b16 %v1721, %v1717
    %v1770 = vpack.c.b16 %v1726, %v1722
    %v1771 = vpack.c.b16 %v1727, %v1723
    %v1772 = vpack.c.b16 %v1728, %v1724
    %v1773 = vpack.c.b16 %v1729, %v1725
    %v1774 = vpack.c.b16 %v1734, %v1730
    %v1775 = vpack.c.b16 %v1735, %v1731
    %v1776 = vpack.c.b16 %v1736, %v1732
    %v1777 = vpack.c.b16 %v1737, %v1733
    %v1778 = vpack.c.b16 %v1742, %v1738
    %v1779 = vpack.c.b16 %v1743, %v1739
    %v1780 = vpack.c.b16 %v1744, %v1740
    %v1781 = vpack.c.b16 %v1745, %v1741
    %v1782 = vpack.c.b16 %v1750, %v1746
    %v1783 = vpack.c.b16 %v1751, %v1747
    %v1784 = vpack.c.b16 %v1752, %v1748
    %v1785 = vpack.c.b16 %v1753, %v1749
    %1818 = vmatprep.subr.bf16.mxu0 %v1783
    %1819 = vmatpush1.bf16.msra.mxu0 %v1782
    %1820 = vmatprep.subr.bf16.mxu0 %v1779
    %1821 = vmatpush1.bf16.msra.mxu0 %v1778
    %1822 = vmatprep.subr.bf16.mxu0 %v1775
    %1823 = vmatpush1.bf16.msra.mxu0 %v1774
    %1824 = vmatprep.subr.bf16.mxu0 %v1771
    %1825 = vmatpush1.bf16.msra.mxu0 %v1770
    %1826 = vmatprep.subr.bf16.mxu0 %v1767
    %1827 = vmatpush1.bf16.msra.mxu0 %v1766
    %1828 = vmatprep.subr.bf16.mxu0 %v1763
    %1829 = vmatpush1.bf16.msra.mxu0 %v1762
    %1830 = vmatprep.subr.bf16.mxu0 %v1759
    %1831 = vmatpush1.bf16.msra.mxu0 %v1758
    %1832 = vmatprep.subr.bf16.mxu0 %v1755
    %1833 = vmatpush1.bf16.msra.mxu0 %v1754
    %1834 = vmatprep.subr.bf16.mxu0 0
    %1835 = vmatpush2.bf16.msra.mxu0 0
    %1836 = vmatprep.subr.bf16.mxu0 0
    %1837 = vmatpush2.bf16.msra.mxu0 0
    %1838 = vmatprep.subr.bf16.mxu0 0
    %1839 = vmatpush2.bf16.msra.mxu0 0
    %1840 = vmatprep.subr.bf16.mxu0 0
    %1841 = vmatpush2.bf16.msra.mxu0 0
    %1842 = vmatprep.subr.bf16.mxu0 0
    %1843 = vmatpush2.bf16.msra.mxu0 0
    %1844 = vmatprep.subr.bf16.mxu0 0
    %1845 = vmatpush2.bf16.msra.mxu0 0
    %1846 = vmatprep.subr.bf16.mxu0 0
    %1847 = vmatpush2.bf16.msra.mxu0 0
    %1848 = vmatprep.subr.bf16.mxu0 0
    %1849 = vmatpush2.bf16.msra.mxu0 0
    %1850 = vmatprep.mubr.bf16.mxu0 0
    %1851 = vmatmul.mubr.bf16.gmra.mxu0 %v1590
    %v1852 = vpop.f32.mrf.mxu0
    %v1853 = vadd.f32 %v1641, %v1852
    %v1854 = vpop.f32.mrf.mxu0
    %v1855 = vadd.f32 %v1645, %v1854
    %v1856 = vpop.f32.mrf.mxu0
    %v1857 = vadd.f32 %v1641, %v1856
    %v1858 = vpop.f32.mrf.mxu0
    %v1859 = vadd.f32 %v1645, %v1858
    %1860 = vmatprep.mubr.bf16.mxu0 0
    %1861 = vmatmul.mubr.bf16.gmra.mxu0 %v1594
    %v1862 = vpop.f32.mrf.mxu0
    %v1863 = vadd.f32 %v1641, %v1862
    %v1864 = vpop.f32.mrf.mxu0
    %v1865 = vadd.f32 %v1645, %v1864
    %v1866 = vpop.f32.mrf.mxu0
    %v1867 = vadd.f32 %v1641, %v1866
    %v1868 = vpop.f32.mrf.mxu0
    %v1869 = vadd.f32 %v1645, %v1868
    %1870 = vmatprep.mubr.bf16.mxu0 0
    %1871 = vmatmul.mubr.bf16.gmra.mxu0 %v1598
    %v1872 = vpop.f32.mrf.mxu0
    %v1873 = vadd.f32 %v1641, %v1872
    %v1874 = vpop.f32.mrf.mxu0
    %v1875 = vadd.f32 %v1645, %v1874
    %v1876 = vpop.f32.mrf.mxu0
    %v1877 = vadd.f32 %v1641, %v1876
    %v1878 = vpop.f32.mrf.mxu0
    %v1879 = vadd.f32 %v1645, %v1878
    %1880 = vmatprep.mubr.bf16.mxu0 0
    %1881 = vmatmul.mubr.bf16.gmra.mxu0 %v1602
    %v1882 = vpop.f32.mrf.mxu0
    %v1883 = vadd.f32 %v1641, %v1882
    %v1884 = vpop.f32.mrf.mxu0
    %v1885 = vadd.f32 %v1645, %v1884
    %v1886 = vpop.f32.mrf.mxu0
    %v1887 = vadd.f32 %v1641, %v1886
    %v1888 = vpop.f32.mrf.mxu0
    %v1889 = vadd.f32 %v1645, %v1888
    %1890 = vdwg.mxu0
    %1891 = vmatprep.subr.bf16.mxu0 %v1785
    %1892 = vmatpush1.bf16.msra.mxu0 %v1784
    %1893 = vmatprep.subr.bf16.mxu0 %v1781
    %1894 = vmatpush1.bf16.msra.mxu0 %v1780
    %1895 = vmatprep.subr.bf16.mxu0 %v1777
    %1896 = vmatpush1.bf16.msra.mxu0 %v1776
    %1897 = vmatprep.subr.bf16.mxu0 %v1773
    %1898 = vmatpush1.bf16.msra.mxu0 %v1772
    %1899 = vmatprep.subr.bf16.mxu0 %v1769
    %1900 = vmatpush1.bf16.msra.mxu0 %v1768
    %1901 = vmatprep.subr.bf16.mxu0 %v1765
    %1902 = vmatpush1.bf16.msra.mxu0 %v1764
    %1903 = vmatprep.subr.bf16.mxu0 %v1761
    %1904 = vmatpush1.bf16.msra.mxu0 %v1760
    %1905 = vmatprep.subr.bf16.mxu0 %v1757
    %1906 = vmatpush1.bf16.msra.mxu0 %v1756
    %1907 = vmatprep.subr.bf16.mxu0 0
    %1908 = vmatpush2.bf16.msra.mxu0 0
    %1909 = vmatprep.subr.bf16.mxu0 0
    %1910 = vmatpush2.bf16.msra.mxu0 0
    %1911 = vmatprep.subr.bf16.mxu0 0
    %1912 = vmatpush2.bf16.msra.mxu0 0
    %1913 = vmatprep.subr.bf16.mxu0 0
    %1914 = vmatpush2.bf16.msra.mxu0 0
    %1915 = vmatprep.subr.bf16.mxu0 0
    %1916 = vmatpush2.bf16.msra.mxu0 0
    %1917 = vmatprep.subr.bf16.mxu0 0
    %1918 = vmatpush2.bf16.msra.mxu0 0
    %1919 = vmatprep.subr.bf16.mxu0 0
    %1920 = vmatpush2.bf16.msra.mxu0 0
    %1921 = vmatprep.subr.bf16.mxu0 0
    %1922 = vmatpush2.bf16.msra.mxu0 0
    %1923 = vmatprep.mubr.bf16.mxu0 0
    %1924 = vmatmul.mubr.bf16.gmra.mxu0 %v1590
    %v1925 = vpop.f32.mrf.mxu0
    %v1926 = vadd.f32 %v1649, %v1925
    %v1927 = vpop.f32.mrf.mxu0
    %v1928 = vadd.f32 %v1653, %v1927
    %v1929 = vpop.f32.mrf.mxu0
    %v1930 = vadd.f32 %v1649, %v1929
    %v1931 = vpop.f32.mrf.mxu0
    %v1932 = vadd.f32 %v1653, %v1931
    %1933 = vmatprep.mubr.bf16.mxu0 0
    %1934 = vmatmul.mubr.bf16.gmra.mxu0 %v1594
    %v1935 = vpop.f32.mrf.mxu0
    %v1936 = vadd.f32 %v1649, %v1935
    %v1937 = vpop.f32.mrf.mxu0
    %v1938 = vadd.f32 %v1653, %v1937
    %v1939 = vpop.f32.mrf.mxu0
    %v1940 = vadd.f32 %v1649, %v1939
    %v1941 = vpop.f32.mrf.mxu0
    %v1942 = vadd.f32 %v1653, %v1941
    %1943 = vmatprep.mubr.bf16.mxu0 0
    %1944 = vmatmul.mubr.bf16.gmra.mxu0 %v1598
    %v1945 = vpop.f32.mrf.mxu0
    %v1946 = vadd.f32 %v1649, %v1945
    %v1947 = vpop.f32.mrf.mxu0
    %v1948 = vadd.f32 %v1653, %v1947
    %v1949 = vpop.f32.mrf.mxu0
    %v1950 = vadd.f32 %v1649, %v1949
    %v1951 = vpop.f32.mrf.mxu0
    %v1952 = vadd.f32 %v1653, %v1951
    %1953 = vmatprep.mubr.bf16.mxu0 0
    %1954 = vmatmul.mubr.bf16.gmra.mxu0 %v1602
    %v1955 = vpop.f32.mrf.mxu0
    %v1956 = vadd.f32 %v1649, %v1955
    %v1957 = vpop.f32.mrf.mxu0
    %v1958 = vadd.f32 %v1653, %v1957
    %v1959 = vpop.f32.mrf.mxu0
    %v1960 = vadd.f32 %v1649, %v1959
    %v1961 = vpop.f32.mrf.mxu0
    %v1962 = vadd.f32 %v1653, %v1961
    %1963 = vdwg.mxu0
    %v1964 = vld [vmem:[#allocation11] sm:$0xff]
    %v1965 = vld [vmem:[#allocation11 + $0x8] sm:$0xff]
    %v1966 = vld [vmem:[#allocation11 + $0x10] sm:$0xff]
    %v1967 = vld [vmem:[#allocation11 + $0x18] sm:$0xff]
    %v1968 = vld [vmem:[#allocation11 + $0x20] sm:$0xff]
    %v1969 = vld [vmem:[#allocation11 + $0x28] sm:$0xff]
    %v1970 = vld [vmem:[#allocation11 + $0x30] sm:$0xff]
    %v1971 = vld [vmem:[#allocation11 + $0x38] sm:$0xff]
    %v1972 = vld [vmem:[#allocation11 + $0x40] sm:$0xff]
    %v1973 = vld [vmem:[#allocation11 + $0x48] sm:$0xff]
    %v1974 = vld [vmem:[#allocation11 + $0x50] sm:$0xff]
    %v1975 = vld [vmem:[#allocation11 + $0x58] sm:$0xff]
    %v1976 = vld [vmem:[#allocation11 + $0x60] sm:$0xff]
    %v1977 = vld [vmem:[#allocation11 + $0x68] sm:$0xff]
    %v1978 = vld [vmem:[#allocation11 + $0x70] sm:$0xff]
    %v1979 = vld [vmem:[#allocation11 + $0x78] sm:$0xff]
    %v1980 = vld [vmem:[#allocation11 + $0x80] sm:$0xff]
    %v1981 = vld [vmem:[#allocation11 + $0x88] sm:$0xff]
    %v1982 = vld [vmem:[#allocation11 + $0x90] sm:$0xff]
    %v1983 = vld [vmem:[#allocation11 + $0x98] sm:$0xff]
    %v1984 = vld [vmem:[#allocation11 + $0xa0] sm:$0xff]
    %v1985 = vld [vmem:[#allocation11 + $0xa8] sm:$0xff]
    %v1986 = vld [vmem:[#allocation11 + $0xb0] sm:$0xff]
    %v1987 = vld [vmem:[#allocation11 + $0xb8] sm:$0xff]
    %v1988 = vld [vmem:[#allocation11 + $0xc0] sm:$0xff]
    %v1989 = vld [vmem:[#allocation11 + $0xc8] sm:$0xff]
    %v1990 = vld [vmem:[#allocation11 + $0xd0] sm:$0xff]
    %v1991 = vld [vmem:[#allocation11 + $0xd8] sm:$0xff]
    %v1992 = vld [vmem:[#allocation11 + $0xe0] sm:$0xff]
    %v1993 = vld [vmem:[#allocation11 + $0xe8] sm:$0xff]
    %v1994 = vld [vmem:[#allocation11 + $0xf0] sm:$0xff]
    %v1995 = vld [vmem:[#allocation11 + $0xf8] sm:$0xff]
    %v1996 = vld [vmem:[#allocation4] sm:$0xff]
    %v1997 = vld [vmem:[#allocation5] sm:$0xff]
    %v1998 = vpack.c.bf16 %v1996, %v1996
    %v2031 = vunpack.c.l.b16 %v1964
    %v2032 = vunpack.c.h.b16 %v1964
    %v2033 = vunpack.c.l.b16 %v1965
    %v2034 = vunpack.c.h.b16 %v1965
    %v2035 = vunpack.c.l.b16 %v1966
    %v2036 = vunpack.c.h.b16 %v1966
    %v2037 = vunpack.c.l.b16 %v1967
    %v2038 = vunpack.c.h.b16 %v1967
    %v2039 = vunpack.c.l.b16 %v1968
    %v2040 = vunpack.c.h.b16 %v1968
    %v2041 = vunpack.c.l.b16 %v1969
    %v2042 = vunpack.c.h.b16 %v1969
    %v2043 = vunpack.c.l.b16 %v1970
    %v2044 = vunpack.c.h.b16 %v1970
    %v2045 = vunpack.c.l.b16 %v1971
    %v2046 = vunpack.c.h.b16 %v1971
    %v2047 = vunpack.c.l.b16 %v1972
    %v2048 = vunpack.c.h.b16 %v1972
    %v2049 = vunpack.c.l.b16 %v1973
    %v2050 = vunpack.c.h.b16 %v1973
    %v2051 = vunpack.c.l.b16 %v1974
    %v2052 = vunpack.c.h.b16 %v1974
    %v2053 = vunpack.c.l.b16 %v1975
    %v2054 = vunpack.c.h.b16 %v1975
    %v2055 = vunpack.c.l.b16 %v1976
    %v2056 = vunpack.c.h.b16 %v1976
    %v2057 = vunpack.c.l.b16 %v1977
    %v2058 = vunpack.c.h.b16 %v1977
    %v2059 = vunpack.c.l.b16 %v1978
    %v2060 = vunpack.c.h.b16 %v1978
    %v2061 = vunpack.c.l.b16 %v1979
    %v2062 = vunpack.c.h.b16 %v1979
    %v2063 = vunpack.c.l.b16 %v1980
    %v2064 = vunpack.c.h.b16 %v1980
    %v2065 = vunpack.c.l.b16 %v1981
    %v2066 = vunpack.c.h.b16 %v1981
    %v2067 = vunpack.c.l.b16 %v1982
    %v2068 = vunpack.c.h.b16 %v1982
    %v2069 = vunpack.c.l.b16 %v1983
    %v2070 = vunpack.c.h.b16 %v1983
    %v2071 = vunpack.c.l.b16 %v1984
    %v2072 = vunpack.c.h.b16 %v1984
    %v2073 = vunpack.c.l.b16 %v1985
    %v2074 = vunpack.c.h.b16 %v1985
    %v2075 = vunpack.c.l.b16 %v1986
    %v2076 = vunpack.c.h.b16 %v1986
    %v2077 = vunpack.c.l.b16 %v1987
    %v2078 = vunpack.c.h.b16 %v1987
    %v2079 = vunpack.c.l.b16 %v1988
    %v2080 = vunpack.c.h.b16 %v1988
    %v2081 = vunpack.c.l.b16 %v1989
    %v2082 = vunpack.c.h.b16 %v1989
    %v2083 = vunpack.c.l.b16 %v1990
    %v2084 = vunpack.c.h.b16 %v1990
    %v2085 = vunpack.c.l.b16 %v1991
    %v2086 = vunpack.c.h.b16 %v1991
    %v2087 = vunpack.c.l.b16 %v1992
    %v2088 = vunpack.c.h.b16 %v1992
    %v2089 = vunpack.c.l.b16 %v1993
    %v2090 = vunpack.c.h.b16 %v1993
    %v2091 = vunpack.c.l.b16 %v1994
    %v2092 = vunpack.c.h.b16 %v1994
    %v2093 = vunpack.c.l.b16 %v1995
    %v2094 = vunpack.c.h.b16 %v1995
    %v2095 = vpack.c.b16 %v2035, %v2031
    %v2096 = vpack.c.b16 %v2036, %v2032
    %v2097 = vpack.c.b16 %v2037, %v2033
    %v2098 = vpack.c.b16 %v2038, %v2034
    %v2099 = vpack.c.b16 %v2043, %v2039
    %v2100 = vpack.c.b16 %v2044, %v2040
    %v2101 = vpack.c.b16 %v2045, %v2041
    %v2102 = vpack.c.b16 %v2046, %v2042
    %v2103 = vpack.c.b16 %v2051, %v2047
    %v2104 = vpack.c.b16 %v2052, %v2048
    %v2105 = vpack.c.b16 %v2053, %v2049
    %v2106 = vpack.c.b16 %v2054, %v2050
    %v2107 = vpack.c.b16 %v2059, %v2055
    %v2108 = vpack.c.b16 %v2060, %v2056
    %v2109 = vpack.c.b16 %v2061, %v2057
    %v2110 = vpack.c.b16 %v2062, %v2058
    %v2111 = vpack.c.b16 %v2067, %v2063
    %v2112 = vpack.c.b16 %v2068, %v2064
    %v2113 = vpack.c.b16 %v2069, %v2065
    %v2114 = vpack.c.b16 %v2070, %v2066
    %v2115 = vpack.c.b16 %v2075, %v2071
    %v2116 = vpack.c.b16 %v2076, %v2072
    %v2117 = vpack.c.b16 %v2077, %v2073
    %v2118 = vpack.c.b16 %v2078, %v2074
    %v2119 = vpack.c.b16 %v2083, %v2079
    %v2120 = vpack.c.b16 %v2084, %v2080
    %v2121 = vpack.c.b16 %v2085, %v2081
    %v2122 = vpack.c.b16 %v2086, %v2082
    %v2123 = vpack.c.b16 %v2091, %v2087
    %v2124 = vpack.c.b16 %v2092, %v2088
    %v2125 = vpack.c.b16 %v2093, %v2089
    %v2126 = vpack.c.b16 %v2094, %v2090
    %2159 = vmatprep.subr.bf16.mxu0 %v2124
    %2160 = vmatpush1.bf16.msra.mxu0 %v2123
    %2161 = vmatprep.subr.bf16.mxu0 %v2120
    %2162 = vmatpush1.bf16.msra.mxu0 %v2119
    %2163 = vmatprep.subr.bf16.mxu0 %v2116
    %2164 = vmatpush1.bf16.msra.mxu0 %v2115
    %2165 = vmatprep.subr.bf16.mxu0 %v2112
    %2166 = vmatpush1.bf16.msra.mxu0 %v2111
    %2167 = vmatprep.subr.bf16.mxu0 %v2108
    %2168 = vmatpush1.bf16.msra.mxu0 %v2107
    %2169 = vmatprep.subr.bf16.mxu0 %v2104
    %2170 = vmatpush1.bf16.msra.mxu0 %v2103
    %2171 = vmatprep.subr.bf16.mxu0 %v2100
    %2172 = vmatpush1.bf16.msra.mxu0 %v2099
    %2173 = vmatprep.subr.bf16.mxu0 %v2096
    %2174 = vmatpush1.bf16.msra.mxu0 %v2095
    %2175 = vmatprep.subr.bf16.mxu0 0
    %2176 = vmatpush2.bf16.msra.mxu0 0
    %2177 = vmatprep.subr.bf16.mxu0 0
    %2178 = vmatpush2.bf16.msra.mxu0 0
    %2179 = vmatprep.subr.bf16.mxu0 0
    %2180 = vmatpush2.bf16.msra.mxu0 0
    %2181 = vmatprep.subr.bf16.mxu0 0
    %2182 = vmatpush2.bf16.msra.mxu0 0
    %2183 = vmatprep.subr.bf16.mxu0 0
    %2184 = vmatpush2.bf16.msra.mxu0 0
    %2185 = vmatprep.subr.bf16.mxu0 0
    %2186 = vmatpush2.bf16.msra.mxu0 0
    %2187 = vmatprep.subr.bf16.mxu0 0
    %2188 = vmatpush2.bf16.msra.mxu0 0
    %2189 = vmatprep.subr.bf16.mxu0 0
    %2190 = vmatpush2.bf16.msra.mxu0 0
    %2191 = vmatprep.mubr.bf16.mxu0 0
    %2192 = vmatmul.mubr.bf16.gmra.mxu0 %v1998
    %v2193 = vpop.f32.mrf.mxu0
    %v2194 = vadd.f32 0.0, %v2193
    %v2195 = vpop.f32.mrf.mxu0
    %v2196 = vadd.f32 0.0, %v2195
    %v2197 = vpop.f32.mrf.mxu0
    %v2198 = vpop.f32.mrf.mxu0
    %2199 = vdwg.mxu0
    %2200 = vmatprep.subr.bf16.mxu0 %v2126
    %2201 = vmatpush1.bf16.msra.mxu0 %v2125
    %2202 = vmatprep.subr.bf16.mxu0 %v2122
    %2203 = vmatpush1.bf16.msra.mxu0 %v2121
    %2204 = vmatprep.subr.bf16.mxu0 %v2118
    %2205 = vmatpush1.bf16.msra.mxu0 %v2117
    %2206 = vmatprep.subr.bf16.mxu0 %v2114
    %2207 = vmatpush1.bf16.msra.mxu0 %v2113
    %2208 = vmatprep.subr.bf16.mxu0 %v2110
    %2209 = vmatpush1.bf16.msra.mxu0 %v2109
    %2210 = vmatprep.subr.bf16.mxu0 %v2106
    %2211 = vmatpush1.bf16.msra.mxu0 %v2105
    %2212 = vmatprep.subr.bf16.mxu0 %v2102
    %2213 = vmatpush1.bf16.msra.mxu0 %v2101
    %2214 = vmatprep.subr.bf16.mxu0 %v2098
    %2215 = vmatpush1.bf16.msra.mxu0 %v2097
    %2216 = vmatprep.subr.bf16.mxu0 0
    %2217 = vmatpush2.bf16.msra.mxu0 0
    %2218 = vmatprep.subr.bf16.mxu0 0
    %2219 = vmatpush2.bf16.msra.mxu0 0
    %2220 = vmatprep.subr.bf16.mxu0 0
    %2221 = vmatpush2.bf16.msra.mxu0 0
    %2222 = vmatprep.subr.bf16.mxu0 0
    %2223 = vmatpush2.bf16.msra.mxu0 0
    %2224 = vmatprep.subr.bf16.mxu0 0
    %2225 = vmatpush2.bf16.msra.mxu0 0
    %2226 = vmatprep.subr.bf16.mxu0 0
    %2227 = vmatpush2.bf16.msra.mxu0 0
    %2228 = vmatprep.subr.bf16.mxu0 0
    %2229 = vmatpush2.bf16.msra.mxu0 0
    %2230 = vmatprep.subr.bf16.mxu0 0
    %2231 = vmatpush2.bf16.msra.mxu0 0
    %2232 = vmatprep.mubr.bf16.mxu0 0
    %2233 = vmatmul.mubr.bf16.gmra.mxu0 %v1998
    %v2234 = vpop.f32.mrf.mxu0
    %v2235 = vadd.f32 0.0, %v2234
    %v2236 = vpop.f32.mrf.mxu0
    %v2237 = vadd.f32 0.0, %v2236
    %v2238 = vpop.f32.mrf.mxu0
    %v2239 = vpop.f32.mrf.mxu0
    %2240 = vdwg.mxu0
    %v2241 = vadd.f32 %v1853, %v2194
    %v2242 = vadd.f32 %v1855, %v2196
    %v2243 = vadd.f32 %v1926, %v2235
    %v2244 = vadd.f32 %v1928, %v2237
    %v2245 = vxor.u32 %v2241, 2147483648
    %v2246 = vmul.f32 %v2245, 1.442695
    %v2247 = vpow.pop %v2246
    %v2248 = vadd.f32 %v2247, 1.0
    %v2249 = vrcp.pop %v2248
    %v2250 = vmul.f32 1.0, %v2249
    %v2251 = vxor.u32 %v2242, 2147483648
    %v2252 = vmul.f32 %v2251, 1.442695
    %v2253 = vpow.pop %v2252
    %v2254 = vadd.f32 %v2253, 1.0
    %v2255 = vrcp.pop %v2254
    %v2256 = vmul.f32 1.0, %v2255
    %v2257 = vtanh.pop %v2243
    %v2258 = vxor.u32 %v2244, 2147483648
    %v2259 = vmul.f32 %v2258, 1.442695
    %v2260 = vpow.pop %v2259
    %v2261 = vadd.f32 %v2260, 1.0
    %v2262 = vrcp.pop %v2261
    %v2263 = vmul.f32 1.0, %v2262
    %v2264 = vmul.f32 %v2256, %v1997
    %v2265 = vmul.f32 %v2250, %v2257
    %v2266 = vadd.f32 %v2264, %v2265
    %v2267 = vtanh.pop %v2266
    %v2268 = vmul.f32 %v2263, %v2267
    %v2269 = vpack.c.bf16 %v2268, %v2268
    %2270 = vmatprep.subr.bf16.mxu0 %v2124
    %2271 = vmatpush1.bf16.msra.mxu0 %v2123
    %2272 = vmatprep.subr.bf16.mxu0 %v2120
    %2273 = vmatpush1.bf16.msra.mxu0 %v2119
    %2274 = vmatprep.subr.bf16.mxu0 %v2116
    %2275 = vmatpush1.bf16.msra.mxu0 %v2115
    %2276 = vmatprep.subr.bf16.mxu0 %v2112
    %2277 = vmatpush1.bf16.msra.mxu0 %v2111
    %2278 = vmatprep.subr.bf16.mxu0 %v2108
    %2279 = vmatpush1.bf16.msra.mxu0 %v2107
    %2280 = vmatprep.subr.bf16.mxu0 %v2104
    %2281 = vmatpush1.bf16.msra.mxu0 %v2103
    %2282 = vmatprep.subr.bf16.mxu0 %v2100
    %2283 = vmatpush1.bf16.msra.mxu0 %v2099
    %2284 = vmatprep.subr.bf16.mxu0 %v2096
    %2285 = vmatpush1.bf16.msra.mxu0 %v2095
    %2286 = vmatprep.subr.bf16.mxu0 0
    %2287 = vmatpush2.bf16.msra.mxu0 0
    %2288 = vmatprep.subr.bf16.mxu0 0
    %2289 = vmatpush2.bf16.msra.mxu0 0
    %2290 = vmatprep.subr.bf16.mxu0 0
    %2291 = vmatpush2.bf16.msra.mxu0 0
    %2292 = vmatprep.subr.bf16.mxu0 0
    %2293 = vmatpush2.bf16.msra.mxu0 0
    %2294 = vmatprep.subr.bf16.mxu0 0
    %2295 = vmatpush2.bf16.msra.mxu0 0
    %2296 = vmatprep.subr.bf16.mxu0 0
    %2297 = vmatpush2.bf16.msra.mxu0 0
    %2298 = vmatprep.subr.bf16.mxu0 0
    %2299 = vmatpush2.bf16.msra.mxu0 0
    %2300 = vmatprep.subr.bf16.mxu0 0
    %2301 = vmatpush2.bf16.msra.mxu0 0
    %2302 = vmatprep.mubr.bf16.mxu0 0
    %2303 = vmatmul.mubr.bf16.gmra.mxu0 %v2269
    %v2304 = vpop.f32.mrf.mxu0
    %v2305 = vadd.f32 0.0, %v2304
    %v2306 = vpop.f32.mrf.mxu0
    %v2307 = vadd.f32 0.0, %v2306
    %v2308 = vpop.f32.mrf.mxu0
    %v2309 = vpop.f32.mrf.mxu0
    %2310 = vdwg.mxu0
    %2311 = vmatprep.subr.bf16.mxu0 %v2126
    %2312 = vmatpush1.bf16.msra.mxu0 %v2125
    %2313 = vmatprep.subr.bf16.mxu0 %v2122
    %2314 = vmatpush1.bf16.msra.mxu0 %v2121
    %2315 = vmatprep.subr.bf16.mxu0 %v2118
    %2316 = vmatpush1.bf16.msra.mxu0 %v2117
    %2317 = vmatprep.subr.bf16.mxu0 %v2114
    %2318 = vmatpush1.bf16.msra.mxu0 %v2113
    %2319 = vmatprep.subr.bf16.mxu0 %v2110
    %2320 = vmatpush1.bf16.msra.mxu0 %v2109
    %2321 = vmatprep.subr.bf16.mxu0 %v2106
    %2322 = vmatpush1.bf16.msra.mxu0 %v2105
    %2323 = vmatprep.subr.bf16.mxu0 %v2102
    %2324 = vmatpush1.bf16.msra.mxu0 %v2101
    %2325 = vmatprep.subr.bf16.mxu0 %v2098
    %2326 = vmatpush1.bf16.msra.mxu0 %v2097
    %2327 = vmatprep.subr.bf16.mxu0 0
    %2328 = vmatpush2.bf16.msra.mxu0 0
    %2329 = vmatprep.subr.bf16.mxu0 0
    %2330 = vmatpush2.bf16.msra.mxu0 0
    %2331 = vmatprep.subr.bf16.mxu0 0
    %2332 = vmatpush2.bf16.msra.mxu0 0
    %2333 = vmatprep.subr.bf16.mxu0 0
    %2334 = vmatpush2.bf16.msra.mxu0 0
    %2335 = vmatprep.subr.bf16.mxu0 0
    %2336 = vmatpush2.bf16.msra.mxu0 0
    %2337 = vmatprep.subr.bf16.mxu0 0
    %2338 = vmatpush2.bf16.msra.mxu0 0
    %2339 = vmatprep.subr.bf16.mxu0 0
    %2340 = vmatpush2.bf16.msra.mxu0 0
    %2341 = vmatprep.subr.bf16.mxu0 0
    %2342 = vmatpush2.bf16.msra.mxu0 0
    %2343 = vmatprep.mubr.bf16.mxu0 0
    %2344 = vmatmul.mubr.bf16.gmra.mxu0 %v2269
    %v2345 = vpop.f32.mrf.mxu0
    %v2346 = vadd.f32 0.0, %v2345
    %v2347 = vpop.f32.mrf.mxu0
    %v2348 = vadd.f32 0.0, %v2347
    %v2349 = vpop.f32.mrf.mxu0
    %v2350 = vpop.f32.mrf.mxu0
    %2351 = vdwg.mxu0
    %v2352 = vadd.f32 %v1857, %v2305
    %v2353 = vadd.f32 %v1859, %v2307
    %v2354 = vadd.f32 %v1930, %v2346
    %v2355 = vadd.f32 %v1932, %v2348
    %v2356 = vxor.u32 %v2352, 2147483648
    %v2357 = vmul.f32 %v2356, 1.442695
    %v2358 = vpow.pop %v2357
    %v2359 = vadd.f32 %v2358, 1.0
    %v2360 = vrcp.pop %v2359
    %v2361 = vmul.f32 1.0, %v2360
    %v2362 = vxor.u32 %v2353, 2147483648
    %v2363 = vmul.f32 %v2362, 1.442695
    %v2364 = vpow.pop %v2363
    %v2365 = vadd.f32 %v2364, 1.0
    %v2366 = vrcp.pop %v2365
    %v2367 = vmul.f32 1.0, %v2366
    %v2368 = vtanh.pop %v2354
    %v2369 = vxor.u32 %v2355, 2147483648
    %v2370 = vmul.f32 %v2369, 1.442695
    %v2371 = vpow.pop %v2370
    %v2372 = vadd.f32 %v2371, 1.0
    %v2373 = vrcp.pop %v2372
    %v2374 = vmul.f32 1.0, %v2373
    %v2375 = vmul.f32 %v2367, %v2266
    %v2376 = vmul.f32 %v2361, %v2368
    %v2377 = vadd.f32 %v2375, %v2376
    %v2378 = vtanh.pop %v2377
    %v2379 = vmul.f32 %v2374, %v2378
    %v2380 = vpack.c.bf16 %v2379, %v2379
    %2381 = vmatprep.subr.bf16.mxu0 %v2124
    %2382 = vmatpush1.bf16.msra.mxu0 %v2123
    %2383 = vmatprep.subr.bf16.mxu0 %v2120
    %2384 = vmatpush1.bf16.msra.mxu0 %v2119
    %2385 = vmatprep.subr.bf16.mxu0 %v2116
    %2386 = vmatpush1.bf16.msra.mxu0 %v2115
    %2387 = vmatprep.subr.bf16.mxu0 %v2112
    %2388 = vmatpush1.bf16.msra.mxu0 %v2111
    %2389 = vmatprep.subr.bf16.mxu0 %v2108
    %2390 = vmatpush1.bf16.msra.mxu0 %v2107
    %2391 = vmatprep.subr.bf16.mxu0 %v2104
    %2392 = vmatpush1.bf16.msra.mxu0 %v2103
    %2393 = vmatprep.subr.bf16.mxu0 %v2100
    %2394 = vmatpush1.bf16.msra.mxu0 %v2099
    %2395 = vmatprep.subr.bf16.mxu0 %v2096
    %2396 = vmatpush1.bf16.msra.mxu0 %v2095
    %2397 = vmatprep.subr.bf16.mxu0 0
    %2398 = vmatpush2.bf16.msra.mxu0 0
    %2399 = vmatprep.subr.bf16.mxu0 0
    %2400 = vmatpush2.bf16.msra.mxu0 0
    %2401 = vmatprep.subr.bf16.mxu0 0
    %2402 = vmatpush2.bf16.msra.mxu0 0
    %2403 = vmatprep.subr.bf16.mxu0 0
    %2404 = vmatpush2.bf16.msra.mxu0 0
    %2405 = vmatprep.subr.bf16.mxu0 0
    %2406 = vmatpush2.bf16.msra.mxu0 0
    %2407 = vmatprep.subr.bf16.mxu0 0
    %2408 = vmatpush2.bf16.msra.mxu0 0
    %2409 = vmatprep.subr.bf16.mxu0 0
    %2410 = vmatpush2.bf16.msra.mxu0 0
    %2411 = vmatprep.subr.bf16.mxu0 0
    %2412 = vmatpush2.bf16.msra.mxu0 0
    %2413 = vmatprep.mubr.bf16.mxu0 0
    %2414 = vmatmul.mubr.bf16.gmra.mxu0 %v2380
    %v2415 = vpop.f32.mrf.mxu0
    %v2416 = vadd.f32 0.0, %v2415
    %v2417 = vpop.f32.mrf.mxu0
    %v2418 = vadd.f32 0.0, %v2417
    %v2419 = vpop.f32.mrf.mxu0
    %v2420 = vpop.f32.mrf.mxu0
    %2421 = vdwg.mxu0
    %2422 = vmatprep.subr.bf16.mxu0 %v2126
    %2423 = vmatpush1.bf16.msra.mxu0 %v2125
    %2424 = vmatprep.subr.bf16.mxu0 %v2122
    %2425 = vmatpush1.bf16.msra.mxu0 %v2121
    %2426 = vmatprep.subr.bf16.mxu0 %v2118
    %2427 = vmatpush1.bf16.msra.mxu0 %v2117
    %2428 = vmatprep.subr.bf16.mxu0 %v2114
    %2429 = vmatpush1.bf16.msra.mxu0 %v2113
    %2430 = vmatprep.subr.bf16.mxu0 %v2110
    %2431 = vmatpush1.bf16.msra.mxu0 %v2109
    %2432 = vmatprep.subr.bf16.mxu0 %v2106
    %2433 = vmatpush1.bf16.msra.mxu0 %v2105
    %2434 = vmatprep.subr.bf16.mxu0 %v2102
    %2435 = vmatpush1.bf16.msra.mxu0 %v2101
    %2436 = vmatprep.subr.bf16.mxu0 %v2098
    %2437 = vmatpush1.bf16.msra.mxu0 %v2097
    %2438 = vmatprep.subr.bf16.mxu0 0
    %2439 = vmatpush2.bf16.msra.mxu0 0
    %2440 = vmatprep.subr.bf16.mxu0 0
    %2441 = vmatpush2.bf16.msra.mxu0 0
    %2442 = vmatprep.subr.bf16.mxu0 0
    %2443 = vmatpush2.bf16.msra.mxu0 0
    %2444 = vmatprep.subr.bf16.mxu0 0
    %2445 = vmatpush2.bf16.msra.mxu0 0
    %2446 = vmatprep.subr.bf16.mxu0 0
    %2447 = vmatpush2.bf16.msra.mxu0 0
    %2448 = vmatprep.subr.bf16.mxu0 0
    %2449 = vmatpush2.bf16.msra.mxu0 0
    %2450 = vmatprep.subr.bf16.mxu0 0
    %2451 = vmatpush2.bf16.msra.mxu0 0
    %2452 = vmatprep.subr.bf16.mxu0 0
    %2453 = vmatpush2.bf16.msra.mxu0 0
    %2454 = vmatprep.mubr.bf16.mxu0 0
    %2455 = vmatmul.mubr.bf16.gmra.mxu0 %v2380
    %v2456 = vpop.f32.mrf.mxu0
    %v2457 = vadd.f32 0.0, %v2456
    %v2458 = vpop.f32.mrf.mxu0
    %v2459 = vadd.f32 0.0, %v2458
    %v2460 = vpop.f32.mrf.mxu0
    %v2461 = vpop.f32.mrf.mxu0
    %2462 = vdwg.mxu0
    %v2463 = vadd.f32 %v1863, %v2416
    %v2464 = vadd.f32 %v1865, %v2418
    %v2465 = vadd.f32 %v1936, %v2457
    %v2466 = vadd.f32 %v1938, %v2459
    %v2467 = vxor.u32 %v2463, 2147483648
    %v2468 = vmul.f32 %v2467, 1.442695
    %v2469 = vpow.pop %v2468
    %v2470 = vadd.f32 %v2469, 1.0
    %v2471 = vrcp.pop %v2470
    %v2472 = vmul.f32 1.0, %v2471
    %v2473 = vxor.u32 %v2464, 2147483648
    %v2474 = vmul.f32 %v2473, 1.442695
    %v2475 = vpow.pop %v2474
    %v2476 = vadd.f32 %v2475, 1.0
    %v2477 = vrcp.pop %v2476
    %v2478 = vmul.f32 1.0, %v2477
    %v2479 = vtanh.pop %v2465
    %v2480 = vxor.u32 %v2466, 2147483648
    %v2481 = vmul.f32 %v2480, 1.442695
    %v2482 = vpow.pop %v2481
    %v2483 = vadd.f32 %v2482, 1.0
    %v2484 = vrcp.pop %v2483
    %v2485 = vmul.f32 1.0, %v2484
    %v2486 = vmul.f32 %v2478, %v2377
    %v2487 = vmul.f32 %v2472, %v2479
    %v2488 = vadd.f32 %v2486, %v2487
    %v2489 = vtanh.pop %v2488
    %v2490 = vmul.f32 %v2485, %v2489
    %v2491 = vpack.c.bf16 %v2490, %v2490
    %2492 = vmatprep.subr.bf16.mxu0 %v2124
    %2493 = vmatpush1.bf16.msra.mxu0 %v2123
    %2494 = vmatprep.subr.bf16.mxu0 %v2120
    %2495 = vmatpush1.bf16.msra.mxu0 %v2119
    %2496 = vmatprep.subr.bf16.mxu0 %v2116
    %2497 = vmatpush1.bf16.msra.mxu0 %v2115
    %2498 = vmatprep.subr.bf16.mxu0 %v2112
    %2499 = vmatpush1.bf16.msra.mxu0 %v2111
    %2500 = vmatprep.subr.bf16.mxu0 %v2108
    %2501 = vmatpush1.bf16.msra.mxu0 %v2107
    %2502 = vmatprep.subr.bf16.mxu0 %v2104
    %2503 = vmatpush1.bf16.msra.mxu0 %v2103
    %2504 = vmatprep.subr.bf16.mxu0 %v2100
    %2505 = vmatpush1.bf16.msra.mxu0 %v2099
    %2506 = vmatprep.subr.bf16.mxu0 %v2096
    %2507 = vmatpush1.bf16.msra.mxu0 %v2095
    %2508 = vmatprep.subr.bf16.mxu0 0
    %2509 = vmatpush2.bf16.msra.mxu0 0
    %2510 = vmatprep.subr.bf16.mxu0 0
    %2511 = vmatpush2.bf16.msra.mxu0 0
    %2512 = vmatprep.subr.bf16.mxu0 0
    %2513 = vmatpush2.bf16.msra.mxu0 0
    %2514 = vmatprep.subr.bf16.mxu0 0
    %2515 = vmatpush2.bf16.msra.mxu0 0
    %2516 = vmatprep.subr.bf16.mxu0 0
    %2517 = vmatpush2.bf16.msra.mxu0 0
    %2518 = vmatprep.subr.bf16.mxu0 0
    %2519 = vmatpush2.bf16.msra.mxu0 0
    %2520 = vmatprep.subr.bf16.mxu0 0
    %2521 = vmatpush2.bf16.msra.mxu0 0
    %2522 = vmatprep.subr.bf16.mxu0 0
    %2523 = vmatpush2.bf16.msra.mxu0 0
    %2524 = vmatprep.mubr.bf16.mxu0 0
    %2525 = vmatmul.mubr.bf16.gmra.mxu0 %v2491
    %v2526 = vpop.f32.mrf.mxu0
    %v2527 = vadd.f32 0.0, %v2526
    %v2528 = vpop.f32.mrf.mxu0
    %v2529 = vadd.f32 0.0, %v2528
    %v2530 = vpop.f32.mrf.mxu0
    %v2531 = vpop.f32.mrf.mxu0
    %2532 = vdwg.mxu0
    %2533 = vmatprep.subr.bf16.mxu0 %v2126
    %2534 = vmatpush1.bf16.msra.mxu0 %v2125
    %2535 = vmatprep.subr.bf16.mxu0 %v2122
    %2536 = vmatpush1.bf16.msra.mxu0 %v2121
    %2537 = vmatprep.subr.bf16.mxu0 %v2118
    %2538 = vmatpush1.bf16.msra.mxu0 %v2117
    %2539 = vmatprep.subr.bf16.mxu0 %v2114
    %2540 = vmatpush1.bf16.msra.mxu0 %v2113
    %2541 = vmatprep.subr.bf16.mxu0 %v2110
    %2542 = vmatpush1.bf16.msra.mxu0 %v2109
    %2543 = vmatprep.subr.bf16.mxu0 %v2106
    %2544 = vmatpush1.bf16.msra.mxu0 %v2105
    %2545 = vmatprep.subr.bf16.mxu0 %v2102
    %2546 = vmatpush1.bf16.msra.mxu0 %v2101
    %2547 = vmatprep.subr.bf16.mxu0 %v2098
    %2548 = vmatpush1.bf16.msra.mxu0 %v2097
    %2549 = vmatprep.subr.bf16.mxu0 0
    %2550 = vmatpush2.bf16.msra.mxu0 0
    %2551 = vmatprep.subr.bf16.mxu0 0
    %2552 = vmatpush2.bf16.msra.mxu0 0
    %2553 = vmatprep.subr.bf16.mxu0 0
    %2554 = vmatpush2.bf16.msra.mxu0 0
    %2555 = vmatprep.subr.bf16.mxu0 0
    %2556 = vmatpush2.bf16.msra.mxu0 0
    %2557 = vmatprep.subr.bf16.mxu0 0
    %2558 = vmatpush2.bf16.msra.mxu0 0
    %2559 = vmatprep.subr.bf16.mxu0 0
    %2560 = vmatpush2.bf16.msra.mxu0 0
    %2561 = vmatprep.subr.bf16.mxu0 0
    %2562 = vmatpush2.bf16.msra.mxu0 0
    %2563 = vmatprep.subr.bf16.mxu0 0
    %2564 = vmatpush2.bf16.msra.mxu0 0
    %2565 = vmatprep.mubr.bf16.mxu0 0
    %2566 = vmatmul.mubr.bf16.gmra.mxu0 %v2491
    %v2567 = vpop.f32.mrf.mxu0
    %v2568 = vadd.f32 0.0, %v2567
    %v2569 = vpop.f32.mrf.mxu0
    %v2570 = vadd.f32 0.0, %v2569
    %v2571 = vpop.f32.mrf.mxu0
    %v2572 = vpop.f32.mrf.mxu0
    %2573 = vdwg.mxu0
    %v2574 = vadd.f32 %v1867, %v2527
    %v2575 = vadd.f32 %v1869, %v2529
    %v2576 = vadd.f32 %v1940, %v2568
    %v2577 = vadd.f32 %v1942, %v2570
    %v2578 = vxor.u32 %v2574, 2147483648
    %v2579 = vmul.f32 %v2578, 1.442695
    %v2580 = vpow.pop %v2579
    %v2581 = vadd.f32 %v2580, 1.0
    %v2582 = vrcp.pop %v2581
    %v2583 = vmul.f32 1.0, %v2582
    %v2584 = vxor.u32 %v2575, 2147483648
    %v2585 = vmul.f32 %v2584, 1.442695
    %v2586 = vpow.pop %v2585
    %v2587 = vadd.f32 %v2586, 1.0
    %v2588 = vrcp.pop %v2587
    %v2589 = vmul.f32 1.0, %v2588
    %v2590 = vtanh.pop %v2576
    %v2591 = vxor.u32 %v2577, 2147483648
    %v2592 = vmul.f32 %v2591, 1.442695
    %v2593 = vpow.pop %v2592
    %v2594 = vadd.f32 %v2593, 1.0
    %v2595 = vrcp.pop %v2594
    %v2596 = vmul.f32 1.0, %v2595
    %v2597 = vmul.f32 %v2589, %v2488
    %v2598 = vmul.f32 %v2583, %v2590
    %v2599 = vadd.f32 %v2597, %v2598
    %v2600 = vtanh.pop %v2599
    %v2601 = vmul.f32 %v2596, %v2600
    %v2602 = vpack.c.bf16 %v2601, %v2601
    %2603 = vmatprep.subr.bf16.mxu0 %v2124
    %2604 = vmatpush1.bf16.msra.mxu0 %v2123
    %2605 = vmatprep.subr.bf16.mxu0 %v2120
    %2606 = vmatpush1.bf16.msra.mxu0 %v2119
    %2607 = vmatprep.subr.bf16.mxu0 %v2116
    %2608 = vmatpush1.bf16.msra.mxu0 %v2115
    %2609 = vmatprep.subr.bf16.mxu0 %v2112
    %2610 = vmatpush1.bf16.msra.mxu0 %v2111
    %2611 = vmatprep.subr.bf16.mxu0 %v2108
    %2612 = vmatpush1.bf16.msra.mxu0 %v2107
    %2613 = vmatprep.subr.bf16.mxu0 %v2104
    %2614 = vmatpush1.bf16.msra.mxu0 %v2103
    %2615 = vmatprep.subr.bf16.mxu0 %v2100
    %2616 = vmatpush1.bf16.msra.mxu0 %v2099
    %2617 = vmatprep.subr.bf16.mxu0 %v2096
    %2618 = vmatpush1.bf16.msra.mxu0 %v2095
    %2619 = vmatprep.subr.bf16.mxu0 0
    %2620 = vmatpush2.bf16.msra.mxu0 0
    %2621 = vmatprep.subr.bf16.mxu0 0
    %2622 = vmatpush2.bf16.msra.mxu0 0
    %2623 = vmatprep.subr.bf16.mxu0 0
    %2624 = vmatpush2.bf16.msra.mxu0 0
    %2625 = vmatprep.subr.bf16.mxu0 0
    %2626 = vmatpush2.bf16.msra.mxu0 0
    %2627 = vmatprep.subr.bf16.mxu0 0
    %2628 = vmatpush2.bf16.msra.mxu0 0
    %2629 = vmatprep.subr.bf16.mxu0 0
    %2630 = vmatpush2.bf16.msra.mxu0 0
    %2631 = vmatprep.subr.bf16.mxu0 0
    %2632 = vmatpush2.bf16.msra.mxu0 0
    %2633 = vmatprep.subr.bf16.mxu0 0
    %2634 = vmatpush2.bf16.msra.mxu0 0
    %2635 = vmatprep.mubr.bf16.mxu0 0
    %2636 = vmatmul.mubr.bf16.gmra.mxu0 %v2602
    %v2637 = vpop.f32.mrf.mxu0
    %v2638 = vadd.f32 0.0, %v2637
    %v2639 = vpop.f32.mrf.mxu0
    %v2640 = vadd.f32 0.0, %v2639
    %v2641 = vpop.f32.mrf.mxu0
    %v2642 = vpop.f32.mrf.mxu0
    %2643 = vdwg.mxu0
    %2644 = vmatprep.subr.bf16.mxu0 %v2126
    %2645 = vmatpush1.bf16.msra.mxu0 %v2125
    %2646 = vmatprep.subr.bf16.mxu0 %v2122
    %2647 = vmatpush1.bf16.msra.mxu0 %v2121
    %2648 = vmatprep.subr.bf16.mxu0 %v2118
    %2649 = vmatpush1.bf16.msra.mxu0 %v2117
    %2650 = vmatprep.subr.bf16.mxu0 %v2114
    %2651 = vmatpush1.bf16.msra.mxu0 %v2113
    %2652 = vmatprep.subr.bf16.mxu0 %v2110
    %2653 = vmatpush1.bf16.msra.mxu0 %v2109
    %2654 = vmatprep.subr.bf16.mxu0 %v2106
    %2655 = vmatpush1.bf16.msra.mxu0 %v2105
    %2656 = vmatprep.subr.bf16.mxu0 %v2102
    %2657 = vmatpush1.bf16.msra.mxu0 %v2101
    %2658 = vmatprep.subr.bf16.mxu0 %v2098
    %2659 = vmatpush1.bf16.msra.mxu0 %v2097
    %2660 = vmatprep.subr.bf16.mxu0 0
    %2661 = vmatpush2.bf16.msra.mxu0 0
    %2662 = vmatprep.subr.bf16.mxu0 0
    %2663 = vmatpush2.bf16.msra.mxu0 0
    %2664 = vmatprep.subr.bf16.mxu0 0
    %2665 = vmatpush2.bf16.msra.mxu0 0
    %2666 = vmatprep.subr.bf16.mxu0 0
    %2667 = vmatpush2.bf16.msra.mxu0 0
    %2668 = vmatprep.subr.bf16.mxu0 0
    %2669 = vmatpush2.bf16.msra.mxu0 0
    %2670 = vmatprep.subr.bf16.mxu0 0
    %2671 = vmatpush2.bf16.msra.mxu0 0
    %2672 = vmatprep.subr.bf16.mxu0 0
    %2673 = vmatpush2.bf16.msra.mxu0 0
    %2674 = vmatprep.subr.bf16.mxu0 0
    %2675 = vmatpush2.bf16.msra.mxu0 0
    %2676 = vmatprep.mubr.bf16.mxu0 0
    %2677 = vmatmul.mubr.bf16.gmra.mxu0 %v2602
    %v2678 = vpop.f32.mrf.mxu0
    %v2679 = vadd.f32 0.0, %v2678
    %v2680 = vpop.f32.mrf.mxu0
    %v2681 = vadd.f32 0.0, %v2680
    %v2682 = vpop.f32.mrf.mxu0
    %v2683 = vpop.f32.mrf.mxu0
    %2684 = vdwg.mxu0
    %v2685 = vadd.f32 %v1873, %v2638
    %v2686 = vadd.f32 %v1875, %v2640
    %v2687 = vadd.f32 %v1946, %v2679
    %v2688 = vadd.f32 %v1948, %v2681
    %v2689 = vxor.u32 %v2685, 2147483648
    %v2690 = vmul.f32 %v2689, 1.442695
    %v2691 = vpow.pop %v2690
    %v2692 = vadd.f32 %v2691, 1.0
    %v2693 = vrcp.pop %v2692
    %v2694 = vmul.f32 1.0, %v2693
    %v2695 = vxor.u32 %v2686, 2147483648
    %v2696 = vmul.f32 %v2695, 1.442695
    %v2697 = vpow.pop %v2696
    %v2698 = vadd.f32 %v2697, 1.0
    %v2699 = vrcp.pop %v2698
    %v2700 = vmul.f32 1.0, %v2699
    %v2701 = vtanh.pop %v2687
    %v2702 = vxor.u32 %v2688, 2147483648
    %v2703 = vmul.f32 %v2702, 1.442695
    %v2704 = vpow.pop %v2703
    %v2705 = vadd.f32 %v2704, 1.0
    %v2706 = vrcp.pop %v2705
    %v2707 = vmul.f32 1.0, %v2706
    %v2708 = vmul.f32 %v2700, %v2599
    %v2709 = vmul.f32 %v2694, %v2701
    %v2710 = vadd.f32 %v2708, %v2709
    %v2711 = vtanh.pop %v2710
    %v2712 = vmul.f32 %v2707, %v2711
    %v2713 = vpack.c.bf16 %v2712, %v2712
    %2714 = vmatprep.subr.bf16.mxu0 %v2124
    %2715 = vmatpush1.bf16.msra.mxu0 %v2123
    %2716 = vmatprep.subr.bf16.mxu0 %v2120
    %2717 = vmatpush1.bf16.msra.mxu0 %v2119
    %2718 = vmatprep.subr.bf16.mxu0 %v2116
    %2719 = vmatpush1.bf16.msra.mxu0 %v2115
    %2720 = vmatprep.subr.bf16.mxu0 %v2112
    %2721 = vmatpush1.bf16.msra.mxu0 %v2111
    %2722 = vmatprep.subr.bf16.mxu0 %v2108
    %2723 = vmatpush1.bf16.msra.mxu0 %v2107
    %2724 = vmatprep.subr.bf16.mxu0 %v2104
    %2725 = vmatpush1.bf16.msra.mxu0 %v2103
    %2726 = vmatprep.subr.bf16.mxu0 %v2100
    %2727 = vmatpush1.bf16.msra.mxu0 %v2099
    %2728 = vmatprep.subr.bf16.mxu0 %v2096
    %2729 = vmatpush1.bf16.msra.mxu0 %v2095
    %2730 = vmatprep.subr.bf16.mxu0 0
    %2731 = vmatpush2.bf16.msra.mxu0 0
    %2732 = vmatprep.subr.bf16.mxu0 0
    %2733 = vmatpush2.bf16.msra.mxu0 0
    %2734 = vmatprep.subr.bf16.mxu0 0
    %2735 = vmatpush2.bf16.msra.mxu0 0
    %2736 = vmatprep.subr.bf16.mxu0 0
    %2737 = vmatpush2.bf16.msra.mxu0 0
    %2738 = vmatprep.subr.bf16.mxu0 0
    %2739 = vmatpush2.bf16.msra.mxu0 0
    %2740 = vmatprep.subr.bf16.mxu0 0
    %2741 = vmatpush2.bf16.msra.mxu0 0
    %2742 = vmatprep.subr.bf16.mxu0 0
    %2743 = vmatpush2.bf16.msra.mxu0 0
    %2744 = vmatprep.subr.bf16.mxu0 0
    %2745 = vmatpush2.bf16.msra.mxu0 0
    %2746 = vmatprep.mubr.bf16.mxu0 0
    %2747 = vmatmul.mubr.bf16.gmra.mxu0 %v2713
    %v2748 = vpop.f32.mrf.mxu0
    %v2749 = vadd.f32 0.0, %v2748
    %v2750 = vpop.f32.mrf.mxu0
    %v2751 = vadd.f32 0.0, %v2750
    %v2752 = vpop.f32.mrf.mxu0
    %v2753 = vpop.f32.mrf.mxu0
    %2754 = vdwg.mxu0
    %2755 = vmatprep.subr.bf16.mxu0 %v2126
    %2756 = vmatpush1.bf16.msra.mxu0 %v2125
    %2757 = vmatprep.subr.bf16.mxu0 %v2122
    %2758 = vmatpush1.bf16.msra.mxu0 %v2121
    %2759 = vmatprep.subr.bf16.mxu0 %v2118
    %2760 = vmatpush1.bf16.msra.mxu0 %v2117
    %2761 = vmatprep.subr.bf16.mxu0 %v2114
    %2762 = vmatpush1.bf16.msra.mxu0 %v2113
    %2763 = vmatprep.subr.bf16.mxu0 %v2110
    %2764 = vmatpush1.bf16.msra.mxu0 %v2109
    %2765 = vmatprep.subr.bf16.mxu0 %v2106
    %2766 = vmatpush1.bf16.msra.mxu0 %v2105
    %2767 = vmatprep.subr.bf16.mxu0 %v2102
    %2768 = vmatpush1.bf16.msra.mxu0 %v2101
    %2769 = vmatprep.subr.bf16.mxu0 %v2098
    %2770 = vmatpush1.bf16.msra.mxu0 %v2097
    %2771 = vmatprep.subr.bf16.mxu0 0
    %2772 = vmatpush2.bf16.msra.mxu0 0
    %2773 = vmatprep.subr.bf16.mxu0 0
    %2774 = vmatpush2.bf16.msra.mxu0 0
    %2775 = vmatprep.subr.bf16.mxu0 0
    %2776 = vmatpush2.bf16.msra.mxu0 0
    %2777 = vmatprep.subr.bf16.mxu0 0
    %2778 = vmatpush2.bf16.msra.mxu0 0
    %2779 = vmatprep.subr.bf16.mxu0 0
    %2780 = vmatpush2.bf16.msra.mxu0 0
    %2781 = vmatprep.subr.bf16.mxu0 0
    %2782 = vmatpush2.bf16.msra.mxu0 0
    %2783 = vmatprep.subr.bf16.mxu0 0
    %2784 = vmatpush2.bf16.msra.mxu0 0
    %2785 = vmatprep.subr.bf16.mxu0 0
    %2786 = vmatpush2.bf16.msra.mxu0 0
    %2787 = vmatprep.mubr.bf16.mxu0 0
    %2788 = vmatmul.mubr.bf16.gmra.mxu0 %v2713
    %v2789 = vpop.f32.mrf.mxu0
    %v2790 = vadd.f32 0.0, %v2789
    %v2791 = vpop.f32.mrf.mxu0
    %v2792 = vadd.f32 0.0, %v2791
    %v2793 = vpop.f32.mrf.mxu0
    %v2794 = vpop.f32.mrf.mxu0
    %2795 = vdwg.mxu0
    %v2796 = vadd.f32 %v1877, %v2749
    %v2797 = vadd.f32 %v1879, %v2751
    %v2798 = vadd.f32 %v1950, %v2790
    %v2799 = vadd.f32 %v1952, %v2792
    %v2800 = vxor.u32 %v2796, 2147483648
    %v2801 = vmul.f32 %v2800, 1.442695
    %v2802 = vpow.pop %v2801
    %v2803 = vadd.f32 %v2802, 1.0
    %v2804 = vrcp.pop %v2803
    %v2805 = vmul.f32 1.0, %v2804
    %v2806 = vxor.u32 %v2797, 2147483648
    %v2807 = vmul.f32 %v2806, 1.442695
    %v2808 = vpow.pop %v2807
    %v2809 = vadd.f32 %v2808, 1.0
    %v2810 = vrcp.pop %v2809
    %v2811 = vmul.f32 1.0, %v2810
    %v2812 = vtanh.pop %v2798
    %v2813 = vxor.u32 %v2799, 2147483648
    %v2814 = vmul.f32 %v2813, 1.442695
    %v2815 = vpow.pop %v2814
    %v2816 = vadd.f32 %v2815, 1.0
    %v2817 = vrcp.pop %v2816
    %v2818 = vmul.f32 1.0, %v2817
    %v2819 = vmul.f32 %v2811, %v2710
    %v2820 = vmul.f32 %v2805, %v2812
    %v2821 = vadd.f32 %v2819, %v2820
    %v2822 = vtanh.pop %v2821
    %v2823 = vmul.f32 %v2818, %v2822
    %v2824 = vpack.c.bf16 %v2823, %v2823
    %2825 = vmatprep.subr.bf16.mxu0 %v2124
    %2826 = vmatpush1.bf16.msra.mxu0 %v2123
    %2827 = vmatprep.subr.bf16.mxu0 %v2120
    %2828 = vmatpush1.bf16.msra.mxu0 %v2119
    %2829 = vmatprep.subr.bf16.mxu0 %v2116
    %2830 = vmatpush1.bf16.msra.mxu0 %v2115
    %2831 = vmatprep.subr.bf16.mxu0 %v2112
    %2832 = vmatpush1.bf16.msra.mxu0 %v2111
    %2833 = vmatprep.subr.bf16.mxu0 %v2108
    %2834 = vmatpush1.bf16.msra.mxu0 %v2107
    %2835 = vmatprep.subr.bf16.mxu0 %v2104
    %2836 = vmatpush1.bf16.msra.mxu0 %v2103
    %2837 = vmatprep.subr.bf16.mxu0 %v2100
    %2838 = vmatpush1.bf16.msra.mxu0 %v2099
    %2839 = vmatprep.subr.bf16.mxu0 %v2096
    %2840 = vmatpush1.bf16.msra.mxu0 %v2095
    %2841 = vmatprep.subr.bf16.mxu0 0
    %2842 = vmatpush2.bf16.msra.mxu0 0
    %2843 = vmatprep.subr.bf16.mxu0 0
    %2844 = vmatpush2.bf16.msra.mxu0 0
    %2845 = vmatprep.subr.bf16.mxu0 0
    %2846 = vmatpush2.bf16.msra.mxu0 0
    %2847 = vmatprep.subr.bf16.mxu0 0
    %2848 = vmatpush2.bf16.msra.mxu0 0
    %2849 = vmatprep.subr.bf16.mxu0 0
    %2850 = vmatpush2.bf16.msra.mxu0 0
    %2851 = vmatprep.subr.bf16.mxu0 0
    %2852 = vmatpush2.bf16.msra.mxu0 0
    %2853 = vmatprep.subr.bf16.mxu0 0
    %2854 = vmatpush2.bf16.msra.mxu0 0
    %2855 = vmatprep.subr.bf16.mxu0 0
    %2856 = vmatpush2.bf16.msra.mxu0 0
    %2857 = vmatprep.mubr.bf16.mxu0 0
    %2858 = vmatmul.mubr.bf16.gmra.mxu0 %v2824
    %v2859 = vpop.f32.mrf.mxu0
    %v2860 = vadd.f32 0.0, %v2859
    %v2861 = vpop.f32.mrf.mxu0
    %v2862 = vadd.f32 0.0, %v2861
    %v2863 = vpop.f32.mrf.mxu0
    %v2864 = vpop.f32.mrf.mxu0
    %2865 = vdwg.mxu0
    %2866 = vmatprep.subr.bf16.mxu0 %v2126
    %2867 = vmatpush1.bf16.msra.mxu0 %v2125
    %2868 = vmatprep.subr.bf16.mxu0 %v2122
    %2869 = vmatpush1.bf16.msra.mxu0 %v2121
    %2870 = vmatprep.subr.bf16.mxu0 %v2118
    %2871 = vmatpush1.bf16.msra.mxu0 %v2117
    %2872 = vmatprep.subr.bf16.mxu0 %v2114
    %2873 = vmatpush1.bf16.msra.mxu0 %v2113
    %2874 = vmatprep.subr.bf16.mxu0 %v2110
    %2875 = vmatpush1.bf16.msra.mxu0 %v2109
    %2876 = vmatprep.subr.bf16.mxu0 %v2106
    %2877 = vmatpush1.bf16.msra.mxu0 %v2105
    %2878 = vmatprep.subr.bf16.mxu0 %v2102
    %2879 = vmatpush1.bf16.msra.mxu0 %v2101
    %2880 = vmatprep.subr.bf16.mxu0 %v2098
    %2881 = vmatpush1.bf16.msra.mxu0 %v2097
    %2882 = vmatprep.subr.bf16.mxu0 0
    %2883 = vmatpush2.bf16.msra.mxu0 0
    %2884 = vmatprep.subr.bf16.mxu0 0
    %2885 = vmatpush2.bf16.msra.mxu0 0
    %2886 = vmatprep.subr.bf16.mxu0 0
    %2887 = vmatpush2.bf16.msra.mxu0 0
    %2888 = vmatprep.subr.bf16.mxu0 0
    %2889 = vmatpush2.bf16.msra.mxu0 0
    %2890 = vmatprep.subr.bf16.mxu0 0
    %2891 = vmatpush2.bf16.msra.mxu0 0
    %2892 = vmatprep.subr.bf16.mxu0 0
    %2893 = vmatpush2.bf16.msra.mxu0 0
    %2894 = vmatprep.subr.bf16.mxu0 0
    %2895 = vmatpush2.bf16.msra.mxu0 0
    %2896 = vmatprep.subr.bf16.mxu0 0
    %2897 = vmatpush2.bf16.msra.mxu0 0
    %2898 = vmatprep.mubr.bf16.mxu0 0
    %2899 = vmatmul.mubr.bf16.gmra.mxu0 %v2824
    %v2900 = vpop.f32.mrf.mxu0
    %v2901 = vadd.f32 0.0, %v2900
    %v2902 = vpop.f32.mrf.mxu0
    %v2903 = vadd.f32 0.0, %v2902
    %v2904 = vpop.f32.mrf.mxu0
    %v2905 = vpop.f32.mrf.mxu0
    %2906 = vdwg.mxu0
    %v2907 = vadd.f32 %v1883, %v2860
    %v2908 = vadd.f32 %v1885, %v2862
    %v2909 = vadd.f32 %v1956, %v2901
    %v2910 = vadd.f32 %v1958, %v2903
    %v2911 = vxor.u32 %v2907, 2147483648
    %v2912 = vmul.f32 %v2911, 1.442695
    %v2913 = vpow.pop %v2912
    %v2914 = vadd.f32 %v2913, 1.0
    %v2915 = vrcp.pop %v2914
    %v2916 = vmul.f32 1.0, %v2915
    %v2917 = vxor.u32 %v2908, 2147483648
    %v2918 = vmul.f32 %v2917, 1.442695
    %v2919 = vpow.pop %v2918
    %v2920 = vadd.f32 %v2919, 1.0
    %v2921 = vrcp.pop %v2920
    %v2922 = vmul.f32 1.0, %v2921
    %v2923 = vtanh.pop %v2909
    %v2924 = vxor.u32 %v2910, 2147483648
    %v2925 = vmul.f32 %v2924, 1.442695
    %v2926 = vpow.pop %v2925
    %v2927 = vadd.f32 %v2926, 1.0
    %v2928 = vrcp.pop %v2927
    %v2929 = vmul.f32 1.0, %v2928
    %v2930 = vmul.f32 %v2922, %v2821
    %v2931 = vmul.f32 %v2916, %v2923
    %v2932 = vadd.f32 %v2930, %v2931
    %v2933 = vtanh.pop %v2932
    %v2934 = vmul.f32 %v2929, %v2933
    %v2935 = vpack.c.bf16 %v2934, %v2934
    %2936 = vmatprep.subr.bf16.mxu0 %v2124
    %2937 = vmatpush1.bf16.msra.mxu0 %v2123
    %2938 = vmatprep.subr.bf16.mxu0 %v2120
    %2939 = vmatpush1.bf16.msra.mxu0 %v2119
    %2940 = vmatprep.subr.bf16.mxu0 %v2116
    %2941 = vmatpush1.bf16.msra.mxu0 %v2115
    %2942 = vmatprep.subr.bf16.mxu0 %v2112
    %2943 = vmatpush1.bf16.msra.mxu0 %v2111
    %2944 = vmatprep.subr.bf16.mxu0 %v2108
    %2945 = vmatpush1.bf16.msra.mxu0 %v2107
    %2946 = vmatprep.subr.bf16.mxu0 %v2104
    %2947 = vmatpush1.bf16.msra.mxu0 %v2103
    %2948 = vmatprep.subr.bf16.mxu0 %v2100
    %2949 = vmatpush1.bf16.msra.mxu0 %v2099
    %2950 = vmatprep.subr.bf16.mxu0 %v2096
    %2951 = vmatpush1.bf16.msra.mxu0 %v2095
    %2952 = vmatprep.subr.bf16.mxu0 0
    %2953 = vmatpush2.bf16.msra.mxu0 0
    %2954 = vmatprep.subr.bf16.mxu0 0
    %2955 = vmatpush2.bf16.msra.mxu0 0
    %2956 = vmatprep.subr.bf16.mxu0 0
    %2957 = vmatpush2.bf16.msra.mxu0 0
    %2958 = vmatprep.subr.bf16.mxu0 0
    %2959 = vmatpush2.bf16.msra.mxu0 0
    %2960 = vmatprep.subr.bf16.mxu0 0
    %2961 = vmatpush2.bf16.msra.mxu0 0
    %2962 = vmatprep.subr.bf16.mxu0 0
    %2963 = vmatpush2.bf16.msra.mxu0 0
    %2964 = vmatprep.subr.bf16.mxu0 0
    %2965 = vmatpush2.bf16.msra.mxu0 0
    %2966 = vmatprep.subr.bf16.mxu0 0
    %2967 = vmatpush2.bf16.msra.mxu0 0
    %2968 = vmatprep.mubr.bf16.mxu0 0
    %2969 = vmatmul.mubr.bf16.gmra.mxu0 %v2935
    %v2970 = vpop.f32.mrf.mxu0
    %v2971 = vadd.f32 0.0, %v2970
    %v2972 = vpop.f32.mrf.mxu0
    %v2973 = vadd.f32 0.0, %v2972
    %v2974 = vpop.f32.mrf.mxu0
    %v2975 = vpop.f32.mrf.mxu0
    %2976 = vdwg.mxu0
    %2977 = vmatprep.subr.bf16.mxu0 %v2126
    %2978 = vmatpush1.bf16.msra.mxu0 %v2125
    %2979 = vmatprep.subr.bf16.mxu0 %v2122
    %2980 = vmatpush1.bf16.msra.mxu0 %v2121
    %2981 = vmatprep.subr.bf16.mxu0 %v2118
    %2982 = vmatpush1.bf16.msra.mxu0 %v2117
    %2983 = vmatprep.subr.bf16.mxu0 %v2114
    %2984 = vmatpush1.bf16.msra.mxu0 %v2113
    %2985 = vmatprep.subr.bf16.mxu0 %v2110
    %2986 = vmatpush1.bf16.msra.mxu0 %v2109
    %2987 = vmatprep.subr.bf16.mxu0 %v2106
    %2988 = vmatpush1.bf16.msra.mxu0 %v2105
    %2989 = vmatprep.subr.bf16.mxu0 %v2102
    %2990 = vmatpush1.bf16.msra.mxu0 %v2101
    %2991 = vmatprep.subr.bf16.mxu0 %v2098
    %2992 = vmatpush1.bf16.msra.mxu0 %v2097
    %2993 = vmatprep.subr.bf16.mxu0 0
    %2994 = vmatpush2.bf16.msra.mxu0 0
    %2995 = vmatprep.subr.bf16.mxu0 0
    %2996 = vmatpush2.bf16.msra.mxu0 0
    %2997 = vmatprep.subr.bf16.mxu0 0
    %2998 = vmatpush2.bf16.msra.mxu0 0
    %2999 = vmatprep.subr.bf16.mxu0 0
    %3000 = vmatpush2.bf16.msra.mxu0 0
    %3001 = vmatprep.subr.bf16.mxu0 0
    %3002 = vmatpush2.bf16.msra.mxu0 0
    %3003 = vmatprep.subr.bf16.mxu0 0
    %3004 = vmatpush2.bf16.msra.mxu0 0
    %3005 = vmatprep.subr.bf16.mxu0 0
    %3006 = vmatpush2.bf16.msra.mxu0 0
    %3007 = vmatprep.subr.bf16.mxu0 0
    %3008 = vmatpush2.bf16.msra.mxu0 0
    %3009 = vmatprep.mubr.bf16.mxu0 0
    %3010 = vmatmul.mubr.bf16.gmra.mxu0 %v2935
    %v3011 = vpop.f32.mrf.mxu0
    %v3012 = vadd.f32 0.0, %v3011
    %v3013 = vpop.f32.mrf.mxu0
    %v3014 = vadd.f32 0.0, %v3013
    %v3015 = vpop.f32.mrf.mxu0
    %v3016 = vpop.f32.mrf.mxu0
    %3017 = vdwg.mxu0
    %v3018 = vadd.f32 %v1887, %v2971
    %v3019 = vadd.f32 %v1889, %v2973
    %v3020 = vadd.f32 %v1960, %v3012
    %v3021 = vadd.f32 %v1962, %v3014
    %v3022 = vxor.u32 %v3018, 2147483648
    %v3023 = vmul.f32 %v3022, 1.442695
    %v3024 = vpow.pop %v3023
    %v3025 = vadd.f32 %v3024, 1.0
    %v3026 = vrcp.pop %v3025
    %v3027 = vmul.f32 1.0, %v3026
    %v3028 = vxor.u32 %v3019, 2147483648
    %v3029 = vmul.f32 %v3028, 1.442695
    %v3030 = vpow.pop %v3029
    %v3031 = vadd.f32 %v3030, 1.0
    %v3032 = vrcp.pop %v3031
    %v3033 = vmul.f32 1.0, %v3032
    %v3034 = vtanh.pop %v3020
    %v3035 = vxor.u32 %v3021, 2147483648
    %v3036 = vmul.f32 %v3035, 1.442695
    %v3037 = vpow.pop %v3036
    %v3038 = vadd.f32 %v3037, 1.0
    %v3039 = vrcp.pop %v3038
    %v3040 = vmul.f32 1.0, %v3039
    %v3041 = vmul.f32 %v3033, %v2932
    %v3042 = vmul.f32 %v3027, %v3034
    %v3043 = vadd.f32 %v3041, %v3042
    %v3044 = vtanh.pop %v3043
    %v3045 = vmul.f32 %v3040, %v3044
    %3046 = vst [vmem:[#allocation4] sm:$0xff] %v3045
    %3047 = vst [vmem:[#allocation5] sm:$0xff] %v3043
    // Predicated region
    $region66: #{sentiment_forward.1} parent=1 // pred_check
      %p3048 = pneg %p94
    $region67: #{sentiment_forward.1} parent=1 // pred_check_branch
      %3050 = sbr.rel (%p3048) target = $region69
    $region68: #{sentiment_forward.1} parent=1 // pred_region
      %v3051 = vpack.c.bf16 %v3045, %v3045
      %v3052 = vld [vmem:[%s7] sm:$0xf]
      %v3053 = vld [vmem:[%s7 + $0x4] sm:$0xf]
      %v3054 = vld [vmem:[%s7 + $0x8] sm:$0xf]
      %v3055 = vld [vmem:[%s7 + $0xc] sm:$0xf]
      %v3056 = vld [vmem:[%s7 + $0x10] sm:$0xf]
      %v3057 = vld [vmem:[%s7 + $0x14] sm:$0xf]
      %v3058 = vld [vmem:[%s7 + $0x18] sm:$0xf]
      %v3059 = vld [vmem:[%s7 + $0x1c] sm:$0xf]
      %v3060 = vld [vmem:[%s7 + $0x20] sm:$0xf]
      %v3061 = vld [vmem:[%s7 + $0x24] sm:$0xf]
      %v3062 = vld [vmem:[%s7 + $0x28] sm:$0xf]
      %v3063 = vld [vmem:[%s7 + $0x2c] sm:$0xf]
      %v3064 = vld [vmem:[%s7 + $0x30] sm:$0xf]
      %v3065 = vld [vmem:[%s7 + $0x34] sm:$0xf]
      %v3066 = vld [vmem:[%s7 + $0x38] sm:$0xf]
      %v3067 = vld [vmem:[%s7 + $0x3c] sm:$0xf]
      %v3068 = vld [vmem:[%s8] sm:$0x1]
      %v3070 = vlaneseq
      %v3071 = vshrl.u32 %v3070, 7
      %v3072 = vsub.s32 0, %v3071
      %v3073 = vrot.slane %v3068, %v3072
      %v3091 = vunpack.c.l.b16 %v3052
      %v3092 = vunpack.c.l.b16 %v3053
      %v3093 = vunpack.c.l.b16 %v3054
      %v3094 = vunpack.c.l.b16 %v3055
      %v3095 = vunpack.c.l.b16 %v3056
      %v3096 = vunpack.c.l.b16 %v3057
      %v3097 = vunpack.c.l.b16 %v3058
      %v3098 = vunpack.c.l.b16 %v3059
      %v3099 = vunpack.c.l.b16 %v3060
      %v3100 = vunpack.c.l.b16 %v3061
      %v3101 = vunpack.c.l.b16 %v3062
      %v3102 = vunpack.c.l.b16 %v3063
      %v3103 = vunpack.c.l.b16 %v3064
      %v3104 = vunpack.c.l.b16 %v3065
      %v3105 = vunpack.c.l.b16 %v3066
      %v3106 = vunpack.c.l.b16 %v3067
      %v3107 = vpack.c.b16 %v3092, %v3091
      %v3108 = vpack.c.b16 %v3094, %v3093
      %v3109 = vpack.c.b16 %v3096, %v3095
      %v3110 = vpack.c.b16 %v3098, %v3097
      %v3111 = vpack.c.b16 %v3100, %v3099
      %v3112 = vpack.c.b16 %v3102, %v3101
      %v3113 = vpack.c.b16 %v3104, %v3103
      %v3114 = vpack.c.b16 %v3106, %v3105
      %3123 = vmatprep.subr.bf16.mxu0 0
      %3124 = vmatpush1.bf16.msra.mxu0 %v3114
      %3125 = vmatprep.subr.bf16.mxu0 0
      %3126 = vmatpush1.bf16.msra.mxu0 %v3113
      %3127 = vmatprep.subr.bf16.mxu0 0
      %3128 = vmatpush1.bf16.msra.mxu0 %v3112
      %3129 = vmatprep.subr.bf16.mxu0 0
      %3130 = vmatpush1.bf16.msra.mxu0 %v3111
      %3131 = vmatprep.subr.bf16.mxu0 0
      %3132 = vmatpush1.bf16.msra.mxu0 %v3110
      %3133 = vmatprep.subr.bf16.mxu0 0
      %3134 = vmatpush1.bf16.msra.mxu0 %v3109
      %3135 = vmatprep.subr.bf16.mxu0 0
      %3136 = vmatpush1.bf16.msra.mxu0 %v3108
      %3137 = vmatprep.subr.bf16.mxu0 0
      %3138 = vmatpush1.bf16.msra.mxu0 %v3107
      %3139 = vmatprep.subr.bf16.mxu0 0
      %3140 = vmatpush2.bf16.msra.mxu0 0
      %3141 = vmatprep.subr.bf16.mxu0 0
      %3142 = vmatpush2.bf16.msra.mxu0 0
      %3143 = vmatprep.subr.bf16.mxu0 0
      %3144 = vmatpush2.bf16.msra.mxu0 0
      %3145 = vmatprep.subr.bf16.mxu0 0
      %3146 = vmatpush2.bf16.msra.mxu0 0
      %3147 = vmatprep.subr.bf16.mxu0 0
      %3148 = vmatpush2.bf16.msra.mxu0 0
      %3149 = vmatprep.subr.bf16.mxu0 0
      %3150 = vmatpush2.bf16.msra.mxu0 0
      %3151 = vmatprep.subr.bf16.mxu0 0
      %3152 = vmatpush2.bf16.msra.mxu0 0
      %3153 = vmatprep.subr.bf16.mxu0 0
      %3154 = vmatpush2.bf16.msra.mxu0 0
      %3155 = vmatprep.mubr.bf16.mxu0 0
      %3156 = vmatmul.mubr.bf16.gmra.mxu0 %v3051
      %v3157 = vpop.f32.mrf.mxu0
      %v3158 = vadd.f32 %v3073, %v3157
      %v3159 = vpop.f32.mrf.mxu0
      %v3160 = vpop.f32.mrf.mxu0
      %v3161 = vpop.f32.mrf.mxu0
      %3162 = vdwg.mxu0
      %v3163 = vmax.f32 %v3158, 0.0
      %v3164 = vpack.c.bf16 %v3163, %v3163
      %v3165 = vld [vmem:[%s9] sm:$0xf]
      %v3166 = vld [vmem:[%s9 + $0x4] sm:$0xf]
      %v3167 = vld [vmem:[%s9 + $0x8] sm:$0xf]
      %v3168 = vld [vmem:[%s9 + $0xc] sm:$0xf]
      %v3169 = vld [vmem:[%s9 + $0x10] sm:$0xf]
      %v3170 = vld [vmem:[%s9 + $0x14] sm:$0xf]
      %v3171 = vld [vmem:[%s9 + $0x18] sm:$0xf]
      %v3172 = vld [vmem:[%s9 + $0x1c] sm:$0xf]
      %v3173 = vld [vmem:[%s9 + $0x20] sm:$0xf]
      %v3174 = vld [vmem:[%s9 + $0x24] sm:$0xf]
      %v3175 = vld [vmem:[%s9 + $0x28] sm:$0xf]
      %v3176 = vld [vmem:[%s9 + $0x2c] sm:$0xf]
      %v3177 = vld [vmem:[%s9 + $0x30] sm:$0xf]
      %v3178 = vld [vmem:[%s9 + $0x34] sm:$0xf]
      %v3179 = vld [vmem:[%s9 + $0x38] sm:$0xf]
      %v3180 = vld [vmem:[%s9 + $0x3c] sm:$0xf]
      %v3181 = vld [vmem:[%s10] sm:$0x1]
      %v3183 = vlaneseq
      %v3184 = vshrl.u32 %v3183, 7
      %v3185 = vsub.s32 0, %v3184
      %v3186 = vrot.slane %v3181, %v3185
      %v3204 = vunpack.c.l.b16 %v3165
      %v3205 = vunpack.c.l.b16 %v3166
      %v3206 = vunpack.c.l.b16 %v3167
      %v3207 = vunpack.c.l.b16 %v3168
      %v3208 = vunpack.c.l.b16 %v3169
      %v3209 = vunpack.c.l.b16 %v3170
      %v3210 = vunpack.c.l.b16 %v3171
      %v3211 = vunpack.c.l.b16 %v3172
      %v3212 = vunpack.c.l.b16 %v3173
      %v3213 = vunpack.c.l.b16 %v3174
      %v3214 = vunpack.c.l.b16 %v3175
      %v3215 = vunpack.c.l.b16 %v3176
      %v3216 = vunpack.c.l.b16 %v3177
      %v3217 = vunpack.c.l.b16 %v3178
      %v3218 = vunpack.c.l.b16 %v3179
      %v3219 = vunpack.c.l.b16 %v3180
      %v3220 = vpack.c.b16 %v3205, %v3204
      %v3221 = vpack.c.b16 %v3207, %v3206
      %v3222 = vpack.c.b16 %v3209, %v3208
      %v3223 = vpack.c.b16 %v3211, %v3210
      %v3224 = vpack.c.b16 %v3213, %v3212
      %v3225 = vpack.c.b16 %v3215, %v3214
      %v3226 = vpack.c.b16 %v3217, %v3216
      %v3227 = vpack.c.b16 %v3219, %v3218
      %3236 = vmatprep.subr.bf16.mxu0 0
      %3237 = vmatpush1.bf16.msra.mxu0 %v3227
      %3238 = vmatprep.subr.bf16.mxu0 0
      %3239 = vmatpush1.bf16.msra.mxu0 %v3226
      %3240 = vmatprep.subr.bf16.mxu0 0
      %3241 = vmatpush1.bf16.msra.mxu0 %v3225
      %3242 = vmatprep.subr.bf16.mxu0 0
      %3243 = vmatpush1.bf16.msra.mxu0 %v3224
      %3244 = vmatprep.subr.bf16.mxu0 0
      %3245 = vmatpush1.bf16.msra.mxu0 %v3223
      %3246 = vmatprep.subr.bf16.mxu0 0
      %3247 = vmatpush1.bf16.msra.mxu0 %v3222
      %3248 = vmatprep.subr.bf16.mxu0 0
      %3249 = vmatpush1.bf16.msra.mxu0 %v3221
      %3250 = vmatprep.subr.bf16.mxu0 0
      %3251 = vmatpush1.bf16.msra.mxu0 %v3220
      %3252 = vmatprep.subr.bf16.mxu0 0
      %3253 = vmatpush2.bf16.msra.mxu0 0
      %3254 = vmatprep.subr.bf16.mxu0 0
      %3255 = vmatpush2.bf16.msra.mxu0 0
      %3256 = vmatprep.subr.bf16.mxu0 0
      %3257 = vmatpush2.bf16.msra.mxu0 0
      %3258 = vmatprep.subr.bf16.mxu0 0
      %3259 = vmatpush2.bf16.msra.mxu0 0
      %3260 = vmatprep.subr.bf16.mxu0 0
      %3261 = vmatpush2.bf16.msra.mxu0 0
      %3262 = vmatprep.subr.bf16.mxu0 0
      %3263 = vmatpush2.bf16.msra.mxu0 0
      %3264 = vmatprep.subr.bf16.mxu0 0
      %3265 = vmatpush2.bf16.msra.mxu0 0
      %3266 = vmatprep.subr.bf16.mxu0 0
      %3267 = vmatpush2.bf16.msra.mxu0 0
      %3268 = vmatprep.mubr.bf16.mxu0 0
      %3269 = vmatmul.mubr.bf16.gmra.mxu0 %v3164
      %v3270 = vpop.f32.mrf.mxu0
      %v3271 = vadd.f32 %v3186, %v3270
      %v3272 = vpop.f32.mrf.mxu0
      %v3273 = vpop.f32.mrf.mxu0
      %v3274 = vpop.f32.mrf.mxu0
      %3275 = vdwg.mxu0
      %3276 = vst [vmem:[%s11] sm:$0xff] %v3271
    $region69: #{sentiment_forward.1} parent=1 // pred_fallthru
      _
    // Predicated region
    $region70: #{sentiment_forward.1} parent=1 // pred_check
      _
    $region71: #{sentiment_forward.1} parent=1 // pred_check_branch
      %3278 = sbr.rel (0) target = $region73
    $region72: #{sentiment_forward.1} parent=1 // pred_region
      _
    $region73: #{sentiment_forward.1} parent=1 // pred_fallthru
      _
    // Predicated region
    $region74: #{sentiment_forward.1} parent=1 // pred_check
      _
    $region75: #{sentiment_forward.1} parent=1 // pred_check_branch
      %3280 = sbr.rel (0) target = $region77
    $region76: #{sentiment_forward.1} parent=1 // pred_region
      _
    $region77: #{sentiment_forward.1} parent=1 // pred_fallthru
      _
    %3281 = vsyncpa [#allocation7], 1
    %3282 = vsyncpa [#allocation9], 1
    %3283 = vsyncpa [#allocation12], 1

</llo_original>
